<compile_context>
chip_gen: v6e
topology: v6e:2x2x1
jax: 0.10.0
libtpu: 0.0.40
codegen_flags: <defaults>
</compile_context>

<pallas_src>
import functools

import jax
import jax.numpy as jnp
from jax.experimental import pallas as pl
from jax.experimental.pallas import tpu as pltpu

EPS = 1e-5  # PyTorch InstanceNorm2d default


def _conv_stats_kernel(x_ref, w_ref, y_ref, sum_ref, ssq_ref, acc_ref, *, tr, width, c_in):
    # x_ref:   (1, 1, tr+2, width+2, c_in) bf16  halo'd channels-last row tile
    # w_ref:   (9, c_in, c_out)            bf16  per-tap weight matrices
    # y_ref:   (1, c_out, tr*width)        bf16  raw conv output, lane-dense
    # sum_ref: (1, c_out, 1)               f32   per-channel sum   (accum over row tiles)
    # ssq_ref: (1, c_out, 1)               f32   per-channel sum^2 (accum over row tiles)
    # acc_ref: (tr*width, c_out)           f32   VMEM matmul accumulator
    r = pl.program_id(1)

    acc_ref[...] = jnp.zeros_like(acc_ref)
    x = x_ref[0, 0]                                        # (tr+2, width+2, c_in)
    for k in range(9):                                     # 9-tap accumulated matmul
        kh, kw = divmod(k, 3)
        xk = x[kh:kh + tr, kw:kw + width, :].reshape(tr * width, c_in)
        acc_ref[...] += jnp.dot(xk, w_ref[k], preferred_element_type=jnp.float32)

    yt = acc_ref[...].T                                    # (c_out, tr*width) lane-dense
    y_ref[0] = yt.astype(y_ref.dtype)

    @pl.when(r == 0)
    def _():
        sum_ref[...] = jnp.zeros_like(sum_ref)
        ssq_ref[...] = jnp.zeros_like(ssq_ref)

    sum_ref[0] += jnp.sum(yt, axis=1, keepdims=True)       # (c_out, 1)
    ssq_ref[0] += jnp.sum(yt * yt, axis=1, keepdims=True)  # (c_out, 1)


def _norm_relu_kernel(y_ref, sum_ref, ssq_ref, o_ref, *, inv_count, normalize):
    y = y_ref[0].astype(jnp.float32)                       # (c_out, tr*width)
    if normalize:
        mean = sum_ref[0] * inv_count                      # (c_out, 1)
        var = jnp.maximum(ssq_ref[0] * inv_count - mean * mean, 0.0)
        y = (y - mean) * jax.lax.rsqrt(var + EPS)
    o_ref[0] = jnp.maximum(y, 0.0).astype(o_ref.dtype)


def _choose_row_tile(h, w, c_out, target_bytes=2 << 20):
    """Largest row tile dividing H that keeps the f32 output tile <= ~2 MiB,
    preferring tiles whose flattened spatial extent is lane-dense (multiple of 128)."""
    divisors = [t for t in range(1, h + 1) if h % t == 0]
    fitting = [t for t in divisors if t * w * c_out * 4 <= target_bytes] or [1]
    dense = [t for t in fitting if (t * w) % 128 == 0]
    return max(dense) if dense else max(fitting)


@functools.partial(jax.jit, static_argnames=("normalize", "row_tile"))
def conv_pass_2d(x_nchw, weight_oihw, normalize=True, row_tile=None):
    """ConvPass2d forward.  x: (N, Cin, H, W) f32, weight: (Cout, Cin, 3, 3) f32.
    Returns (N, Cout, H, W) f32 = ReLU(InstanceNorm2d(Conv2d_3x3(x)))  (norm optional)."""
    n, c_in, h, w = x_nchw.shape
    c_out = weight_oihw.shape[0]
    tr = row_tile if row_tile is not None else _choose_row_tile(h, w, c_out)
    assert h % tr == 0, "row_tile must divide H"
    r_tiles = h // tr
    hw = h * w

    # Channels-last, bf16, spatially padded; overlapped (halo'd) row tiles so each grid
    # step only needs a rectangular BlockSpec window (no 9x HBM im2col).
    xp = jnp.pad(jnp.transpose(x_nchw, (0, 2, 3, 1)).astype(jnp.bfloat16),
                 ((0, 0), (1, 1), (1, 1), (0, 0)))                      # (N, H+2, W+2, Cin)
    x_tiles = jnp.stack([xp[:, r * tr:r * tr + tr + 2] for r in range(r_tiles)],
                        axis=1)                                         # (N, R, tr+2, W+2, Cin)

    # (Cout, Cin, kh, kw) -> (9, Cin, Cout) per-tap matrices.
    w_taps = jnp.transpose(weight_oihw.astype(jnp.bfloat16),
                           (2, 3, 1, 0)).reshape(9, c_in, c_out)

    kernel1 = functools.partial(_conv_stats_kernel, tr=tr, width=w, c_in=c_in)
    y_raw, ch_sum, ch_ssq = pl.pallas_call(
        kernel1,
        out_shape=(jax.ShapeDtypeStruct((n, c_out, hw), jnp.bfloat16),
                   jax.ShapeDtypeStruct((n, c_out, 1), jnp.float32),
                   jax.ShapeDtypeStruct((n, c_out, 1), jnp.float32)),
        grid_spec=pltpu.PrefetchScalarGridSpec(
            num_scalar_prefetch=0,
            grid=(n, r_tiles),
            in_specs=[
                pl.BlockSpec((1, 1, tr + 2, w + 2, c_in), lambda b, r: (b, r, 0, 0, 0)),
                pl.BlockSpec((9, c_in, c_out), lambda b, r: (0, 0, 0)),
            ],
            out_specs=(
                pl.BlockSpec((1, c_out, tr * w), lambda b, r: (b, 0, r)),
                pl.BlockSpec((1, c_out, 1), lambda b, r: (b, 0, 0)),
                pl.BlockSpec((1, c_out, 1), lambda b, r: (b, 0, 0)),
            ),
            scratch_shapes=[pltpu.VMEM((tr * w, c_out), jnp.float32)],
        ),
        compiler_params=pltpu.CompilerParams(
            dimension_semantics=("parallel", "arbitrary"),
            vmem_limit_bytes=32 * 1024 * 1024),
    )(x_tiles, w_taps)

    kernel2 = functools.partial(_norm_relu_kernel, inv_count=1.0 / hw, normalize=normalize)
    out = pl.pallas_call(
        kernel2,
        out_shape=jax.ShapeDtypeStruct((n, c_out, hw), jnp.float32),
        grid_spec=pltpu.PrefetchScalarGridSpec(
            num_scalar_prefetch=0,
            grid=(n, r_tiles),
            in_specs=[
                pl.BlockSpec((1, c_out, tr * w), lambda b, r: (b, 0, r)),
                pl.BlockSpec((1, c_out, 1), lambda b, r: (b, 0, 0)),
                pl.BlockSpec((1, c_out, 1), lambda b, r: (b, 0, 0)),
            ],
            out_specs=pl.BlockSpec((1, c_out, tr * w), lambda b, r: (b, 0, r)),
        ),
        compiler_params=pltpu.CompilerParams(
            dimension_semantics=("parallel", "parallel"),
            vmem_limit_bytes=32 * 1024 * 1024),
    )(y_raw, ch_sum, ch_ssq)

    return out.reshape(n, c_out, h, w)   # free reshape: (N, Cout, HW) -> (N, Cout, H, W)


def _reference(x, weight, normalize=True):
    """Pure-JAX reference (f32, highest precision) for validation."""
    y = jax.lax.conv_general_dilated(
        x.astype(jnp.float32), weight.astype(jnp.float32),
        window_strides=(1, 1), padding=((1, 1), (1, 1)),
        dimension_numbers=("NCHW", "OIHW", "NCHW"),
        precision=jax.lax.Precision.HIGHEST)
    if normalize:
        mean = jnp.mean(y, axis=(2, 3), keepdims=True)
        var = jnp.mean((y - mean) ** 2, axis=(2, 3), keepdims=True)
        y = (y - mean) * jax.lax.rsqrt(var + EPS)
    return jnp.maximum(y, 0.0)


if __name__ == "__main__":
    key = jax.random.PRNGKey(0)
    kx, kw0 = jax.random.split(key)

    # Small shapes consistent with the module: in_channels = 4*3 = 12 (module default).
    N, C_IN, C_OUT, H, W = 2, 12, 16, 16, 16

    x = jax.random.normal(kx, (N, C_IN, H, W), dtype=jnp.float32)
    fan_in = C_IN * 9
    bound = (1.0 / fan_in) ** 0.5
    weight = jax.random.uniform(kw0, (C_OUT, C_IN, 3, 3), dtype=jnp.float32,
                                minval=-bound, maxval=bound)

    # convp1/final-style block (with InstanceNorm). row_tile=8 -> 2 spatial tiles per image,
    # exercising the two-phase (tiled) instance-norm path with lane-dense 128-wide stores.
    out = jax.block_until_ready(conv_pass_2d(x, weight, normalize=True, row_tile=8))
    ref = _reference(x, weight, normalize=True)
    assert out.shape == (N, C_OUT, H, W)
    assert jnp.allclose(out, ref, atol=3e-2, rtol=3e-2), "normalize=True mismatch"

    # convp0-style block (normalize=False): conv + ReLU only.
    out_nf = jax.block_until_ready(conv_pass_2d(x, weight, normalize=False, row_tile=8))
    ref_nf = _reference(x, weight, normalize=False)
    assert jnp.allclose(out_nf, ref_nf, atol=3e-2, rtol=3e-2), "normalize=False mismatch"

    print("KERNEL_OK")
</pallas_src>

<mosaic_0001>
module attributes {stable_mosaic.version = 11 : i64} {
  func.func @_norm_relu_kernel(%arg0: i32, %arg1: i32, %arg2: memref<1x16x128xbf16, #tpu.memory_space<vmem>>, %arg3: memref<1x16x1xf32, #tpu.memory_space<vmem>>, %arg4: memref<1x16x1xf32, #tpu.memory_space<vmem>>, %arg5: memref<1x16x128xf32, #tpu.memory_space<vmem>>) attributes {dimension_semantics = [#tpu.dimension_semantics<parallel>, #tpu.dimension_semantics<parallel>], iteration_bounds = array<i64: 2, 2>, scalar_prefetch = 0 : i64, scratch_operands = 0 : i64, tpu.core_type = #tpu.core_type<tc>, window_params = [{transform_indices = @transform_0, window_bounds = array<i64: 1, 16, 128>}, {transform_indices = @transform_1, window_bounds = array<i64: 1, 16, 1>}, {transform_indices = @transform_2, window_bounds = array<i64: 1, 16, 1>}, {transform_indices = @transform_3, window_bounds = array<i64: 1, 16, 128>}]} {
    %c0 = arith.constant 0 : index
    %c0_0 = arith.constant 0 : index
    %c0_1 = arith.constant 0 : index
    %0 = vector.load %arg2[%c0, %c0_0, %c0_1] : memref<1x16x128xbf16, #tpu.memory_space<vmem>>, vector<1x16x128xbf16>
    %1 = vector.shape_cast %0 : vector<1x16x128xbf16> to vector<16x128xbf16>
    %2 = arith.extf %1 : vector<16x128xbf16> to vector<16x128xf32>
    %c0_2 = arith.constant 0 : index
    %c0_3 = arith.constant 0 : index
    %c0_4 = arith.constant 0 : index
    %3 = vector.load %arg3[%c0_2, %c0_3, %c0_4] : memref<1x16x1xf32, #tpu.memory_space<vmem>>, vector<1x16x1xf32>
    %4 = vector.shape_cast %3 : vector<1x16x1xf32> to vector<16x1xf32>
    %cst = arith.constant 3.906250e-03 : f32
    %5 = vector.broadcast %cst : f32 to vector<16x1xf32>
    %6 = arith.mulf %4, %5 : vector<16x1xf32>
    %c0_5 = arith.constant 0 : index
    %c0_6 = arith.constant 0 : index
    %c0_7 = arith.constant 0 : index
    %7 = vector.load %arg4[%c0_5, %c0_6, %c0_7] : memref<1x16x1xf32, #tpu.memory_space<vmem>>, vector<1x16x1xf32>
    %8 = vector.shape_cast %7 : vector<1x16x1xf32> to vector<16x1xf32>
    %cst_8 = arith.constant 3.906250e-03 : f32
    %9 = vector.broadcast %cst_8 : f32 to vector<16x1xf32>
    %10 = arith.mulf %8, %9 : vector<16x1xf32>
    %11 = arith.mulf %6, %6 : vector<16x1xf32>
    %12 = arith.subf %10, %11 : vector<16x1xf32>
    %cst_9 = arith.constant 0.000000e+00 : f32
    %13 = vector.broadcast %cst_9 : f32 to vector<16x1xf32>
    %14 = arith.maximumf %12, %13 : vector<16x1xf32>
    %15 = vector.broadcast %6 : vector<16x1xf32> to vector<16x128xf32>
    %16 = arith.subf %2, %15 : vector<16x128xf32>
    %cst_10 = arith.constant 9.99999974E-6 : f32
    %17 = vector.broadcast %cst_10 : f32 to vector<16x1xf32>
    %18 = arith.addf %14, %17 : vector<16x1xf32>
    %19 = math.rsqrt %18 : vector<16x1xf32>
    %20 = vector.broadcast %19 : vector<16x1xf32> to vector<16x128xf32>
    %21 = arith.mulf %16, %20 : vector<16x128xf32>
    %cst_11 = arith.constant 0.000000e+00 : f32
    %22 = vector.broadcast %cst_11 : f32 to vector<16x128xf32>
    %23 = arith.maximumf %21, %22 : vector<16x128xf32>
    %c0_12 = arith.constant 0 : index
    %c0_13 = arith.constant 0 : index
    %c0_14 = arith.constant 0 : index
    %24 = vector.load %arg5[%c0_12, %c0_13, %c0_14] : memref<1x16x128xf32, #tpu.memory_space<vmem>>, vector<1x16x128xf32>
    %25 = vector.shape_cast %24 : vector<1x16x128xf32> to vector<16x128xf32>
    %26 = vector.shape_cast %23 : vector<16x128xf32> to vector<1x16x128xf32>
    tpu.vector_store %arg5[%c0_12, %c0_13, %c0_14], %26 {strides = array<i32>} : memref<1x16x128xf32, #tpu.memory_space<vmem>>, vector<1x16x128xf32>,
    return
  }
  func.func @transform_0(%arg0: i32, %arg1: i32) -> (i32, i32, i32) {
    %c0_i32 = arith.constant 0 : i32
    %c0_i32_0 = arith.constant 0 : i32
    return %arg0, %c0_i32, %arg1 : i32, i32, i32
  }
  func.func @transform_1(%arg0: i32, %arg1: i32) -> (i32, i32, i32) {
    %c0_i32 = arith.constant 0 : i32
    %c0_i32_0 = arith.constant 0 : i32
    %c0_i32_1 = arith.constant 0 : i32
    return %arg0, %c0_i32, %c0_i32_0 : i32, i32, i32
  }
  func.func @transform_2(%arg0: i32, %arg1: i32) -> (i32, i32, i32) {
    %c0_i32 = arith.constant 0 : i32
    %c0_i32_0 = arith.constant 0 : i32
    %c0_i32_1 = arith.constant 0 : i32
    return %arg0, %c0_i32, %c0_i32_0 : i32, i32, i32
  }
  func.func @transform_3(%arg0: i32, %arg1: i32) -> (i32, i32, i32) {
    %c0_i32 = arith.constant 0 : i32
    %c0_i32_0 = arith.constant 0 : i32
    return %arg0, %c0_i32, %arg1 : i32, i32, i32
  }
}

module attributes {stable_mosaic.version = 11 : i64} {
  func.func @_conv_stats_kernel(%arg0: i32, %arg1: i32, %arg2: memref<1x1x10x18x12xbf16, #tpu.memory_space<vmem>>, %arg3: memref<9x12x16xbf16, #tpu.memory_space<vmem>>, %arg4: memref<1x16x128xbf16, #tpu.memory_space<vmem>>, %arg5: memref<1x16x1xf32, #tpu.memory_space<vmem>>, %arg6: memref<1x16x1xf32, #tpu.memory_space<vmem>>, %arg7: memref<128x16xf32, #tpu.memory_space<vmem>>) attributes {dimension_semantics = [#tpu.dimension_semantics<parallel>, #tpu.dimension_semantics<arbitrary>], iteration_bounds = array<i64: 2, 2>, scalar_prefetch = 0 : i64, scratch_operands = 1 : i64, tpu.core_type = #tpu.core_type<tc>, window_params = [{transform_indices = @transform_0, window_bounds = array<i64: 1, 1, 10, 18, 12>}, {pipeline_mode = #tpu.pipeline_mode<synchronous>, transform_indices = @transform_1, window_bounds = array<i64: 9, 12, 16>}, {transform_indices = @transform_2, window_bounds = array<i64: 1, 16, 128>}, {transform_indices = @transform_3, window_bounds = array<i64: 1, 16, 1>}, {transform_indices = @transform_4, window_bounds = array<i64: 1, 16, 1>}]} {
    %cst = arith.constant 0.000000e+00 : f32
    %0 = vector.broadcast %cst : f32 to vector<128x16xf32>
    %c0 = arith.constant 0 : index
    %c0_0 = arith.constant 0 : index
    %1 = vector.load %arg7[%c0, %c0_0] : memref<128x16xf32, #tpu.memory_space<vmem>>, vector<128x16xf32>
    tpu.vector_store %arg7[%c0, %c0_0], %0 {strides = array<i32>} : memref<128x16xf32, #tpu.memory_space<vmem>>, vector<128x16xf32>,
    %c0_1 = arith.constant 0 : index
    %c0_2 = arith.constant 0 : index
    %c0_3 = arith.constant 0 : index
    %c0_4 = arith.constant 0 : index
    %c0_5 = arith.constant 0 : index
    %2 = vector.load %arg2[%c0_1, %c0_2, %c0_3, %c0_4, %c0_5] : memref<1x1x10x18x12xbf16, #tpu.memory_space<vmem>>, vector<1x1x10x18x12xbf16>
    %3 = vector.shape_cast %2 : vector<1x1x10x18x12xbf16> to vector<10x18x12xbf16>
    %4 = vector.extract_strided_slice %3 {offsets = [0, 0, 0], sizes = [8, 16, 12], strides = [1, 1, 1]} : vector<10x18x12xbf16> to vector<8x16x12xbf16>
    %5 = vector.shape_cast %4 : vector<8x16x12xbf16> to vector<128x12xbf16>
    %c0_6 = arith.constant 0 : index
    %c0_7 = arith.constant 0 : index
    %6 = vector.load %arg7[%c0_6, %c0_7] : memref<128x16xf32, #tpu.memory_space<vmem>>, vector<128x16xf32>
    %c0_8 = arith.constant 0 : index
    %c0_9 = arith.constant 0 : index
    %c0_10 = arith.constant 0 : index
    %7 = vector.load %arg3[%c0_8, %c0_9, %c0_10] : memref<9x12x16xbf16, #tpu.memory_space<vmem>>, vector<1x12x16xbf16>
    %8 = vector.shape_cast %7 : vector<1x12x16xbf16> to vector<12x16xbf16>
    %cst_11 = arith.constant dense<0.000000e+00> : vector<128x16xf32>
    %9 = tpu.matmul %5, %8, %cst_11 {dimension_numbers = #tpu.dot_dimension_numbers<[1], [0], [0], [1], [0, 0, 1, 1], [], []>} : vector<128x12xbf16>, vector<12x16xbf16>, vector<128x16xf32> -> vector<128x16xf32>
    %10 = arith.addf %6, %9 : vector<128x16xf32>
    %c0_12 = arith.constant 0 : index
    %c0_13 = arith.constant 0 : index
    %11 = vector.load %arg7[%c0_12, %c0_13] : memref<128x16xf32, #tpu.memory_space<vmem>>, vector<128x16xf32>
    tpu.vector_store %arg7[%c0_12, %c0_13], %10 {strides = array<i32>} : memref<128x16xf32, #tpu.memory_space<vmem>>, vector<128x16xf32>,
    %12 = vector.extract_strided_slice %3 {offsets = [0, 1, 0], sizes = [8, 16, 12], strides = [1, 1, 1]} : vector<10x18x12xbf16> to vector<8x16x12xbf16>
    %13 = vector.shape_cast %12 : vector<8x16x12xbf16> to vector<128x12xbf16>
    %c0_14 = arith.constant 0 : index
    %c0_15 = arith.constant 0 : index
    %14 = vector.load %arg7[%c0_14, %c0_15] : memref<128x16xf32, #tpu.memory_space<vmem>>, vector<128x16xf32>
    %c1 = arith.constant 1 : index
    %c0_16 = arith.constant 0 : index
    %c0_17 = arith.constant 0 : index
    %15 = vector.load %arg3[%c1, %c0_16, %c0_17] : memref<9x12x16xbf16, #tpu.memory_space<vmem>>, vector<1x12x16xbf16>
    %16 = vector.shape_cast %15 : vector<1x12x16xbf16> to vector<12x16xbf16>
    %cst_18 = arith.constant dense<0.000000e+00> : vector<128x16xf32>
    %17 = tpu.matmul %13, %16, %cst_18 {dimension_numbers = #tpu.dot_dimension_numbers<[1], [0], [0], [1], [0, 0, 1, 1], [], []>} : vector<128x12xbf16>, vector<12x16xbf16>, vector<128x16xf32> -> vector<128x16xf32>
    %18 = arith.addf %14, %17 : vector<128x16xf32>
    %c0_19 = arith.constant 0 : index
    %c0_20 = arith.constant 0 : index
    %19 = vector.load %arg7[%c0_19, %c0_20] : memref<128x16xf32, #tpu.memory_space<vmem>>, vector<128x16xf32>
    tpu.vector_store %arg7[%c0_19, %c0_20], %18 {strides = array<i32>} : memref<128x16xf32, #tpu.memory_space<vmem>>, vector<128x16xf32>,
    %20 = vector.extract_strided_slice %3 {offsets = [0, 2, 0], sizes = [8, 16, 12], strides = [1, 1, 1]} : vector<10x18x12xbf16> to vector<8x16x12xbf16>
    %21 = vector.shape_cast %20 : vector<8x16x12xbf16> to vector<128x12xbf16>
    %c0_21 = arith.constant 0 : index
    %c0_22 = arith.constant 0 : index
    %22 = vector.load %arg7[%c0_21, %c0_22] : memref<128x16xf32, #tpu.memory_space<vmem>>, vector<128x16xf32>
    %c2 = arith.constant 2 : index
    %c0_23 = arith.constant 0 : index
    %c0_24 = arith.constant 0 : index
    %23 = vector.load %arg3[%c2, %c0_23, %c0_24] : memref<9x12x16xbf16, #tpu.memory_space<vmem>>, vector<1x12x16xbf16>
    %24 = vector.shape_cast %23 : vector<1x12x16xbf16> to vector<12x16xbf16>
    %cst_25 = arith.constant dense<0.000000e+00> : vector<128x16xf32>
    %25 = tpu.matmul %21, %24, %cst_25 {dimension_numbers = #tpu.dot_dimension_numbers<[1], [0], [0], [1], [0, 0, 1, 1], [], []>} : vector<128x12xbf16>, vector<12x16xbf16>, vector<128x16xf32> -> vector<128x16xf32>
    %26 = arith.addf %22, %25 : vector<128x16xf32>
    %c0_26 = arith.constant 0 : index
    %c0_27 = arith.constant 0 : index
    %27 = vector.load %arg7[%c0_26, %c0_27] : memref<128x16xf32, #tpu.memory_space<vmem>>, vector<128x16xf32>
    tpu.vector_store %arg7[%c0_26, %c0_27], %26 {strides = array<i32>} : memref<128x16xf32, #tpu.memory_space<vmem>>, vector<128x16xf32>,
    %28 = vector.extract_strided_slice %3 {offsets = [1, 0, 0], sizes = [8, 16, 12], strides = [1, 1, 1]} : vector<10x18x12xbf16> to vector<8x16x12xbf16>
    %29 = vector.shape_cast %28 : vector<8x16x12xbf16> to vector<128x12xbf16>
    %c0_28 = arith.constant 0 : index
    %c0_29 = arith.constant 0 : index
    %30 = vector.load %arg7[%c0_28, %c0_29] : memref<128x16xf32, #tpu.memory_space<vmem>>, vector<128x16xf32>
    %c3 = arith.constant 3 : index
    %c0_30 = arith.constant 0 : index
    %c0_31 = arith.constant 0 : index
    %31 = vector.load %arg3[%c3, %c0_30, %c0_31] : memref<9x12x16xbf16, #tpu.memory_space<vmem>>, vector<1x12x16xbf16>
    %32 = vector.shape_cast %31 : vector<1x12x16xbf16> to vector<12x16xbf16>
    %cst_32 = arith.constant dense<0.000000e+00> : vector<128x16xf32>
    %33 = tpu.matmul %29, %32, %cst_32 {dimension_numbers = #tpu.dot_dimension_numbers<[1], [0], [0], [1], [0, 0, 1, 1], [], []>} : vector<128x12xbf16>, vector<12x16xbf16>, vector<128x16xf32> -> vector<128x16xf32>
    %34 = arith.addf %30, %33 : vector<128x16xf32>
    %c0_33 = arith.constant 0 : index
    %c0_34 = arith.constant 0 : index
    %35 = vector.load %arg7[%c0_33, %c0_34] : memref<128x16xf32, #tpu.memory_space<vmem>>, vector<128x16xf32>
    tpu.vector_store %arg7[%c0_33, %c0_34], %34 {strides = array<i32>} : memref<128x16xf32, #tpu.memory_space<vmem>>, vector<128x16xf32>,
    %36 = vector.extract_strided_slice %3 {offsets = [1, 1, 0], sizes = [8, 16, 12], strides = [1, 1, 1]} : vector<10x18x12xbf16> to vector<8x16x12xbf16>
    %37 = vector.shape_cast %36 : vector<8x16x12xbf16> to vector<128x12xbf16>
    %c0_35 = arith.constant 0 : index
    %c0_36 = arith.constant 0 : index
    %38 = vector.load %arg7[%c0_35, %c0_36] : memref<128x16xf32, #tpu.memory_space<vmem>>, vector<128x16xf32>
    %c4 = arith.constant 4 : index
    %c0_37 = arith.constant 0 : index
    %c0_38 = arith.constant 0 : index
    %39 = vector.load %arg3[%c4, %c0_37, %c0_38] : memref<9x12x16xbf16, #tpu.memory_space<vmem>>, vector<1x12x16xbf16>
    %40 = vector.shape_cast %39 : vector<1x12x16xbf16> to vector<12x16xbf16>
    %cst_39 = arith.constant dense<0.000000e+00> : vector<128x16xf32>
    %41 = tpu.matmul %37, %40, %cst_39 {dimension_numbers = #tpu.dot_dimension_numbers<[1], [0], [0], [1], [0, 0, 1, 1], [], []>} : vector<128x12xbf16>, vector<12x16xbf16>, vector<128x16xf32> -> vector<128x16xf32>
    %42 = arith.addf %38, %41 : vector<128x16xf32>
    %c0_40 = arith.constant 0 : index
    %c0_41 = arith.constant 0 : index
    %43 = vector.load %arg7[%c0_40, %c0_41] : memref<128x16xf32, #tpu.memory_space<vmem>>, vector<128x16xf32>
    tpu.vector_store %arg7[%c0_40, %c0_41], %42 {strides = array<i32>} : memref<128x16xf32, #tpu.memory_space<vmem>>, vector<128x16xf32>,
    %44 = vector.extract_strided_slice %3 {offsets = [1, 2, 0], sizes = [8, 16, 12], strides = [1, 1, 1]} : vector<10x18x12xbf16> to vector<8x16x12xbf16>
    %45 = vector.shape_cast %44 : vector<8x16x12xbf16> to vector<128x12xbf16>
    %c0_42 = arith.constant 0 : index
    %c0_43 = arith.constant 0 : index
    %46 = vector.load %arg7[%c0_42, %c0_43] : memref<128x16xf32, #tpu.memory_space<vmem>>, vector<128x16xf32>
    %c5 = arith.constant 5 : index
    %c0_44 = arith.constant 0 : index
    %c0_45 = arith.constant 0 : index
    %47 = vector.load %arg3[%c5, %c0_44, %c0_45] : memref<9x12x16xbf16, #tpu.memory_space<vmem>>, vector<1x12x16xbf16>
    %48 = vector.shape_cast %47 : vector<1x12x16xbf16> to vector<12x16xbf16>
    %cst_46 = arith.constant dense<0.000000e+00> : vector<128x16xf32>
    %49 = tpu.matmul %45, %48, %cst_46 {dimension_numbers = #tpu.dot_dimension_numbers<[1], [0], [0], [1], [0, 0, 1, 1], [], []>} : vector<128x12xbf16>, vector<12x16xbf16>, vector<128x16xf32> -> vector<128x16xf32>
    %50 = arith.addf %46, %49 : vector<128x16xf32>
    %c0_47 = arith.constant 0 : index
    %c0_48 = arith.constant 0 : index
    %51 = vector.load %arg7[%c0_47, %c0_48] : memref<128x16xf32, #tpu.memory_space<vmem>>, vector<128x16xf32>
    tpu.vector_store %arg7[%c0_47, %c0_48], %50 {strides = array<i32>} : memref<128x16xf32, #tpu.memory_space<vmem>>, vector<128x16xf32>,
    %52 = vector.extract_strided_slice %3 {offsets = [2, 0, 0], sizes = [8, 16, 12], strides = [1, 1, 1]} : vector<10x18x12xbf16> to vector<8x16x12xbf16>
    %53 = vector.shape_cast %52 : vector<8x16x12xbf16> to vector<128x12xbf16>
    %c0_49 = arith.constant 0 : index
    %c0_50 = arith.constant 0 : index
    %54 = vector.load %arg7[%c0_49, %c0_50] : memref<128x16xf32, #tpu.memory_space<vmem>>, vector<128x16xf32>
    %c6 = arith.constant 6 : index
    %c0_51 = arith.constant 0 : index
    %c0_52 = arith.constant 0 : index
    %55 = vector.load %arg3[%c6, %c0_51, %c0_52] : memref<9x12x16xbf16, #tpu.memory_space<vmem>>, vector<1x12x16xbf16>
    %56 = vector.shape_cast %55 : vector<1x12x16xbf16> to vector<12x16xbf16>
    %cst_53 = arith.constant dense<0.000000e+00> : vector<128x16xf32>
    %57 = tpu.matmul %53, %56, %cst_53 {dimension_numbers = #tpu.dot_dimension_numbers<[1], [0], [0], [1], [0, 0, 1, 1], [], []>} : vector<128x12xbf16>, vector<12x16xbf16>, vector<128x16xf32> -> vector<128x16xf32>
    %58 = arith.addf %54, %57 : vector<128x16xf32>
    %c0_54 = arith.constant 0 : index
    %c0_55 = arith.constant 0 : index
    %59 = vector.load %arg7[%c0_54, %c0_55] : memref<128x16xf32, #tpu.memory_space<vmem>>, vector<128x16xf32>
    tpu.vector_store %arg7[%c0_54, %c0_55], %58 {strides = array<i32>} : memref<128x16xf32, #tpu.memory_space<vmem>>, vector<128x16xf32>,
    %60 = vector.extract_strided_slice %3 {offsets = [2, 1, 0], sizes = [8, 16, 12], strides = [1, 1, 1]} : vector<10x18x12xbf16> to vector<8x16x12xbf16>
    %61 = vector.shape_cast %60 : vector<8x16x12xbf16> to vector<128x12xbf16>
    %c0_56 = arith.constant 0 : index
    %c0_57 = arith.constant 0 : index
    %62 = vector.load %arg7[%c0_56, %c0_57] : memref<128x16xf32, #tpu.memory_space<vmem>>, vector<128x16xf32>
    %c7 = arith.constant 7 : index
    %c0_58 = arith.constant 0 : index
    %c0_59 = arith.constant 0 : index
    %63 = vector.load %arg3[%c7, %c0_58, %c0_59] : memref<9x12x16xbf16, #tpu.memory_space<vmem>>, vector<1x12x16xbf16>
    %64 = vector.shape_cast %63 : vector<1x12x16xbf16> to vector<12x16xbf16>
    %cst_60 = arith.constant dense<0.000000e+00> : vector<128x16xf32>
    %65 = tpu.matmul %61, %64, %cst_60 {dimension_numbers = #tpu.dot_dimension_numbers<[1], [0], [0], [1], [0, 0, 1, 1], [], []>} : vector<128x12xbf16>, vector<12x16xbf16>, vector<128x16xf32> -> vector<128x16xf32>
    %66 = arith.addf %62, %65 : vector<128x16xf32>
    %c0_61 = arith.constant 0 : index
    %c0_62 = arith.constant 0 : index
    %67 = vector.load %arg7[%c0_61, %c0_62] : memref<128x16xf32, #tpu.memory_space<vmem>>, vector<128x16xf32>
    tpu.vector_store %arg7[%c0_61, %c0_62], %66 {strides = array<i32>} : memref<128x16xf32, #tpu.memory_space<vmem>>, vector<128x16xf32>,
    %68 = vector.extract_strided_slice %3 {offsets = [2, 2, 0], sizes = [8, 16, 12], strides = [1, 1, 1]} : vector<10x18x12xbf16> to vector<8x16x12xbf16>
    %69 = vector.shape_cast %68 : vector<8x16x12xbf16> to vector<128x12xbf16>
    %c0_63 = arith.constant 0 : index
    %c0_64 = arith.constant 0 : index
    %70 = vector.load %arg7[%c0_63, %c0_64] : memref<128x16xf32, #tpu.memory_space<vmem>>, vector<128x16xf32>
    %c8 = arith.constant 8 : index
    %c0_65 = arith.constant 0 : index
    %c0_66 = arith.constant 0 : index
    %71 = vector.load %arg3[%c8, %c0_65, %c0_66] : memref<9x12x16xbf16, #tpu.memory_space<vmem>>, vector<1x12x16xbf16>
    %72 = vector.shape_cast %71 : vector<1x12x16xbf16> to vector<12x16xbf16>
    %cst_67 = arith.constant dense<0.000000e+00> : vector<128x16xf32>
    %73 = tpu.matmul %69, %72, %cst_67 {dimension_numbers = #tpu.dot_dimension_numbers<[1], [0], [0], [1], [0, 0, 1, 1], [], []>} : vector<128x12xbf16>, vector<12x16xbf16>, vector<128x16xf32> -> vector<128x16xf32>
    %74 = arith.addf %70, %73 : vector<128x16xf32>
    %c0_68 = arith.constant 0 : index
    %c0_69 = arith.constant 0 : index
    %75 = vector.load %arg7[%c0_68, %c0_69] : memref<128x16xf32, #tpu.memory_space<vmem>>, vector<128x16xf32>
    tpu.vector_store %arg7[%c0_68, %c0_69], %74 {strides = array<i32>} : memref<128x16xf32, #tpu.memory_space<vmem>>, vector<128x16xf32>,
    %c0_70 = arith.constant 0 : index
    %c0_71 = arith.constant 0 : index
    %76 = vector.load %arg7[%c0_70, %c0_71] : memref<128x16xf32, #tpu.memory_space<vmem>>, vector<128x16xf32>
    %77 = tpu.transpose %76, [1, 0] : vector<128x16xf32> -> vector<16x128xf32>
    %78 = arith.truncf %77 : vector<16x128xf32> to vector<16x128xbf16>
    %c0_72 = arith.constant 0 : index
    %c0_73 = arith.constant 0 : index
    %c0_74 = arith.constant 0 : index
    %79 = vector.load %arg4[%c0_72, %c0_73, %c0_74] : memref<1x16x128xbf16, #tpu.memory_space<vmem>>, vector<1x16x128xbf16>
    %80 = vector.shape_cast %79 : vector<1x16x128xbf16> to vector<16x128xbf16>
    %81 = vector.shape_cast %78 : vector<16x128xbf16> to vector<1x16x128xbf16>
    tpu.vector_store %arg4[%c0_72, %c0_73, %c0_74], %81 {strides = array<i32>} : memref<1x16x128xbf16, #tpu.memory_space<vmem>>, vector<1x16x128xbf16>,
    %c0_i32 = arith.constant 0 : i32
    %82 = arith.cmpi eq, %arg1, %c0_i32 : i32
    %83 = arith.extui %82 : i1 to i32
    %c0_i32_75 = arith.constant 0 : i32
    %84 = arith.cmpi ne, %83, %c0_i32_75 : i32
    scf.if %84 {
      %cst_90 = arith.constant 0.000000e+00 : f32
      %102 = vector.broadcast %cst_90 : f32 to vector<1x16x1xf32>
      %c0_91 = arith.constant 0 : index
      %c0_92 = arith.constant 0 : index
      %c0_93 = arith.constant 0 : index
      %103 = vector.load %arg5[%c0_91, %c0_92, %c0_93] : memref<1x16x1xf32, #tpu.memory_space<vmem>>, vector<1x16x1xf32>
      tpu.vector_store %arg5[%c0_91, %c0_92, %c0_93], %102 {strides = array<i32>} : memref<1x16x1xf32, #tpu.memory_space<vmem>>, vector<1x16x1xf32>,
      %cst_94 = arith.constant 0.000000e+00 : f32
      %104 = vector.broadcast %cst_94 : f32 to vector<1x16x1xf32>
      %c0_95 = arith.constant 0 : index
      %c0_96 = arith.constant 0 : index
      %c0_97 = arith.constant 0 : index
      %105 = vector.load %arg6[%c0_95, %c0_96, %c0_97] : memref<1x16x1xf32, #tpu.memory_space<vmem>>, vector<1x16x1xf32>
      tpu.vector_store %arg6[%c0_95, %c0_96, %c0_97], %104 {strides = array<i32>} : memref<1x16x1xf32, #tpu.memory_space<vmem>>, vector<1x16x1xf32>,
    } else {
    }
    %c0_76 = arith.constant 0 : index
    %c0_77 = arith.constant 0 : index
    %c0_78 = arith.constant 0 : index
    %85 = vector.load %arg5[%c0_76, %c0_77, %c0_78] : memref<1x16x1xf32, #tpu.memory_space<vmem>>, vector<1x16x1xf32>
    %86 = vector.shape_cast %85 : vector<1x16x1xf32> to vector<16x1xf32>
    %cst_79 = arith.constant dense<0.000000e+00> : vector<16xf32>
    %87 = vector.multi_reduction <add>, %77, %cst_79 [1] : vector<16x128xf32> to vector<16xf32>
    %88 = vector.shape_cast %87 : vector<16xf32> to vector<16x1xf32>
    %89 = arith.addf %86, %88 : vector<16x1xf32>
    %c0_80 = arith.constant 0 : index
    %c0_81 = arith.constant 0 : index
    %c0_82 = arith.constant 0 : index
    %90 = vector.load %arg5[%c0_80, %c0_81, %c0_82] : memref<1x16x1xf32, #tpu.memory_space<vmem>>, vector<1x16x1xf32>
    %91 = vector.shape_cast %90 : vector<1x16x1xf32> to vector<16x1xf32>
    %92 = vector.shape_cast %89 : vector<16x1xf32> to vector<1x16x1xf32>
    tpu.vector_store %arg5[%c0_80, %c0_81, %c0_82], %92 {strides = array<i32>} : memref<1x16x1xf32, #tpu.memory_space<vmem>>, vector<1x16x1xf32>,
    %c0_83 = arith.constant 0 : index
    %c0_84 = arith.constant 0 : index
    %c0_85 = arith.constant 0 : index
    %93 = vector.load %arg6[%c0_83, %c0_84, %c0_85] : memref<1x16x1xf32, #tpu.memory_space<vmem>>, vector<1x16x1xf32>
    %94 = vector.shape_cast %93 : vector<1x16x1xf32> to vector<16x1xf32>
    %95 = arith.mulf %77, %77 : vector<16x128xf32>
    %cst_86 = arith.constant dense<0.000000e+00> : vector<16xf32>
    %96 = vector.multi_reduction <add>, %95, %cst_86 [1] : vector<16x128xf32> to vector<16xf32>
    %97 = vector.shape_cast %96 : vector<16xf32> to vector<16x1xf32>
    %98 = arith.addf %94, %97 : vector<16x1xf32>
    %c0_87 = arith.constant 0 : index
    %c0_88 = arith.constant 0 : index
    %c0_89 = arith.constant 0 : index
    %99 = vector.load %arg6[%c0_87, %c0_88, %c0_89] : memref<1x16x1xf32, #tpu.memory_space<vmem>>, vector<1x16x1xf32>
    %100 = vector.shape_cast %99 : vector<1x16x1xf32> to vector<16x1xf32>
    %101 = vector.shape_cast %98 : vector<16x1xf32> to vector<1x16x1xf32>
    tpu.vector_store %arg6[%c0_87, %c0_88, %c0_89], %101 {strides = array<i32>} : memref<1x16x1xf32, #tpu.memory_space<vmem>>, vector<1x16x1xf32>,
    return
  }
  func.func @transform_0(%arg0: i32, %arg1: i32) -> (i32, i32, i32, i32, i32) {
    %c0_i32 = arith.constant 0 : i32
    %c0_i32_0 = arith.constant 0 : i32
    %c0_i32_1 = arith.constant 0 : i32
    %c0_i32_2 = arith.constant 0 : i32
    return %arg0, %arg1, %c0_i32, %c0_i32_0, %c0_i32_1 : i32, i32, i32, i32, i32
  }
  func.func @transform_1(%arg0: i32, %arg1: i32) -> (i32, i32, i32) {
    %c0_i32 = arith.constant 0 : i32
    %c0_i32_0 = arith.constant 0 : i32
    %c0_i32_1 = arith.constant 0 : i32
    %c0_i32_2 = arith.constant 0 : i32
    return %c0_i32, %c0_i32_0, %c0_i32_1 : i32, i32, i32
  }
  func.func @transform_2(%arg0: i32, %arg1: i32) -> (i32, i32, i32) {
    %c0_i32 = arith.constant 0 : i32
    %c0_i32_0 = arith.constant 0 : i32
    return %arg0, %c0_i32, %arg1 : i32, i32, i32
  }
  func.func @transform_3(%arg0: i32, %arg1: i32) -> (i32, i32, i32) {
    %c0_i32 = arith.constant 0 : i32
    %c0_i32_0 = arith.constant 0 : i32
    %c0_i32_1 = arith.constant 0 : i32
    return %arg0, %c0_i32, %c0_i32_0 : i32, i32, i32
  }
  func.func @transform_4(%arg0: i32, %arg1: i32) -> (i32, i32, i32) {
    %c0_i32 = arith.constant 0 : i32
    %c0_i32_0 = arith.constant 0 : i32
    %c0_i32_1 = arith.constant 0 : i32
    return %arg0, %c0_i32, %c0_i32_0 : i32, i32, i32
  }
}

</mosaic_0001>

<llo_original>
// kernel: conv_pass_2d.3
$region0: #{conv_pass_2d.3}
  #allocation0 [shape = 'u32[]', space=smem, size = 0x4, offset = 0x4, fixed_abs, tag = 'smem constant byte address 0x4 - core index']
  #allocation1 [shape = 'u32[144,128]{1,0:T(1,128)}', space=vmem, size = 0x12000, scoped, tag = 'internal scratch']
  %s0 = inlined_call_operand.vmem [shape: bf16[2,16,256], index: 0, kind: input, shape index: {}]
  %s1 = inlined_call_operand.vmem [shape: f32[2,16,1], index: 1, kind: input, shape index: {}]
  %s2 = inlined_call_operand.vmem [shape: f32[2,16,1], index: 2, kind: input, shape index: {}]
  %s3 = inlined_call_operand.vmem [shape: f32[2,16,256], index: 3, kind: output, shape index: {}]
  %s4 = sld [smem:[#allocation0]]
  $region120: #{conv_pass_2d.3} parent=0
    _
  %s6 = ssub.s32 1, %s4
  %s7 = scalar_select 0, %s6, %s4
  $region1: #{conv_pass_2d.3} parent=0
    #allocation2 [shape = 'u8[8192]{0}', space=vmem, size = 0x2000, scoped, tag = 'input window, operand 0']
    #allocation3 [shape = 'u8[16384]{0}', space=vmem, size = 0x4000, scoped, tag = 'output window, operand 0']
    loop: start=0, step=1, limit=6
    $region2: #{conv_pass_2d.3} parent=1 // loop_pre_header
      _
    $region3: #{conv_pass_2d.3} parent=1 // loop_header
      %s9 = sphi 0, %s13
      %p10 = scmp.ge.s32.totalorder %s9, 6
      %s16 = sphi 0, %s28
      %s17 = sphi 0, %s24
      %s18 = sphi 0, %s16
      %s19 = sphi 0, %s17
      %s20 = sphi 0, %s18
      %s21 = sphi 0, %s19
      %s33 = sphi 0, %s35
      %s36 = sphi 0, %s33
      %s37 = sphi 0, %s36
      %s53 = sphi 0, %s37
      %s59 = sphi 0, %s61
      %s62 = sphi 0, %s59
      %s63 = sphi 0, %s62
      %s79 = sphi 0, %s63
      %s85 = sphi 0, %s87
      %s88 = sphi 0, %s85
      %s89 = sphi 0, %s88
      %s105 = sphi 0, %s89
      %s113 = sphi 0, %s115
      %s116 = sphi 0, %s113
      %s117 = sphi 0, %s116
      %s133 = sphi 0, %s117
    $region4: #{conv_pass_2d.3} parent=1 // loop_header_branch
      %12 = sbr.rel (%p10) target = $region8
    $region5: #{conv_pass_2d.3} parent=1 // loop_body
      %s14 = ssub.s32 %s9, 1
      %s15 = ssub.s32 %s9, 2
      %s22 = sadd.s32 1, %s17
      %p23 = scmp.ge.s32.totalorder %s22, 2
      %s24 = scalar_select %p23, 0, %s22
      %s25 = sadd.s32 1, %s16
      %s26 = scalar_select %p23, %s25, %s16
      %p27 = scmp.ge.s32.totalorder %s26, 2
      %s28 = scalar_select %p27, 0, %s26
      %s29 = ssub.s32 %s16, %s28
      %s30 = ssub.s32 %s17, %s24
      %s31 = sor.u32 %s29, %s30
      %p32 = scmp.eq.s32.totalorder %s31, 0
      %s34 = sadd.s32 %s33, 1
      %s35 = scalar_select %p32, %s33, %s34
      %p38 = pneg %p32
      %p39 = scmp.eq.s32.totalorder %s9, 3
      %p40 = por %p38, %p39
      %p41 = scmp.ne.s32.totalorder %s33, %s36
      %p42 = scmp.eq.s32.totalorder %s9, 0
      %p43 = por %p41, %p42
      %p44 = scmp.ne.s32.totalorder %s33, %s36
      %p45 = scmp.eq.s32.totalorder %s14, 3
      %p46 = por %p44, %p45
      %p47 = scmp.ne.s32.totalorder %s36, %s37
      %p48 = scmp.eq.s32.totalorder %s14, 0
      %p49 = por %p47, %p48
      %p50 = scmp.ne.s32.totalorder %s36, %s37
      %p51 = scmp.eq.s32.totalorder %s15, 3
      %p52 = por %p50, %p51
      %p54 = scmp.ne.s32.totalorder %s37, %s53
      %p55 = scmp.eq.s32.totalorder %s15, 0
      %p56 = por %p54, %p55
      %s57 = ssub.s32 %s16, %s28
      %p58 = scmp.eq.s32.totalorder %s57, 0
      %s60 = sadd.s32 %s59, 1
      %s61 = scalar_select %p58, %s59, %s60
      %p64 = pneg %p58
      %p65 = scmp.eq.s32.totalorder %s9, 3
      %p66 = por %p64, %p65
      %p67 = scmp.ne.s32.totalorder %s59, %s62
      %p68 = scmp.eq.s32.totalorder %s9, 0
      %p69 = por %p67, %p68
      %p70 = scmp.ne.s32.totalorder %s59, %s62
      %p71 = scmp.eq.s32.totalorder %s14, 3
      %p72 = por %p70, %p71
      %p73 = scmp.ne.s32.totalorder %s62, %s63
      %p74 = scmp.eq.s32.totalorder %s14, 0
      %p75 = por %p73, %p74
      %p76 = scmp.ne.s32.totalorder %s62, %s63
      %p77 = scmp.eq.s32.totalorder %s15, 3
      %p78 = por %p76, %p77
      %p80 = scmp.ne.s32.totalorder %s63, %s79
      %p81 = scmp.eq.s32.totalorder %s15, 0
      %p82 = por %p80, %p81
      %s83 = ssub.s32 %s16, %s28
      %p84 = scmp.eq.s32.totalorder %s83, 0
      %s86 = sadd.s32 %s85, 1
      %s87 = scalar_select %p84, %s85, %s86
      %p90 = pneg %p84
      %p91 = scmp.eq.s32.totalorder %s9, 3
      %p92 = por %p90, %p91
      %p93 = scmp.ne.s32.totalorder %s85, %s88
      %p94 = scmp.eq.s32.totalorder %s9, 0
      %p95 = por %p93, %p94
      %p96 = scmp.ne.s32.totalorder %s85, %s88
      %p97 = scmp.eq.s32.totalorder %s14, 3
      %p98 = por %p96, %p97
      %p99 = scmp.ne.s32.totalorder %s88, %s89
      %p100 = scmp.eq.s32.totalorder %s14, 0
      %p101 = por %p99, %p100
      %p102 = scmp.ne.s32.totalorder %s88, %s89
      %p103 = scmp.eq.s32.totalorder %s15, 3
      %p104 = por %p102, %p103
      %p106 = scmp.ne.s32.totalorder %s89, %s105
      %p107 = scmp.eq.s32.totalorder %s15, 0
      %p108 = por %p106, %p107
      %s109 = ssub.s32 %s16, %s28
      %s110 = ssub.s32 %s17, %s24
      %s111 = sor.u32 %s109, %s110
      %p112 = scmp.eq.s32.totalorder %s111, 0
      %s114 = sadd.s32 %s113, 1
      %s115 = scalar_select %p112, %s113, %s114
      %p118 = pneg %p112
      %p119 = scmp.eq.s32.totalorder %s9, 3
      %p120 = por %p118, %p119
      %p121 = scmp.ne.s32.totalorder %s113, %s116
      %p122 = scmp.eq.s32.totalorder %s9, 0
      %p123 = por %p121, %p122
      %p124 = scmp.ne.s32.totalorder %s113, %s116
      %p125 = scmp.eq.s32.totalorder %s14, 3
      %p126 = por %p124, %p125
      %p127 = scmp.ne.s32.totalorder %s116, %s117
      %p128 = scmp.eq.s32.totalorder %s14, 0
      %p129 = por %p127, %p128
      %p130 = scmp.ne.s32.totalorder %s116, %s117
      %p131 = scmp.eq.s32.totalorder %s15, 3
      %p132 = por %p130, %p131
      %p134 = scmp.ne.s32.totalorder %s117, %s133
      %p135 = scmp.eq.s32.totalorder %s15, 0
      %p136 = por %p134, %p135
      %p137 = scmp.le.s32.totalorder 1, %s9
      %p138 = scmp.lt.s32.totalorder %s9, 5
      %p139 = pnand %p137, %p138
      %p140 = pneg %p139
      // Predicated region
      $region9: #{conv_pass_2d.3} parent=5 // pred_check
        _
      $region10: #{conv_pass_2d.3} parent=5 // pred_check_branch
        %142 = sbr.rel (%p139) target = $region12
      $region11: #{conv_pass_2d.3} parent=5 // pred_region
        %s143 = ssub.s32 %s9, 1
      $region12: #{conv_pass_2d.3} parent=5 // pred_fallthru
        _
      %p144 = scmp.lt.s32.totalorder %s9, 4
      // Predicated region
      $region13: #{conv_pass_2d.3} parent=5 // pred_check
        %p145 = pneg %p144
      $region14: #{conv_pass_2d.3} parent=5 // pred_check_branch
        %147 = sbr.rel (%p145) target = $region16
      $region15: #{conv_pass_2d.3} parent=5 // pred_region
        // Predicated region
        $region17: #{conv_pass_2d.3} parent=15 // pred_check
          %p148 = pneg %p43
        $region18: #{conv_pass_2d.3} parent=15 // pred_check_branch
          %150 = sbr.rel (%p148) target = $region20
        $region19: #{conv_pass_2d.3} parent=15 // pred_region
          %s151 = sand.u32 %s33, 1
          %s152 = sand.u32 %s33, 1
          %s153 = smul.addr %s152, 8
          %s154 = scalar_lea.vmem [#allocation2], %s153
          %s155 = smul.addr %s16, 4
          %s156 = sadd.s32 %s17, %s155
          %s157 = smul.addr %s156, 4
          %s158 = scalar_lea.vmem %s0, %s157
          // Predicated region
          $region21: #{conv_pass_2d.3} parent=19 // pred_check
            _
          $region22: #{conv_pass_2d.3} parent=19 // pred_check_branch
            %160 = sbr.rel (0) target = $region24
          $region23: #{conv_pass_2d.3} parent=19 // pred_region
            // Predicated region
            $region25: #{conv_pass_2d.3} parent=23 // pred_check
              _
            $region26: #{conv_pass_2d.3} parent=23 // pred_check_branch
              %162 = sbr.rel target = $region28
            $region27: #{conv_pass_2d.3} parent=23 // pred_region
              // Predicated region
              $region40: #{conv_pass_2d.3} parent=27 // pred_check
                _
              $region41: #{conv_pass_2d.3} parent=27 // pred_check_branch
                %180 = sbr.rel (0) target = $region43
              $region42: #{conv_pass_2d.3} parent=27 // pred_region
                loop: start=0, step=1, limit=1
                $region44: #{conv_pass_2d.3} parent=42 // loop_pre_header
                  _
                $region45: #{conv_pass_2d.3} parent=42 // loop_header
                  %s182 = sphi 0, %s186
                  %p183 = scmp.ge.s32.totalorder %s182, 1
                  %s187 = sphi %s158, %s158
                  %s188 = sphi %s154, %s154
                $region46: #{conv_pass_2d.3} parent=42 // loop_header_branch
                  %185 = sbr.rel (%p183) target = $region50
                $region47: #{conv_pass_2d.3} parent=42 // loop_body
                  _
                $region48: #{conv_pass_2d.3} parent=42 // loop_footer
                  %s186 = sadd.s32 1, %s182
                $region49: #{conv_pass_2d.3} parent=42 // loop_footer_branch
                  %181 = sbr.rel target = $region45
                $region50: #{conv_pass_2d.3} parent=42 // loop_exit
                  _
                %s190 = ssub.s32 16, 1
                loop: start=0, step=1, limit=1
                $region51: #{conv_pass_2d.3} parent=42 // loop_pre_header
                  _
                $region52: #{conv_pass_2d.3} parent=42 // loop_header
                  %s192 = sphi 0, %s196
                  %p193 = scmp.ge.s32.totalorder %s192, 1
                  %s197 = sphi %s158, %s158
                  %s198 = sphi %s154, %s154
                $region53: #{conv_pass_2d.3} parent=42 // loop_header_branch
                  %195 = sbr.rel (%p193) target = $region57
                $region54: #{conv_pass_2d.3} parent=42 // loop_body
                  %v199 = vld [vmem:[%s197] sm:%s190]
                  %200 = vst [vmem:[%s198] sm:%s190] %v199
                  %v201 = vld [vmem:[%s197 + $0x8] sm:%s190]
                  %202 = vst [vmem:[%s198 + $0x4] sm:%s190] %v201
                $region55: #{conv_pass_2d.3} parent=42 // loop_footer
                  %s196 = sadd.s32 1, %s192
                $region56: #{conv_pass_2d.3} parent=42 // loop_footer_branch
                  %191 = sbr.rel target = $region52
                $region57: #{conv_pass_2d.3} parent=42 // loop_exit
                  _
              $region43: #{conv_pass_2d.3} parent=27 // pred_fallthru
                _
            $region28: #{conv_pass_2d.3} parent=23 // pred_fallthru
              _
            // Predicated region
            $region29: #{conv_pass_2d.3} parent=23 // pred_check
              _
            $region30: #{conv_pass_2d.3} parent=23 // pred_check_branch
              %164 = sbr.rel (0) target = $region32
            $region31: #{conv_pass_2d.3} parent=23 // pred_region
              %s166 = ssub.s32 16, 1
              loop: start=0, step=1, limit=1
              $region33: #{conv_pass_2d.3} parent=31 // loop_pre_header
                _
              $region34: #{conv_pass_2d.3} parent=31 // loop_header
                %s168 = sphi 0, %s172
                %p169 = scmp.ge.s32.totalorder %s168, 1
                %s173 = sphi %s158, %s158
                %s174 = sphi %s154, %s154
              $region35: #{conv_pass_2d.3} parent=31 // loop_header_branch
                %171 = sbr.rel (%p169) target = $region39
              $region36: #{conv_pass_2d.3} parent=31 // loop_body
                %v175 = vld [vmem:[%s173] sm:%s166]
                %176 = vst [vmem:[%s174] sm:%s166] %v175
                %v177 = vld [vmem:[%s173 + $0x8] sm:%s166]
                %178 = vst [vmem:[%s174 + $0x4] sm:%s166] %v177
              $region37: #{conv_pass_2d.3} parent=31 // loop_footer
                %s172 = sadd.s32 1, %s168
              $region38: #{conv_pass_2d.3} parent=31 // loop_footer_branch
                %167 = sbr.rel target = $region34
              $region39: #{conv_pass_2d.3} parent=31 // loop_exit
                _
            $region32: #{conv_pass_2d.3} parent=23 // pred_fallthru
              _
          $region24: #{conv_pass_2d.3} parent=19 // pred_fallthru
            _
          %203 = vnop
        $region20: #{conv_pass_2d.3} parent=15 // pred_fallthru
          _
        // Predicated region
        $region58: #{conv_pass_2d.3} parent=15 // pred_check
          %p204 = pneg %p69
        $region59: #{conv_pass_2d.3} parent=15 // pred_check_branch
          %206 = sbr.rel (%p204) target = $region61
        $region60: #{conv_pass_2d.3} parent=15 // pred_region
          %p207 = scmp.lt.s32.totalorder %s16, 1
          %s208 = scalar_select %p207, %s16, 1
          %s209 = smul.addr %s208, 2
          %s210 = smul.addr %s209, 8
          %s211 = scalar_lea.vmem %s1, %s210
        $region61: #{conv_pass_2d.3} parent=15 // pred_fallthru
          _
        // Predicated region
        $region62: #{conv_pass_2d.3} parent=15 // pred_check
          %p212 = pneg %p95
        $region63: #{conv_pass_2d.3} parent=15 // pred_check_branch
          %214 = sbr.rel (%p212) target = $region65
        $region64: #{conv_pass_2d.3} parent=15 // pred_region
          %p215 = scmp.lt.s32.totalorder %s16, 1
          %s216 = scalar_select %p215, %s16, 1
          %s217 = smul.addr %s216, 2
          %s218 = smul.addr %s217, 8
          %s219 = scalar_lea.vmem %s2, %s218
        $region65: #{conv_pass_2d.3} parent=15 // pred_fallthru
          _
      $region16: #{conv_pass_2d.3} parent=5 // pred_fallthru
        _
      %p220 = scmp.le.s32.totalorder 1, %s9
      %p221 = scmp.lt.s32.totalorder %s9, 5
      %p222 = pnand %p220, %p221
      %p223 = pneg %p222
      // Predicated region
      $region66: #{conv_pass_2d.3} parent=5 // pred_check
        _
      $region67: #{conv_pass_2d.3} parent=5 // pred_check_branch
        %225 = sbr.rel (%p222) target = $region69
      $region68: #{conv_pass_2d.3} parent=5 // pred_region
        %s226 = ssub.s32 %s9, 1
        %s227 = sand.u32 %s36, 1
        %s228 = sand.u32 %s36, 1
        %s229 = smul.addr %s228, 8
        %s230 = scalar_lea.vmem [#allocation2], %s229
        // Predicated region
        $region70: #{conv_pass_2d.3} parent=68 // pred_check
          %p231 = pneg %p49
        $region71: #{conv_pass_2d.3} parent=68 // pred_check_branch
          %233 = sbr.rel (%p231) target = $region73
        $region72: #{conv_pass_2d.3} parent=68 // pred_region
          _
        $region73: #{conv_pass_2d.3} parent=68 // pred_fallthru
          _
        %s234 = sand.u32 %s36, 1
        %s235 = sand.u32 %s36, 1
        %s236 = smul.addr %s235, 8
        %s237 = scalar_lea.vmem [#allocation2], %s236
        %p238 = pneg %p49
        %p239 = pneg %p46
        %p240 = scmp.lt.s32.totalorder %s18, 1
        %s241 = scalar_select %p240, %s18, 1
        %s242 = smul.addr %s241, 2
        %s243 = smul.addr %s242, 8
        %s244 = scalar_lea.vmem %s1, %s243
        %p245 = pneg %p75
        %p246 = pneg %p72
        %p247 = scmp.lt.s32.totalorder %s18, 1
        %s248 = scalar_select %p247, %s18, 1
        %s249 = smul.addr %s248, 2
        %s250 = smul.addr %s249, 8
        %s251 = scalar_lea.vmem %s2, %s250
        %p252 = pneg %p101
        %p253 = pneg %p98
        %p254 = pneg %p129
        %p255 = pneg %p126
        %s256 = sand.u32 %s116, 1
        %s257 = sand.u32 %s116, 1
        %s258 = smul.addr %s257, 16
        %s259 = scalar_lea.vmem [#allocation3], %s258
        %p260 = scmp.lt.s32.totalorder %s18, 1
        %s261 = scalar_select %p260, %s18, 1
        %s262 = smul.addr %s261, 2
        %s263 = smul.addr %s262, 8
        %s264 = scalar_lea.vmem %s1, %s263
        %p265 = scmp.lt.s32.totalorder %s18, 1
        %s266 = scalar_select %p265, %s18, 1
        %s267 = smul.addr %s266, 2
        %s268 = smul.addr %s267, 8
        %s269 = scalar_lea.vmem %s2, %s268
        %v270 = vld [vmem:[%s230] sm:$0xf]
        %v271 = vld [vmem:[%s230 + $0x4] sm:$0xf]
        %v272 = vunpack.c.l.bf16 %v270
        %v273 = vunpack.c.l.bf16 %v271
        %v274 = vld [vmem:[%s264] sm:$0xff]
        %v275 = vld [vmem:[%s264 + $0x8] sm:$0xff]
        %v276 = vmul.f32 %v274, 0.00390625
        %v277 = vmul.f32 %v275, 0.00390625
        %v278 = vld [vmem:[%s269] sm:$0xff]
        %v279 = vld [vmem:[%s269 + $0x8] sm:$0xff]
        %v280 = vmul.f32 %v278, 0.00390625
        %v281 = vmul.f32 %v279, 0.00390625
        %v282 = vmul.f32 %v276, %v276
        %v283 = vmul.f32 %v277, %v277
        %v284 = vsub.f32 %v280, %v282
        %v285 = vsub.f32 %v281, %v283
        %v286 = vmax.f32 %v284, 0.0
        %v287 = vmax.f32 %v285, 0.0
        %289 = vset.pattern.permute.xlu0 0
        %290 = vperm.xlu0 %289, %v276
        %v291 = vpop.permute.xlu0 %290
        %294 = vset.pattern.permute.xlu0 0
        %295 = vperm.xlu0 %294, %v277
        %v296 = vpop.permute.xlu0 %295
        %v298 = vsub.f32 %v272, %v291
        %v299 = vsub.f32 %v273, %v296
        %v300 = vadd.f32 %v286, 1e-05
        %v301 = vadd.f32 %v287, 1e-05
        %v302 = vrsqrt.pop %v300
        %v303 = vrsqrt.pop %v301
        %305 = vset.pattern.permute.xlu0 0
        %306 = vperm.xlu0 %305, %v302
        %v307 = vpop.permute.xlu0 %306
        %310 = vset.pattern.permute.xlu0 0
        %311 = vperm.xlu0 %310, %v303
        %v312 = vpop.permute.xlu0 %311
        %v314 = vmul.f32 %v298, %v307
        %v315 = vmul.f32 %v299, %v312
        %v316 = vmax.f32 %v314, 0.0
        %v317 = vmax.f32 %v315, 0.0
        %318 = vst [vmem:[%s259] sm:$0xff] %v316
        %319 = vst [vmem:[%s259 + $0x8] sm:$0xff] %v317
        %s320 = sand.u32 %s116, 1
        %s321 = sand.u32 %s116, 1
        %s322 = smul.addr %s321, 16
        %s323 = scalar_lea.vmem [#allocation3], %s322
        // Predicated region
        $region74: #{conv_pass_2d.3} parent=68 // pred_check
          %p324 = pneg %p126
        $region75: #{conv_pass_2d.3} parent=68 // pred_check_branch
          %326 = sbr.rel (%p324) target = $region77
        $region76: #{conv_pass_2d.3} parent=68 // pred_region
          %s327 = smul.addr %s18, 4
          %s328 = sadd.s32 %s19, %s327
          %s329 = smul.addr %s328, 8
          %s330 = scalar_lea.vmem %s3, %s329
          // Predicated region
          $region78: #{conv_pass_2d.3} parent=76 // pred_check
            _
          $region79: #{conv_pass_2d.3} parent=76 // pred_check_branch
            %332 = sbr.rel (0) target = $region81
          $region80: #{conv_pass_2d.3} parent=76 // pred_region
            // Predicated region
            $region82: #{conv_pass_2d.3} parent=80 // pred_check
              _
            $region83: #{conv_pass_2d.3} parent=80 // pred_check_branch
              %334 = sbr.rel (0) target = $region85
            $region84: #{conv_pass_2d.3} parent=80 // pred_region
              // Predicated region
              $region97: #{conv_pass_2d.3} parent=84 // pred_check
                _
              $region98: #{conv_pass_2d.3} parent=84 // pred_check_branch
                %352 = sbr.rel (0) target = $region100
              $region99: #{conv_pass_2d.3} parent=84 // pred_region
                loop: start=0, step=1, limit=1
                $region101: #{conv_pass_2d.3} parent=99 // loop_pre_header
                  _
                $region102: #{conv_pass_2d.3} parent=99 // loop_header
                  %s354 = sphi 0, %s358
                  %p355 = scmp.ge.s32.totalorder %s354, 1
                  %s359 = sphi %s323, %s323
                  %s360 = sphi %s330, %s330
                $region103: #{conv_pass_2d.3} parent=99 // loop_header_branch
                  %357 = sbr.rel (%p355) target = $region107
                $region104: #{conv_pass_2d.3} parent=99 // loop_body
                  %v361 = vld [vmem:[%s359] sm:$0xff]
                  %362 = vst [vmem:[%s360] sm:$0xff] %v361
                  %v363 = vld [vmem:[%s359 + $0x8] sm:$0xff]
                  %364 = vst [vmem:[%s360 + $0x10] sm:$0xff] %v363
                $region105: #{conv_pass_2d.3} parent=99 // loop_footer
                  %s358 = sadd.s32 1, %s354
                $region106: #{conv_pass_2d.3} parent=99 // loop_footer_branch
                  %353 = sbr.rel target = $region102
                $region107: #{conv_pass_2d.3} parent=99 // loop_exit
                  _
              $region100: #{conv_pass_2d.3} parent=84 // pred_fallthru
                _
              // Predicated region
              $region108: #{conv_pass_2d.3} parent=84 // pred_check
                _
              $region109: #{conv_pass_2d.3} parent=84 // pred_check_branch
                %366 = sbr.rel target = $region111
              $region110: #{conv_pass_2d.3} parent=84 // pred_region
                _
              $region111: #{conv_pass_2d.3} parent=84 // pred_fallthru
                _
            $region85: #{conv_pass_2d.3} parent=80 // pred_fallthru
              _
            // Predicated region
            $region86: #{conv_pass_2d.3} parent=80 // pred_check
              _
            $region87: #{conv_pass_2d.3} parent=80 // pred_check_branch
              %336 = sbr.rel target = $region89
            $region88: #{conv_pass_2d.3} parent=80 // pred_region
              %s338 = ssub.s32 256, 1
              loop: start=0, step=1, limit=1
              $region90: #{conv_pass_2d.3} parent=88 // loop_pre_header
                _
              $region91: #{conv_pass_2d.3} parent=88 // loop_header
                %s340 = sphi 0, %s344
                %p341 = scmp.ge.s32.totalorder %s340, 1
                %s345 = sphi %s323, %s323
                %s346 = sphi %s330, %s330
              $region92: #{conv_pass_2d.3} parent=88 // loop_header_branch
                %343 = sbr.rel (%p341) target = $region96
              $region93: #{conv_pass_2d.3} parent=88 // loop_body
                %v347 = vld [vmem:[%s345] sm:%s338]
                %348 = vst [vmem:[%s346] sm:%s338] %v347
                %v349 = vld [vmem:[%s345 + $0x8] sm:%s338]
                %350 = vst [vmem:[%s346 + $0x10] sm:%s338] %v349
              $region94: #{conv_pass_2d.3} parent=88 // loop_footer
                %s344 = sadd.s32 1, %s340
              $region95: #{conv_pass_2d.3} parent=88 // loop_footer_branch
                %339 = sbr.rel target = $region91
              $region96: #{conv_pass_2d.3} parent=88 // loop_exit
                _
            $region89: #{conv_pass_2d.3} parent=80 // pred_fallthru
              _
          $region81: #{conv_pass_2d.3} parent=76 // pred_fallthru
            _
          %367 = vnop
        $region77: #{conv_pass_2d.3} parent=68 // pred_fallthru
          _
      $region69: #{conv_pass_2d.3} parent=5 // pred_fallthru
        _
      %p368 = scmp.le.s32.totalorder 2, %s9
      // Predicated region
      $region112: #{conv_pass_2d.3} parent=5 // pred_check
        %p369 = pneg %p368
      $region113: #{conv_pass_2d.3} parent=5 // pred_check_branch
        %371 = sbr.rel (%p369) target = $region115
      $region114: #{conv_pass_2d.3} parent=5 // pred_region
        %s372 = ssub.s32 %s9, 2
        // Predicated region
        $region116: #{conv_pass_2d.3} parent=114 // pred_check
          %p373 = pneg %p132
        $region117: #{conv_pass_2d.3} parent=114 // pred_check_branch
          %375 = sbr.rel (%p373) target = $region119
        $region118: #{conv_pass_2d.3} parent=114 // pred_region
          %s376 = sand.u32 %s117, 1
          %s377 = sand.u32 %s117, 1
          %s378 = smul.addr %s377, 16
          %s379 = scalar_lea.vmem [#allocation3], %s378
        $region119: #{conv_pass_2d.3} parent=114 // pred_fallthru
          _
      $region115: #{conv_pass_2d.3} parent=5 // pred_fallthru
        _
    $region6: #{conv_pass_2d.3} parent=1 // loop_footer
      %s13 = sadd.s32 1, %s9
    $region7: #{conv_pass_2d.3} parent=1 // loop_footer_branch
      %8 = sbr.rel target = $region3
    $region8: #{conv_pass_2d.3} parent=1 // loop_exit
      _

// kernel: conv_pass_2d.2
$region0: #{conv_pass_2d.2}
  #allocation0 [shape = 'u32[]', space=smem, size = 0x4, offset = 0x4, fixed_abs, tag = 'smem constant byte address 0x4 - core index']
  #allocation1 [shape = 'u32[144,128]{1,0:T(1,128)}', space=vmem, size = 0x12000, scoped, tag = 'internal scratch']
  #allocation2 [shape = 'f32[128,16]{1,0:T(8,128)}', space=vmem, size = 0x10000, scoped, tag = 'scratch operand']
  %s0 = inlined_call_operand.vmem [shape: bf16[2,2,10,18,12], index: 0, kind: input, shape index: {}]
  %s1 = inlined_call_operand.vmem [shape: bf16[9,12,16], index: 1, kind: input, shape index: {}]
  %s2 = inlined_call_operand.vmem [shape: bf16[2,16,256], index: 2, kind: output, shape index: {0}]
  %s3 = inlined_call_operand.vmem [shape: f32[2,16,1], index: 3, kind: output, shape index: {1}]
  %s4 = inlined_call_operand.vmem [shape: f32[2,16,1], index: 4, kind: output, shape index: {2}]
  %5 = xla_tuple %s2, %s3, %s4
  %s6 = sld [smem:[#allocation0]]
  $region98: #{conv_pass_2d.2} parent=0
    _
  %s8 = ssub.s32 1, %s6
  %s9 = scalar_select 0, %s8, %s6
  $region1: #{conv_pass_2d.2} parent=0
    #allocation3 [shape = 'u8[8192]{0}', space=vmem, size = 0x2000, scoped, tag = 'output window, operand 0']
    loop: start=0, step=1, limit=6
    $region2: #{conv_pass_2d.2} parent=1 // loop_pre_header
      _
    $region3: #{conv_pass_2d.2} parent=1 // loop_header
      %s11 = sphi 0, %s15
      %p12 = scmp.ge.s32.totalorder %s11, 6
      %s18 = sphi 0, %s30
      %s19 = sphi 0, %s26
      %s20 = sphi 0, %s18
      %s21 = sphi 0, %s19
      %s22 = sphi 0, %s20
      %s23 = sphi 0, %s21
      %s35 = sphi 0, %s37
      %s38 = sphi 0, %s35
      %s39 = sphi 0, %s38
      %s55 = sphi 0, %s39
      %s59 = sphi 0, %s59
      %s61 = sphi 0, %s59
      %s62 = sphi 0, %s61
      %s76 = sphi 0, %s62
      %s84 = sphi 0, %s86
      %s87 = sphi 0, %s84
      %s88 = sphi 0, %s87
      %s104 = sphi 0, %s88
      %s110 = sphi 0, %s112
      %s113 = sphi 0, %s110
      %s114 = sphi 0, %s113
      %s130 = sphi 0, %s114
      %s136 = sphi 0, %s138
      %s139 = sphi 0, %s136
      %s140 = sphi 0, %s139
      %s156 = sphi 0, %s140
    $region4: #{conv_pass_2d.2} parent=1 // loop_header_branch
      %14 = sbr.rel (%p12) target = $region8
    $region5: #{conv_pass_2d.2} parent=1 // loop_body
      %s16 = ssub.s32 %s11, 1
      %s17 = ssub.s32 %s11, 2
      %s24 = sadd.s32 1, %s19
      %p25 = scmp.ge.s32.totalorder %s24, 2
      %s26 = scalar_select %p25, 0, %s24
      %s27 = sadd.s32 1, %s18
      %s28 = scalar_select %p25, %s27, %s18
      %p29 = scmp.ge.s32.totalorder %s28, 2
      %s30 = scalar_select %p29, 0, %s28
      %s31 = ssub.s32 %s18, %s30
      %s32 = ssub.s32 %s19, %s26
      %s33 = sor.u32 %s31, %s32
      %p34 = scmp.eq.s32.totalorder %s33, 0
      %s36 = sadd.s32 %s35, 1
      %s37 = scalar_select %p34, %s35, %s36
      %p40 = pneg %p34
      %p41 = scmp.eq.s32.totalorder %s11, 3
      %p42 = por %p40, %p41
      %p43 = scmp.ne.s32.totalorder %s35, %s38
      %p44 = scmp.eq.s32.totalorder %s11, 0
      %p45 = por %p43, %p44
      %p46 = scmp.ne.s32.totalorder %s35, %s38
      %p47 = scmp.eq.s32.totalorder %s16, 3
      %p48 = por %p46, %p47
      %p49 = scmp.ne.s32.totalorder %s38, %s39
      %p50 = scmp.eq.s32.totalorder %s16, 0
      %p51 = por %p49, %p50
      %p52 = scmp.ne.s32.totalorder %s38, %s39
      %p53 = scmp.eq.s32.totalorder %s17, 3
      %p54 = por %p52, %p53
      %p56 = scmp.ne.s32.totalorder %s39, %s55
      %p57 = scmp.eq.s32.totalorder %s17, 0
      %p58 = por %p56, %p57
      %s60 = sadd.s32 %s59, 1
      %p63 = scmp.eq.s32.totalorder %s11, 3
      %p64 = scmp.ne.s32.totalorder %s59, %s61
      %p65 = scmp.eq.s32.totalorder %s11, 0
      %p66 = por %p64, %p65
      %p67 = scmp.ne.s32.totalorder %s59, %s61
      %p68 = scmp.eq.s32.totalorder %s16, 3
      %p69 = por %p67, %p68
      %p70 = scmp.ne.s32.totalorder %s61, %s62
      %p71 = scmp.eq.s32.totalorder %s16, 0
      %p72 = por %p70, %p71
      %p73 = scmp.ne.s32.totalorder %s61, %s62
      %p74 = scmp.eq.s32.totalorder %s17, 3
      %p75 = por %p73, %p74
      %p77 = scmp.ne.s32.totalorder %s62, %s76
      %p78 = scmp.eq.s32.totalorder %s17, 0
      %p79 = por %p77, %p78
      %s80 = ssub.s32 %s18, %s30
      %s81 = ssub.s32 %s19, %s26
      %s82 = sor.u32 %s80, %s81
      %p83 = scmp.eq.s32.totalorder %s82, 0
      %s85 = sadd.s32 %s84, 1
      %s86 = scalar_select %p83, %s84, %s85
      %p89 = pneg %p83
      %p90 = scmp.eq.s32.totalorder %s11, 3
      %p91 = por %p89, %p90
      %p92 = scmp.ne.s32.totalorder %s84, %s87
      %p93 = scmp.eq.s32.totalorder %s11, 0
      %p94 = por %p92, %p93
      %p95 = scmp.ne.s32.totalorder %s84, %s87
      %p96 = scmp.eq.s32.totalorder %s16, 3
      %p97 = por %p95, %p96
      %p98 = scmp.ne.s32.totalorder %s87, %s88
      %p99 = scmp.eq.s32.totalorder %s16, 0
      %p100 = por %p98, %p99
      %p101 = scmp.ne.s32.totalorder %s87, %s88
      %p102 = scmp.eq.s32.totalorder %s17, 3
      %p103 = por %p101, %p102
      %p105 = scmp.ne.s32.totalorder %s88, %s104
      %p106 = scmp.eq.s32.totalorder %s17, 0
      %p107 = por %p105, %p106
      %s108 = ssub.s32 %s18, %s30
      %p109 = scmp.eq.s32.totalorder %s108, 0
      %s111 = sadd.s32 %s110, 1
      %s112 = scalar_select %p109, %s110, %s111
      %p115 = pneg %p109
      %p116 = scmp.eq.s32.totalorder %s11, 3
      %p117 = por %p115, %p116
      %p118 = scmp.ne.s32.totalorder %s110, %s113
      %p119 = scmp.eq.s32.totalorder %s11, 0
      %p120 = por %p118, %p119
      %p121 = scmp.ne.s32.totalorder %s110, %s113
      %p122 = scmp.eq.s32.totalorder %s16, 3
      %p123 = por %p121, %p122
      %p124 = scmp.ne.s32.totalorder %s113, %s114
      %p125 = scmp.eq.s32.totalorder %s16, 0
      %p126 = por %p124, %p125
      %p127 = scmp.ne.s32.totalorder %s113, %s114
      %p128 = scmp.eq.s32.totalorder %s17, 3
      %p129 = por %p127, %p128
      %p131 = scmp.ne.s32.totalorder %s114, %s130
      %p132 = scmp.eq.s32.totalorder %s17, 0
      %p133 = por %p131, %p132
      %s134 = ssub.s32 %s18, %s30
      %p135 = scmp.eq.s32.totalorder %s134, 0
      %s137 = sadd.s32 %s136, 1
      %s138 = scalar_select %p135, %s136, %s137
      %p141 = pneg %p135
      %p142 = scmp.eq.s32.totalorder %s11, 3
      %p143 = por %p141, %p142
      %p144 = scmp.ne.s32.totalorder %s136, %s139
      %p145 = scmp.eq.s32.totalorder %s11, 0
      %p146 = por %p144, %p145
      %p147 = scmp.ne.s32.totalorder %s136, %s139
      %p148 = scmp.eq.s32.totalorder %s16, 3
      %p149 = por %p147, %p148
      %p150 = scmp.ne.s32.totalorder %s139, %s140
      %p151 = scmp.eq.s32.totalorder %s16, 0
      %p152 = por %p150, %p151
      %p153 = scmp.ne.s32.totalorder %s139, %s140
      %p154 = scmp.eq.s32.totalorder %s17, 3
      %p155 = por %p153, %p154
      %p157 = scmp.ne.s32.totalorder %s140, %s156
      %p158 = scmp.eq.s32.totalorder %s17, 0
      %p159 = por %p157, %p158
      %p160 = scmp.le.s32.totalorder 1, %s11
      %p161 = scmp.lt.s32.totalorder %s11, 5
      %p162 = pnand %p160, %p161
      %p163 = pneg %p162
      // Predicated region
      $region9: #{conv_pass_2d.2} parent=5 // pred_check
        _
      $region10: #{conv_pass_2d.2} parent=5 // pred_check_branch
        %165 = sbr.rel (%p162) target = $region12
      $region11: #{conv_pass_2d.2} parent=5 // pred_region
        %s166 = ssub.s32 %s11, 1
        // Predicated region
        $region13: #{conv_pass_2d.2} parent=11 // pred_check
          %p167 = pneg %p72
        $region14: #{conv_pass_2d.2} parent=11 // pred_check_branch
          %169 = sbr.rel (%p167) target = $region16
        $region15: #{conv_pass_2d.2} parent=11 // pred_region
          _
        $region16: #{conv_pass_2d.2} parent=11 // pred_fallthru
          _
      $region12: #{conv_pass_2d.2} parent=5 // pred_fallthru
        _
      %p170 = scmp.lt.s32.totalorder %s11, 4
      // Predicated region
      $region17: #{conv_pass_2d.2} parent=5 // pred_check
        %p171 = pneg %p170
      $region18: #{conv_pass_2d.2} parent=5 // pred_check_branch
        %173 = sbr.rel (%p171) target = $region20
      $region19: #{conv_pass_2d.2} parent=5 // pred_region
        // Predicated region
        $region21: #{conv_pass_2d.2} parent=19 // pred_check
          %p174 = pneg %p45
        $region22: #{conv_pass_2d.2} parent=19 // pred_check_branch
          %176 = sbr.rel (%p174) target = $region24
        $region23: #{conv_pass_2d.2} parent=19 // pred_region
          %p177 = scmp.lt.s32.totalorder %s18, 1
          %s178 = scalar_select %p177, %s18, 1
          %p179 = scmp.lt.s32.totalorder %s19, 1
          %s180 = scalar_select %p179, %s19, 1
          %s181 = smul.addr %s180, 30
          %s182 = smul.addr %s178, 60
          %s183 = sadd.s32 %s181, %s182
          %s184 = smul.addr %s183, 4
          %s185 = scalar_lea.vmem %s0, %s184
        $region24: #{conv_pass_2d.2} parent=19 // pred_fallthru
          _
      $region20: #{conv_pass_2d.2} parent=5 // pred_fallthru
        _
      %p186 = scmp.le.s32.totalorder 1, %s11
      %p187 = scmp.lt.s32.totalorder %s11, 5
      %p188 = pnand %p186, %p187
      %p189 = pneg %p188
      // Predicated region
      $region25: #{conv_pass_2d.2} parent=5 // pred_check
        _
      $region26: #{conv_pass_2d.2} parent=5 // pred_check_branch
        %191 = sbr.rel (%p188) target = $region28
      $region27: #{conv_pass_2d.2} parent=5 // pred_region
        %s192 = ssub.s32 %s11, 1
        %p193 = scmp.lt.s32.totalorder %s20, 1
        %s194 = scalar_select %p193, %s20, 1
        %p195 = scmp.lt.s32.totalorder %s21, 1
        %s196 = scalar_select %p195, %s21, 1
        %s197 = smul.addr %s196, 30
        %s198 = smul.addr %s194, 60
        %s199 = sadd.s32 %s197, %s198
        %s200 = smul.addr %s199, 4
        %s201 = scalar_lea.vmem %s0, %s200
        %p202 = pneg %p51
        %p203 = pneg %p48
        %p204 = pneg %p72
        %p205 = pneg %p69
        %p206 = pneg %p100
        %p207 = pneg %p97
        %s208 = sand.u32 %s87, 1
        %s209 = sand.u32 %s87, 1
        %s210 = smul.addr %s209, 8
        %s211 = scalar_lea.vmem [#allocation3], %s210
        %p212 = pneg %p126
        %p213 = pneg %p123
        %p214 = scmp.lt.s32.totalorder %s20, 1
        %s215 = scalar_select %p214, %s20, 1
        %s216 = smul.addr %s215, 2
        %s217 = smul.addr %s216, 8
        %s218 = scalar_lea.vmem %s3, %s217
        %p219 = pneg %p152
        %p220 = pneg %p149
        %p221 = scmp.lt.s32.totalorder %s20, 1
        %s222 = scalar_select %p221, %s20, 1
        %s223 = smul.addr %s222, 2
        %s224 = smul.addr %s223, 8
        %s225 = scalar_lea.vmem %s4, %s224
        %p226 = scmp.lt.s32.totalorder %s20, 1
        %s227 = scalar_select %p226, %s20, 1
        %p228 = scmp.lt.s32.totalorder %s21, 1
        %s229 = scalar_select %p228, %s21, 1
        %s230 = smul.addr %s229, 30
        %s231 = smul.addr %s227, 60
        %s232 = sadd.s32 %s230, %s231
        %s233 = smul.addr %s232, 4
        %s234 = scalar_lea.vmem %s0, %s233
        %p235 = scmp.lt.s32.totalorder %s20, 1
        %s236 = scalar_select %p235, %s20, 1
        %s237 = smul.addr %s236, 2
        %s238 = smul.addr %s237, 8
        %s239 = scalar_lea.vmem %s3, %s238
        %p240 = scmp.lt.s32.totalorder %s20, 1
        %s241 = scalar_select %p240, %s20, 1
        %s242 = smul.addr %s241, 2
        %s243 = smul.addr %s242, 8
        %s244 = scalar_lea.vmem %s4, %s243
        %vm246 = vcmask 130048
        %247 = vst.msk [vmem:[#allocation2] sm:$0xff] %vm246, 0.0
        %248 = vst.msk [vmem:[#allocation2 + $0x8] sm:$0xff] %vm246, 0.0
        %249 = vst.msk [vmem:[#allocation2 + $0x10] sm:$0xff] %vm246, 0.0
        %250 = vst.msk [vmem:[#allocation2 + $0x18] sm:$0xff] %vm246, 0.0
        %251 = vst.msk [vmem:[#allocation2 + $0x20] sm:$0xff] %vm246, 0.0
        %252 = vst.msk [vmem:[#allocation2 + $0x28] sm:$0xff] %vm246, 0.0
        %253 = vst.msk [vmem:[#allocation2 + $0x30] sm:$0xff] %vm246, 0.0
        %254 = vst.msk [vmem:[#allocation2 + $0x38] sm:$0xff] %vm246, 0.0
        %255 = vst.msk [vmem:[#allocation2 + $0x40] sm:$0xff] %vm246, 0.0
        %256 = vst.msk [vmem:[#allocation2 + $0x48] sm:$0xff] %vm246, 0.0
        %257 = vst.msk [vmem:[#allocation2 + $0x50] sm:$0xff] %vm246, 0.0
        %258 = vst.msk [vmem:[#allocation2 + $0x58] sm:$0xff] %vm246, 0.0
        %259 = vst.msk [vmem:[#allocation2 + $0x60] sm:$0xff] %vm246, 0.0
        %260 = vst.msk [vmem:[#allocation2 + $0x68] sm:$0xff] %vm246, 0.0
        %261 = vst.msk [vmem:[#allocation2 + $0x70] sm:$0xff] %vm246, 0.0
        %262 = vst.msk [vmem:[#allocation2 + $0x78] sm:$0xff] %vm246, 0.0
        %v263 = vld [vmem:[%s234] sm:$0xf]
        %v264 = vld [vmem:[%s234 + $0x4] sm:$0xf]
        %v265 = vld [vmem:[%s234 + $0x8] sm:$0x1]
        %v266 = vld [vmem:[%s234 + $0xc] sm:$0xf]
        %v267 = vld [vmem:[%s234 + $0x10] sm:$0xf]
        %v268 = vld [vmem:[%s234 + $0x14] sm:$0x1]
        %v269 = vld [vmem:[%s234 + $0x18] sm:$0xf]
        %v270 = vld [vmem:[%s234 + $0x1c] sm:$0xf]
        %v271 = vld [vmem:[%s234 + $0x20] sm:$0x1]
        %v272 = vld [vmem:[%s234 + $0x24] sm:$0xf]
        %v273 = vld [vmem:[%s234 + $0x28] sm:$0xf]
        %v274 = vld [vmem:[%s234 + $0x2c] sm:$0x1]
        %v275 = vld [vmem:[%s234 + $0x30] sm:$0xf]
        %v276 = vld [vmem:[%s234 + $0x34] sm:$0xf]
        %v277 = vld [vmem:[%s234 + $0x38] sm:$0x1]
        %v278 = vld [vmem:[%s234 + $0x3c] sm:$0xf]
        %v279 = vld [vmem:[%s234 + $0x40] sm:$0xf]
        %v280 = vld [vmem:[%s234 + $0x44] sm:$0x1]
        %v281 = vld [vmem:[%s234 + $0x48] sm:$0xf]
        %v282 = vld [vmem:[%s234 + $0x4c] sm:$0xf]
        %v283 = vld [vmem:[%s234 + $0x50] sm:$0x1]
        %v284 = vld [vmem:[%s234 + $0x54] sm:$0xf]
        %v285 = vld [vmem:[%s234 + $0x58] sm:$0xf]
        %v286 = vld [vmem:[%s234 + $0x5c] sm:$0x1]
        %v287 = vld [vmem:[%s234 + $0x60] sm:$0xf]
        %v288 = vld [vmem:[%s234 + $0x64] sm:$0xf]
        %v289 = vld [vmem:[%s234 + $0x68] sm:$0x1]
        %v290 = vld [vmem:[%s234 + $0x6c] sm:$0xf]
        %v291 = vld [vmem:[%s234 + $0x70] sm:$0xf]
        %v292 = vld [vmem:[%s234 + $0x74] sm:$0x1]
        %v293 = vld [vmem:[#allocation2] sm:$0xff]
        %v294 = vld [vmem:[#allocation2 + $0x8] sm:$0xff]
        %v295 = vld [vmem:[#allocation2 + $0x10] sm:$0xff]
        %v296 = vld [vmem:[#allocation2 + $0x18] sm:$0xff]
        %v297 = vld [vmem:[#allocation2 + $0x20] sm:$0xff]
        %v298 = vld [vmem:[#allocation2 + $0x28] sm:$0xff]
        %v299 = vld [vmem:[#allocation2 + $0x30] sm:$0xff]
        %v300 = vld [vmem:[#allocation2 + $0x38] sm:$0xff]
        %v301 = vld [vmem:[#allocation2 + $0x40] sm:$0xff]
        %v302 = vld [vmem:[#allocation2 + $0x48] sm:$0xff]
        %v303 = vld [vmem:[#allocation2 + $0x50] sm:$0xff]
        %v304 = vld [vmem:[#allocation2 + $0x58] sm:$0xff]
        %v305 = vld [vmem:[#allocation2 + $0x60] sm:$0xff]
        %v306 = vld [vmem:[#allocation2 + $0x68] sm:$0xff]
        %v307 = vld [vmem:[#allocation2 + $0x70] sm:$0xff]
        %v308 = vld [vmem:[#allocation2 + $0x78] sm:$0xff]
        %v309 = vld [vmem:[%s1] sm:$0xf]
        %v310 = vld [vmem:[%s1 + $0x4] sm:$0x3]
        %v327 = vunpack.c.l.b16 %v263
        %v328 = vunpack.c.l.b16 %v264
        %v329 = vunpack.c.l.b16 %v266
        %v330 = vunpack.c.l.b16 %v267
        %v331 = vunpack.c.l.b16 %v269
        %v332 = vunpack.c.l.b16 %v270
        %v333 = vunpack.c.l.b16 %v272
        %v334 = vunpack.c.l.b16 %v273
        %v335 = vunpack.c.l.b16 %v275
        %v336 = vunpack.c.l.b16 %v276
        %v337 = vunpack.c.l.b16 %v278
        %v338 = vunpack.c.l.b16 %v279
        %v339 = vunpack.c.l.b16 %v281
        %v340 = vunpack.c.l.b16 %v282
        %v341 = vunpack.c.l.b16 %v284
        %v342 = vunpack.c.l.b16 %v285
        %v343 = vpack.c.b16 %v328, %v327
        %v344 = vpack.c.b16 %v330, %v329
        %v345 = vpack.c.b16 %v332, %v331
        %v346 = vpack.c.b16 %v334, %v333
        %v347 = vpack.c.b16 %v336, %v335
        %v348 = vpack.c.b16 %v338, %v337
        %v349 = vpack.c.b16 %v340, %v339
        %v350 = vpack.c.b16 %v342, %v341
        %v353 = vunpack.c.l.b16 %v309
        %v354 = vunpack.c.l.b16 %v310
        %v355 = vpack.c.b16 %v354, %v353
        %vm356 = vcmask 97280
        %v358 = vsel %vm356, %v343, 0
        %v361 = vsel %vm356, %v344, 0
        %v364 = vsel %vm356, %v345, 0
        %v367 = vsel %vm356, %v346, 0
        %v370 = vsel %vm356, %v347, 0
        %v373 = vsel %vm356, %v348, 0
        %v376 = vsel %vm356, %v349, 0
        %v379 = vsel %vm356, %v350, 0
        %vm381 = vcmask 1045504
        %v383 = vsel %vm381, %v355, 0
        %385 = vmatprep.subr.bf16.mxu0 0
        %386 = vmatpush1.bf16.msra.mxu0 0
        %387 = vmatprep.subr.bf16.mxu0 0
        %388 = vmatpush1.bf16.msra.mxu0 0
        %389 = vmatprep.subr.bf16.mxu0 0
        %390 = vmatpush1.bf16.msra.mxu0 0
        %391 = vmatprep.subr.bf16.mxu0 0
        %392 = vmatpush1.bf16.msra.mxu0 0
        %393 = vmatprep.subr.bf16.mxu0 0
        %394 = vmatpush1.bf16.msra.mxu0 0
        %395 = vmatprep.subr.bf16.mxu0 0
        %396 = vmatpush1.bf16.msra.mxu0 0
        %397 = vmatprep.subr.bf16.mxu0 0
        %398 = vmatpush1.bf16.msra.mxu0 0
        %399 = vmatprep.subr.bf16.mxu0 0
        %400 = vmatpush1.bf16.msra.mxu0 %v383
        %401 = vmatprep.subr.bf16.mxu0 0
        %402 = vmatpush2.bf16.msra.mxu0 0
        %403 = vmatprep.subr.bf16.mxu0 0
        %404 = vmatpush2.bf16.msra.mxu0 0
        %405 = vmatprep.subr.bf16.mxu0 0
        %406 = vmatpush2.bf16.msra.mxu0 0
        %407 = vmatprep.subr.bf16.mxu0 0
        %408 = vmatpush2.bf16.msra.mxu0 0
        %409 = vmatprep.subr.bf16.mxu0 0
        %410 = vmatpush2.bf16.msra.mxu0 0
        %411 = vmatprep.subr.bf16.mxu0 0
        %412 = vmatpush2.bf16.msra.mxu0 0
        %413 = vmatprep.subr.bf16.mxu0 0
        %414 = vmatpush2.bf16.msra.mxu0 0
        %415 = vmatprep.subr.bf16.mxu0 0
        %416 = vmatpush2.bf16.msra.mxu0 0
        %417 = vmatprep.mubr.bf16.mxu0 0
        %418 = vmatmul.mubr.bf16.gmra.mxu0 %v358
        %v419 = vpop.f32.mrf.mxu0
        %v420 = vadd.f32 0.0, %v419
        %v421 = vpop.f32.mrf.mxu0
        %v422 = vpop.f32.mrf.mxu0
        %v423 = vadd.f32 0.0, %v422
        %v424 = vpop.f32.mrf.mxu0
        %425 = vmatprep.mubr.bf16.mxu0 0
        %426 = vmatmul.mubr.bf16.gmra.mxu0 %v361
        %v427 = vpop.f32.mrf.mxu0
        %v428 = vadd.f32 0.0, %v427
        %v429 = vpop.f32.mrf.mxu0
        %v430 = vpop.f32.mrf.mxu0
        %v431 = vadd.f32 0.0, %v430
        %v432 = vpop.f32.mrf.mxu0
        %433 = vmatprep.mubr.bf16.mxu0 0
        %434 = vmatmul.mubr.bf16.gmra.mxu0 %v364
        %v435 = vpop.f32.mrf.mxu0
        %v436 = vadd.f32 0.0, %v435
        %v437 = vpop.f32.mrf.mxu0
        %v438 = vpop.f32.mrf.mxu0
        %v439 = vadd.f32 0.0, %v438
        %v440 = vpop.f32.mrf.mxu0
        %441 = vmatprep.mubr.bf16.mxu0 0
        %442 = vmatmul.mubr.bf16.gmra.mxu0 %v367
        %v443 = vpop.f32.mrf.mxu0
        %v444 = vadd.f32 0.0, %v443
        %v445 = vpop.f32.mrf.mxu0
        %v446 = vpop.f32.mrf.mxu0
        %v447 = vadd.f32 0.0, %v446
        %v448 = vpop.f32.mrf.mxu0
        %449 = vmatprep.mubr.bf16.mxu0 0
        %450 = vmatmul.mubr.bf16.gmra.mxu0 %v370
        %v451 = vpop.f32.mrf.mxu0
        %v452 = vadd.f32 0.0, %v451
        %v453 = vpop.f32.mrf.mxu0
        %v454 = vpop.f32.mrf.mxu0
        %v455 = vadd.f32 0.0, %v454
        %v456 = vpop.f32.mrf.mxu0
        %457 = vmatprep.mubr.bf16.mxu0 0
        %458 = vmatmul.mubr.bf16.gmra.mxu0 %v373
        %v459 = vpop.f32.mrf.mxu0
        %v460 = vadd.f32 0.0, %v459
        %v461 = vpop.f32.mrf.mxu0
        %v462 = vpop.f32.mrf.mxu0
        %v463 = vadd.f32 0.0, %v462
        %v464 = vpop.f32.mrf.mxu0
        %465 = vmatprep.mubr.bf16.mxu0 0
        %466 = vmatmul.mubr.bf16.gmra.mxu0 %v376
        %v467 = vpop.f32.mrf.mxu0
        %v468 = vadd.f32 0.0, %v467
        %v469 = vpop.f32.mrf.mxu0
        %v470 = vpop.f32.mrf.mxu0
        %v471 = vadd.f32 0.0, %v470
        %v472 = vpop.f32.mrf.mxu0
        %473 = vmatprep.mubr.bf16.mxu0 0
        %474 = vmatmul.mubr.bf16.gmra.mxu0 %v379
        %v475 = vpop.f32.mrf.mxu0
        %v476 = vadd.f32 0.0, %v475
        %v477 = vpop.f32.mrf.mxu0
        %v478 = vpop.f32.mrf.mxu0
        %v479 = vadd.f32 0.0, %v478
        %v480 = vpop.f32.mrf.mxu0
        %481 = vdwg.mxu0
        %v482 = vadd.f32 %v293, %v420
        %v483 = vadd.f32 %v294, %v423
        %v484 = vadd.f32 %v295, %v428
        %v485 = vadd.f32 %v296, %v431
        %v486 = vadd.f32 %v297, %v436
        %v487 = vadd.f32 %v298, %v439
        %v488 = vadd.f32 %v299, %v444
        %v489 = vadd.f32 %v300, %v447
        %v490 = vadd.f32 %v301, %v452
        %v491 = vadd.f32 %v302, %v455
        %v492 = vadd.f32 %v303, %v460
        %v493 = vadd.f32 %v304, %v463
        %v494 = vadd.f32 %v305, %v468
        %v495 = vadd.f32 %v306, %v471
        %v496 = vadd.f32 %v307, %v476
        %v497 = vadd.f32 %v308, %v479
        %498 = vst.msk [vmem:[#allocation2] sm:$0xff] %vm246, %v482
        %499 = vst.msk [vmem:[#allocation2 + $0x8] sm:$0xff] %vm246, %v483
        %500 = vst.msk [vmem:[#allocation2 + $0x10] sm:$0xff] %vm246, %v484
        %501 = vst.msk [vmem:[#allocation2 + $0x18] sm:$0xff] %vm246, %v485
        %502 = vst.msk [vmem:[#allocation2 + $0x20] sm:$0xff] %vm246, %v486
        %503 = vst.msk [vmem:[#allocation2 + $0x28] sm:$0xff] %vm246, %v487
        %504 = vst.msk [vmem:[#allocation2 + $0x30] sm:$0xff] %vm246, %v488
        %505 = vst.msk [vmem:[#allocation2 + $0x38] sm:$0xff] %vm246, %v489
        %506 = vst.msk [vmem:[#allocation2 + $0x40] sm:$0xff] %vm246, %v490
        %507 = vst.msk [vmem:[#allocation2 + $0x48] sm:$0xff] %vm246, %v491
        %508 = vst.msk [vmem:[#allocation2 + $0x50] sm:$0xff] %vm246, %v492
        %509 = vst.msk [vmem:[#allocation2 + $0x58] sm:$0xff] %vm246, %v493
        %510 = vst.msk [vmem:[#allocation2 + $0x60] sm:$0xff] %vm246, %v494
        %511 = vst.msk [vmem:[#allocation2 + $0x68] sm:$0xff] %vm246, %v495
        %512 = vst.msk [vmem:[#allocation2 + $0x70] sm:$0xff] %vm246, %v496
        %513 = vst.msk [vmem:[#allocation2 + $0x78] sm:$0xff] %vm246, %v497
        %vm514 = vsmask.f32 3328
        %vm515 = vsmask.f32 7440
        %vm516 = vmor %vm514, %vm515
        %v518 = vshrl.u32 %v263, 16
        %v520 = vrot.slane %v518, 4
        %v521 = vshll.u32 %v263, 16
        %v523 = vrot.slane %v521, 5
        %v524 = vor.u32 %v520, %v523
        %v525 = vrot.slane %v524, 4
        %v527 = vshll.u32 %v264, 16
        %v529 = vrot.slane %v527, 5
        %v530 = vsel %vm516, %v525, %v529
        %v531 = vshrl.u32 %v264, 16
        %v533 = vrot.slane %v531, 4
        %v534 = vor.u32 %v533, %v529
        %v535 = vrot.slane %v534, 4
        %v537 = vshll.u32 %v265, 16
        %v539 = vrot.slane %v537, 5
        %v540 = vsel %vm516, %v535, %v539
        %v542 = vshrl.u32 %v266, 16
        %v544 = vrot.slane %v542, 4
        %v545 = vshll.u32 %v266, 16
        %v547 = vrot.slane %v545, 5
        %v548 = vor.u32 %v544, %v547
        %v549 = vrot.slane %v548, 4
        %v551 = vshll.u32 %v267, 16
        %v553 = vrot.slane %v551, 5
        %v554 = vsel %vm516, %v549, %v553
        %v555 = vshrl.u32 %v267, 16
        %v557 = vrot.slane %v555, 4
        %v558 = vor.u32 %v557, %v553
        %v559 = vrot.slane %v558, 4
        %v561 = vshll.u32 %v268, 16
        %v563 = vrot.slane %v561, 5
        %v564 = vsel %vm516, %v559, %v563
        %v566 = vshrl.u32 %v269, 16
        %v568 = vrot.slane %v566, 4
        %v569 = vshll.u32 %v269, 16
        %v571 = vrot.slane %v569, 5
        %v572 = vor.u32 %v568, %v571
        %v573 = vrot.slane %v572, 4
        %v575 = vshll.u32 %v270, 16
        %v577 = vrot.slane %v575, 5
        %v578 = vsel %vm516, %v573, %v577
        %v579 = vshrl.u32 %v270, 16
        %v581 = vrot.slane %v579, 4
        %v582 = vor.u32 %v581, %v577
        %v583 = vrot.slane %v582, 4
        %v585 = vshll.u32 %v271, 16
        %v587 = vrot.slane %v585, 5
        %v588 = vsel %vm516, %v583, %v587
        %v590 = vshrl.u32 %v272, 16
        %v592 = vrot.slane %v590, 4
        %v593 = vshll.u32 %v272, 16
        %v595 = vrot.slane %v593, 5
        %v596 = vor.u32 %v592, %v595
        %v597 = vrot.slane %v596, 4
        %v599 = vshll.u32 %v273, 16
        %v601 = vrot.slane %v599, 5
        %v602 = vsel %vm516, %v597, %v601
        %v603 = vshrl.u32 %v273, 16
        %v605 = vrot.slane %v603, 4
        %v606 = vor.u32 %v605, %v601
        %v607 = vrot.slane %v606, 4
        %v609 = vshll.u32 %v274, 16
        %v611 = vrot.slane %v609, 5
        %v612 = vsel %vm516, %v607, %v611
        %v614 = vshrl.u32 %v275, 16
        %v616 = vrot.slane %v614, 4
        %v617 = vshll.u32 %v275, 16
        %v619 = vrot.slane %v617, 5
        %v620 = vor.u32 %v616, %v619
        %v621 = vrot.slane %v620, 4
        %v623 = vshll.u32 %v276, 16
        %v625 = vrot.slane %v623, 5
        %v626 = vsel %vm516, %v621, %v625
        %v627 = vshrl.u32 %v276, 16
        %v629 = vrot.slane %v627, 4
        %v630 = vor.u32 %v629, %v625
        %v631 = vrot.slane %v630, 4
        %v633 = vshll.u32 %v277, 16
        %v635 = vrot.slane %v633, 5
        %v636 = vsel %vm516, %v631, %v635
        %v638 = vshrl.u32 %v278, 16
        %v640 = vrot.slane %v638, 4
        %v641 = vshll.u32 %v278, 16
        %v643 = vrot.slane %v641, 5
        %v644 = vor.u32 %v640, %v643
        %v645 = vrot.slane %v644, 4
        %v647 = vshll.u32 %v279, 16
        %v649 = vrot.slane %v647, 5
        %v650 = vsel %vm516, %v645, %v649
        %v651 = vshrl.u32 %v279, 16
        %v653 = vrot.slane %v651, 4
        %v654 = vor.u32 %v653, %v649
        %v655 = vrot.slane %v654, 4
        %v657 = vshll.u32 %v280, 16
        %v659 = vrot.slane %v657, 5
        %v660 = vsel %vm516, %v655, %v659
        %v662 = vshrl.u32 %v281, 16
        %v664 = vrot.slane %v662, 4
        %v665 = vshll.u32 %v281, 16
        %v667 = vrot.slane %v665, 5
        %v668 = vor.u32 %v664, %v667
        %v669 = vrot.slane %v668, 4
        %v671 = vshll.u32 %v282, 16
        %v673 = vrot.slane %v671, 5
        %v674 = vsel %vm516, %v669, %v673
        %v675 = vshrl.u32 %v282, 16
        %v677 = vrot.slane %v675, 4
        %v678 = vor.u32 %v677, %v673
        %v679 = vrot.slane %v678, 4
        %v681 = vshll.u32 %v283, 16
        %v683 = vrot.slane %v681, 5
        %v684 = vsel %vm516, %v679, %v683
        %v686 = vshrl.u32 %v284, 16
        %v688 = vrot.slane %v686, 4
        %v689 = vshll.u32 %v284, 16
        %v691 = vrot.slane %v689, 5
        %v692 = vor.u32 %v688, %v691
        %v693 = vrot.slane %v692, 4
        %v695 = vshll.u32 %v285, 16
        %v697 = vrot.slane %v695, 5
        %v698 = vsel %vm516, %v693, %v697
        %v699 = vshrl.u32 %v285, 16
        %v701 = vrot.slane %v699, 4
        %v702 = vor.u32 %v701, %v697
        %v703 = vrot.slane %v702, 4
        %v705 = vshll.u32 %v286, 16
        %v707 = vrot.slane %v705, 5
        %v708 = vsel %vm516, %v703, %v707
        %v709 = vld [vmem:[#allocation2] sm:$0xff]
        %v710 = vld [vmem:[#allocation2 + $0x8] sm:$0xff]
        %v711 = vld [vmem:[#allocation2 + $0x10] sm:$0xff]
        %v712 = vld [vmem:[#allocation2 + $0x18] sm:$0xff]
        %v713 = vld [vmem:[#allocation2 + $0x20] sm:$0xff]
        %v714 = vld [vmem:[#allocation2 + $0x28] sm:$0xff]
        %v715 = vld [vmem:[#allocation2 + $0x30] sm:$0xff]
        %v716 = vld [vmem:[#allocation2 + $0x38] sm:$0xff]
        %v717 = vld [vmem:[#allocation2 + $0x40] sm:$0xff]
        %v718 = vld [vmem:[#allocation2 + $0x48] sm:$0xff]
        %v719 = vld [vmem:[#allocation2 + $0x50] sm:$0xff]
        %v720 = vld [vmem:[#allocation2 + $0x58] sm:$0xff]
        %v721 = vld [vmem:[#allocation2 + $0x60] sm:$0xff]
        %v722 = vld [vmem:[#allocation2 + $0x68] sm:$0xff]
        %v723 = vld [vmem:[#allocation2 + $0x70] sm:$0xff]
        %v724 = vld [vmem:[#allocation2 + $0x78] sm:$0xff]
        %s725 = scalar_lea.vmem %s1, 8
        %v726 = vld [vmem:[%s725] sm:$0xf]
        %v727 = vld [vmem:[%s725 + $0x4] sm:$0x3]
        %v728 = vunpack.c.l.b16 %v530
        %v729 = vunpack.c.l.b16 %v540
        %v730 = vunpack.c.l.b16 %v554
        %v731 = vunpack.c.l.b16 %v564
        %v732 = vunpack.c.l.b16 %v578
        %v733 = vunpack.c.l.b16 %v588
        %v734 = vunpack.c.l.b16 %v602
        %v735 = vunpack.c.l.b16 %v612
        %v736 = vunpack.c.l.b16 %v626
        %v737 = vunpack.c.l.b16 %v636
        %v738 = vunpack.c.l.b16 %v650
        %v739 = vunpack.c.l.b16 %v660
        %v740 = vunpack.c.l.b16 %v674
        %v741 = vunpack.c.l.b16 %v684
        %v742 = vunpack.c.l.b16 %v698
        %v743 = vunpack.c.l.b16 %v708
        %v744 = vpack.c.b16 %v729, %v728
        %v745 = vpack.c.b16 %v731, %v730
        %v746 = vpack.c.b16 %v733, %v732
        %v747 = vpack.c.b16 %v735, %v734
        %v748 = vpack.c.b16 %v737, %v736
        %v749 = vpack.c.b16 %v739, %v738
        %v750 = vpack.c.b16 %v741, %v740
        %v751 = vpack.c.b16 %v743, %v742
        %v754 = vunpack.c.l.b16 %v726
        %v755 = vunpack.c.l.b16 %v727
        %v756 = vpack.c.b16 %v755, %v754
        %v758 = vsel %vm356, %v744, 0
        %v761 = vsel %vm356, %v745, 0
        %v764 = vsel %vm356, %v746, 0
        %v767 = vsel %vm356, %v747, 0
        %v770 = vsel %vm356, %v748, 0
        %v773 = vsel %vm356, %v749, 0
        %v776 = vsel %vm356, %v750, 0
        %v779 = vsel %vm356, %v751, 0
        %v782 = vsel %vm381, %v756, 0
        %784 = vmatprep.subr.bf16.mxu0 0
        %785 = vmatpush1.bf16.msra.mxu0 0
        %786 = vmatprep.subr.bf16.mxu0 0
        %787 = vmatpush1.bf16.msra.mxu0 0
        %788 = vmatprep.subr.bf16.mxu0 0
        %789 = vmatpush1.bf16.msra.mxu0 0
        %790 = vmatprep.subr.bf16.mxu0 0
        %791 = vmatpush1.bf16.msra.mxu0 0
        %792 = vmatprep.subr.bf16.mxu0 0
        %793 = vmatpush1.bf16.msra.mxu0 0
        %794 = vmatprep.subr.bf16.mxu0 0
        %795 = vmatpush1.bf16.msra.mxu0 0
        %796 = vmatprep.subr.bf16.mxu0 0
        %797 = vmatpush1.bf16.msra.mxu0 0
        %798 = vmatprep.subr.bf16.mxu0 0
        %799 = vmatpush1.bf16.msra.mxu0 %v782
        %800 = vmatprep.subr.bf16.mxu0 0
        %801 = vmatpush2.bf16.msra.mxu0 0
        %802 = vmatprep.subr.bf16.mxu0 0
        %803 = vmatpush2.bf16.msra.mxu0 0
        %804 = vmatprep.subr.bf16.mxu0 0
        %805 = vmatpush2.bf16.msra.mxu0 0
        %806 = vmatprep.subr.bf16.mxu0 0
        %807 = vmatpush2.bf16.msra.mxu0 0
        %808 = vmatprep.subr.bf16.mxu0 0
        %809 = vmatpush2.bf16.msra.mxu0 0
        %810 = vmatprep.subr.bf16.mxu0 0
        %811 = vmatpush2.bf16.msra.mxu0 0
        %812 = vmatprep.subr.bf16.mxu0 0
        %813 = vmatpush2.bf16.msra.mxu0 0
        %814 = vmatprep.subr.bf16.mxu0 0
        %815 = vmatpush2.bf16.msra.mxu0 0
        %816 = vmatprep.mubr.bf16.mxu0 0
        %817 = vmatmul.mubr.bf16.gmra.mxu0 %v758
        %v818 = vpop.f32.mrf.mxu0
        %v819 = vadd.f32 0.0, %v818
        %v820 = vpop.f32.mrf.mxu0
        %v821 = vpop.f32.mrf.mxu0
        %v822 = vadd.f32 0.0, %v821
        %v823 = vpop.f32.mrf.mxu0
        %824 = vmatprep.mubr.bf16.mxu0 0
        %825 = vmatmul.mubr.bf16.gmra.mxu0 %v761
        %v826 = vpop.f32.mrf.mxu0
        %v827 = vadd.f32 0.0, %v826
        %v828 = vpop.f32.mrf.mxu0
        %v829 = vpop.f32.mrf.mxu0
        %v830 = vadd.f32 0.0, %v829
        %v831 = vpop.f32.mrf.mxu0
        %832 = vmatprep.mubr.bf16.mxu0 0
        %833 = vmatmul.mubr.bf16.gmra.mxu0 %v764
        %v834 = vpop.f32.mrf.mxu0
        %v835 = vadd.f32 0.0, %v834
        %v836 = vpop.f32.mrf.mxu0
        %v837 = vpop.f32.mrf.mxu0
        %v838 = vadd.f32 0.0, %v837
        %v839 = vpop.f32.mrf.mxu0
        %840 = vmatprep.mubr.bf16.mxu0 0
        %841 = vmatmul.mubr.bf16.gmra.mxu0 %v767
        %v842 = vpop.f32.mrf.mxu0
        %v843 = vadd.f32 0.0, %v842
        %v844 = vpop.f32.mrf.mxu0
        %v845 = vpop.f32.mrf.mxu0
        %v846 = vadd.f32 0.0, %v845
        %v847 = vpop.f32.mrf.mxu0
        %848 = vmatprep.mubr.bf16.mxu0 0
        %849 = vmatmul.mubr.bf16.gmra.mxu0 %v770
        %v850 = vpop.f32.mrf.mxu0
        %v851 = vadd.f32 0.0, %v850
        %v852 = vpop.f32.mrf.mxu0
        %v853 = vpop.f32.mrf.mxu0
        %v854 = vadd.f32 0.0, %v853
        %v855 = vpop.f32.mrf.mxu0
        %856 = vmatprep.mubr.bf16.mxu0 0
        %857 = vmatmul.mubr.bf16.gmra.mxu0 %v773
        %v858 = vpop.f32.mrf.mxu0
        %v859 = vadd.f32 0.0, %v858
        %v860 = vpop.f32.mrf.mxu0
        %v861 = vpop.f32.mrf.mxu0
        %v862 = vadd.f32 0.0, %v861
        %v863 = vpop.f32.mrf.mxu0
        %864 = vmatprep.mubr.bf16.mxu0 0
        %865 = vmatmul.mubr.bf16.gmra.mxu0 %v776
        %v866 = vpop.f32.mrf.mxu0
        %v867 = vadd.f32 0.0, %v866
        %v868 = vpop.f32.mrf.mxu0
        %v869 = vpop.f32.mrf.mxu0
        %v870 = vadd.f32 0.0, %v869
        %v871 = vpop.f32.mrf.mxu0
        %872 = vmatprep.mubr.bf16.mxu0 0
        %873 = vmatmul.mubr.bf16.gmra.mxu0 %v779
        %v874 = vpop.f32.mrf.mxu0
        %v875 = vadd.f32 0.0, %v874
        %v876 = vpop.f32.mrf.mxu0
        %v877 = vpop.f32.mrf.mxu0
        %v878 = vadd.f32 0.0, %v877
        %v879 = vpop.f32.mrf.mxu0
        %880 = vdwg.mxu0
        %v881 = vadd.f32 %v709, %v819
        %v882 = vadd.f32 %v710, %v822
        %v883 = vadd.f32 %v711, %v827
        %v884 = vadd.f32 %v712, %v830
        %v885 = vadd.f32 %v713, %v835
        %v886 = vadd.f32 %v714, %v838
        %v887 = vadd.f32 %v715, %v843
        %v888 = vadd.f32 %v716, %v846
        %v889 = vadd.f32 %v717, %v851
        %v890 = vadd.f32 %v718, %v854
        %v891 = vadd.f32 %v719, %v859
        %v892 = vadd.f32 %v720, %v862
        %v893 = vadd.f32 %v721, %v867
        %v894 = vadd.f32 %v722, %v870
        %v895 = vadd.f32 %v723, %v875
        %v896 = vadd.f32 %v724, %v878
        %897 = vst.msk [vmem:[#allocation2] sm:$0xff] %vm246, %v881
        %898 = vst.msk [vmem:[#allocation2 + $0x8] sm:$0xff] %vm246, %v882
        %899 = vst.msk [vmem:[#allocation2 + $0x10] sm:$0xff] %vm246, %v883
        %900 = vst.msk [vmem:[#allocation2 + $0x18] sm:$0xff] %vm246, %v884
        %901 = vst.msk [vmem:[#allocation2 + $0x20] sm:$0xff] %vm246, %v885
        %902 = vst.msk [vmem:[#allocation2 + $0x28] sm:$0xff] %vm246, %v886
        %903 = vst.msk [vmem:[#allocation2 + $0x30] sm:$0xff] %vm246, %v887
        %904 = vst.msk [vmem:[#allocation2 + $0x38] sm:$0xff] %vm246, %v888
        %905 = vst.msk [vmem:[#allocation2 + $0x40] sm:$0xff] %vm246, %v889
        %906 = vst.msk [vmem:[#allocation2 + $0x48] sm:$0xff] %vm246, %v890
        %907 = vst.msk [vmem:[#allocation2 + $0x50] sm:$0xff] %vm246, %v891
        %908 = vst.msk [vmem:[#allocation2 + $0x58] sm:$0xff] %vm246, %v892
        %909 = vst.msk [vmem:[#allocation2 + $0x60] sm:$0xff] %vm246, %v893
        %910 = vst.msk [vmem:[#allocation2 + $0x68] sm:$0xff] %vm246, %v894
        %911 = vst.msk [vmem:[#allocation2 + $0x70] sm:$0xff] %vm246, %v895
        %912 = vst.msk [vmem:[#allocation2 + $0x78] sm:$0xff] %vm246, %v896
        %vm921 = vcmask 1042432
        %vm922 = vcmask 1046532
        %vm923 = vmor %vm921, %vm922
        %v924 = vrot.slane %v263, 5
        %v925 = vrot.slane %v924, 4
        %v926 = vrot.slane %v264, 5
        %v927 = vsel %vm923, %v925, %v926
        %v928 = vrot.slane %v926, 4
        %v929 = vrot.slane %v265, 5
        %v930 = vsel %vm923, %v928, %v929
        %v931 = vrot.slane %v266, 5
        %v932 = vrot.slane %v931, 4
        %v933 = vrot.slane %v267, 5
        %v934 = vsel %vm923, %v932, %v933
        %v935 = vrot.slane %v933, 4
        %v936 = vrot.slane %v268, 5
        %v937 = vsel %vm923, %v935, %v936
        %v938 = vrot.slane %v269, 5
        %v939 = vrot.slane %v938, 4
        %v940 = vrot.slane %v270, 5
        %v941 = vsel %vm923, %v939, %v940
        %v942 = vrot.slane %v940, 4
        %v943 = vrot.slane %v271, 5
        %v944 = vsel %vm923, %v942, %v943
        %v945 = vrot.slane %v272, 5
        %v946 = vrot.slane %v945, 4
        %v947 = vrot.slane %v273, 5
        %v948 = vsel %vm923, %v946, %v947
        %v949 = vrot.slane %v947, 4
        %v950 = vrot.slane %v274, 5
        %v951 = vsel %vm923, %v949, %v950
        %v952 = vrot.slane %v275, 5
        %v953 = vrot.slane %v952, 4
        %v954 = vrot.slane %v276, 5
        %v955 = vsel %vm923, %v953, %v954
        %v956 = vrot.slane %v954, 4
        %v957 = vrot.slane %v277, 5
        %v958 = vsel %vm923, %v956, %v957
        %v959 = vrot.slane %v278, 5
        %v960 = vrot.slane %v959, 4
        %v961 = vrot.slane %v279, 5
        %v962 = vsel %vm923, %v960, %v961
        %v963 = vrot.slane %v961, 4
        %v964 = vrot.slane %v280, 5
        %v965 = vsel %vm923, %v963, %v964
        %v966 = vrot.slane %v281, 5
        %v967 = vrot.slane %v966, 4
        %v968 = vrot.slane %v282, 5
        %v969 = vsel %vm923, %v967, %v968
        %v970 = vrot.slane %v968, 4
        %v971 = vrot.slane %v283, 5
        %v972 = vsel %vm923, %v970, %v971
        %v973 = vrot.slane %v284, 5
        %v974 = vrot.slane %v973, 4
        %v975 = vrot.slane %v285, 5
        %v976 = vsel %vm923, %v974, %v975
        %v977 = vrot.slane %v975, 4
        %v978 = vrot.slane %v286, 5
        %v979 = vsel %vm923, %v977, %v978
        %v980 = vld [vmem:[#allocation2] sm:$0xff]
        %v981 = vld [vmem:[#allocation2 + $0x8] sm:$0xff]
        %v982 = vld [vmem:[#allocation2 + $0x10] sm:$0xff]
        %v983 = vld [vmem:[#allocation2 + $0x18] sm:$0xff]
        %v984 = vld [vmem:[#allocation2 + $0x20] sm:$0xff]
        %v985 = vld [vmem:[#allocation2 + $0x28] sm:$0xff]
        %v986 = vld [vmem:[#allocation2 + $0x30] sm:$0xff]
        %v987 = vld [vmem:[#allocation2 + $0x38] sm:$0xff]
        %v988 = vld [vmem:[#allocation2 + $0x40] sm:$0xff]
        %v989 = vld [vmem:[#allocation2 + $0x48] sm:$0xff]
        %v990 = vld [vmem:[#allocation2 + $0x50] sm:$0xff]
        %v991 = vld [vmem:[#allocation2 + $0x58] sm:$0xff]
        %v992 = vld [vmem:[#allocation2 + $0x60] sm:$0xff]
        %v993 = vld [vmem:[#allocation2 + $0x68] sm:$0xff]
        %v994 = vld [vmem:[#allocation2 + $0x70] sm:$0xff]
        %v995 = vld [vmem:[#allocation2 + $0x78] sm:$0xff]
        %s996 = scalar_lea.vmem %s1, 16
        %v997 = vld [vmem:[%s996] sm:$0xf]
        %v998 = vld [vmem:[%s996 + $0x4] sm:$0x3]
        %v999 = vunpack.c.l.b16 %v927
        %v1000 = vunpack.c.l.b16 %v930
        %v1001 = vunpack.c.l.b16 %v934
        %v1002 = vunpack.c.l.b16 %v937
        %v1003 = vunpack.c.l.b16 %v941
        %v1004 = vunpack.c.l.b16 %v944
        %v1005 = vunpack.c.l.b16 %v948
        %v1006 = vunpack.c.l.b16 %v951
        %v1007 = vunpack.c.l.b16 %v955
        %v1008 = vunpack.c.l.b16 %v958
        %v1009 = vunpack.c.l.b16 %v962
        %v1010 = vunpack.c.l.b16 %v965
        %v1011 = vunpack.c.l.b16 %v969
        %v1012 = vunpack.c.l.b16 %v972
        %v1013 = vunpack.c.l.b16 %v976
        %v1014 = vunpack.c.l.b16 %v979
        %v1015 = vpack.c.b16 %v1000, %v999
        %v1016 = vpack.c.b16 %v1002, %v1001
        %v1017 = vpack.c.b16 %v1004, %v1003
        %v1018 = vpack.c.b16 %v1006, %v1005
        %v1019 = vpack.c.b16 %v1008, %v1007
        %v1020 = vpack.c.b16 %v1010, %v1009
        %v1021 = vpack.c.b16 %v1012, %v1011
        %v1022 = vpack.c.b16 %v1014, %v1013
        %v1025 = vunpack.c.l.b16 %v997
        %v1026 = vunpack.c.l.b16 %v998
        %v1027 = vpack.c.b16 %v1026, %v1025
        %v1029 = vsel %vm356, %v1015, 0
        %v1032 = vsel %vm356, %v1016, 0
        %v1035 = vsel %vm356, %v1017, 0
        %v1038 = vsel %vm356, %v1018, 0
        %v1041 = vsel %vm356, %v1019, 0
        %v1044 = vsel %vm356, %v1020, 0
        %v1047 = vsel %vm356, %v1021, 0
        %v1050 = vsel %vm356, %v1022, 0
        %v1053 = vsel %vm381, %v1027, 0
        %1055 = vmatprep.subr.bf16.mxu0 0
        %1056 = vmatpush1.bf16.msra.mxu0 0
        %1057 = vmatprep.subr.bf16.mxu0 0
        %1058 = vmatpush1.bf16.msra.mxu0 0
        %1059 = vmatprep.subr.bf16.mxu0 0
        %1060 = vmatpush1.bf16.msra.mxu0 0
        %1061 = vmatprep.subr.bf16.mxu0 0
        %1062 = vmatpush1.bf16.msra.mxu0 0
        %1063 = vmatprep.subr.bf16.mxu0 0
        %1064 = vmatpush1.bf16.msra.mxu0 0
        %1065 = vmatprep.subr.bf16.mxu0 0
        %1066 = vmatpush1.bf16.msra.mxu0 0
        %1067 = vmatprep.subr.bf16.mxu0 0
        %1068 = vmatpush1.bf16.msra.mxu0 0
        %1069 = vmatprep.subr.bf16.mxu0 0
        %1070 = vmatpush1.bf16.msra.mxu0 %v1053
        %1071 = vmatprep.subr.bf16.mxu0 0
        %1072 = vmatpush2.bf16.msra.mxu0 0
        %1073 = vmatprep.subr.bf16.mxu0 0
        %1074 = vmatpush2.bf16.msra.mxu0 0
        %1075 = vmatprep.subr.bf16.mxu0 0
        %1076 = vmatpush2.bf16.msra.mxu0 0
        %1077 = vmatprep.subr.bf16.mxu0 0
        %1078 = vmatpush2.bf16.msra.mxu0 0
        %1079 = vmatprep.subr.bf16.mxu0 0
        %1080 = vmatpush2.bf16.msra.mxu0 0
        %1081 = vmatprep.subr.bf16.mxu0 0
        %1082 = vmatpush2.bf16.msra.mxu0 0
        %1083 = vmatprep.subr.bf16.mxu0 0
        %1084 = vmatpush2.bf16.msra.mxu0 0
        %1085 = vmatprep.subr.bf16.mxu0 0
        %1086 = vmatpush2.bf16.msra.mxu0 0
        %1087 = vmatprep.mubr.bf16.mxu0 0
        %1088 = vmatmul.mubr.bf16.gmra.mxu0 %v1029
        %v1089 = vpop.f32.mrf.mxu0
        %v1090 = vadd.f32 0.0, %v1089
        %v1091 = vpop.f32.mrf.mxu0
        %v1092 = vpop.f32.mrf.mxu0
        %v1093 = vadd.f32 0.0, %v1092
        %v1094 = vpop.f32.mrf.mxu0
        %1095 = vmatprep.mubr.bf16.mxu0 0
        %1096 = vmatmul.mubr.bf16.gmra.mxu0 %v1032
        %v1097 = vpop.f32.mrf.mxu0
        %v1098 = vadd.f32 0.0, %v1097
        %v1099 = vpop.f32.mrf.mxu0
        %v1100 = vpop.f32.mrf.mxu0
        %v1101 = vadd.f32 0.0, %v1100
        %v1102 = vpop.f32.mrf.mxu0
        %1103 = vmatprep.mubr.bf16.mxu0 0
        %1104 = vmatmul.mubr.bf16.gmra.mxu0 %v1035
        %v1105 = vpop.f32.mrf.mxu0
        %v1106 = vadd.f32 0.0, %v1105
        %v1107 = vpop.f32.mrf.mxu0
        %v1108 = vpop.f32.mrf.mxu0
        %v1109 = vadd.f32 0.0, %v1108
        %v1110 = vpop.f32.mrf.mxu0
        %1111 = vmatprep.mubr.bf16.mxu0 0
        %1112 = vmatmul.mubr.bf16.gmra.mxu0 %v1038
        %v1113 = vpop.f32.mrf.mxu0
        %v1114 = vadd.f32 0.0, %v1113
        %v1115 = vpop.f32.mrf.mxu0
        %v1116 = vpop.f32.mrf.mxu0
        %v1117 = vadd.f32 0.0, %v1116
        %v1118 = vpop.f32.mrf.mxu0
        %1119 = vmatprep.mubr.bf16.mxu0 0
        %1120 = vmatmul.mubr.bf16.gmra.mxu0 %v1041
        %v1121 = vpop.f32.mrf.mxu0
        %v1122 = vadd.f32 0.0, %v1121
        %v1123 = vpop.f32.mrf.mxu0
        %v1124 = vpop.f32.mrf.mxu0
        %v1125 = vadd.f32 0.0, %v1124
        %v1126 = vpop.f32.mrf.mxu0
        %1127 = vmatprep.mubr.bf16.mxu0 0
        %1128 = vmatmul.mubr.bf16.gmra.mxu0 %v1044
        %v1129 = vpop.f32.mrf.mxu0
        %v1130 = vadd.f32 0.0, %v1129
        %v1131 = vpop.f32.mrf.mxu0
        %v1132 = vpop.f32.mrf.mxu0
        %v1133 = vadd.f32 0.0, %v1132
        %v1134 = vpop.f32.mrf.mxu0
        %1135 = vmatprep.mubr.bf16.mxu0 0
        %1136 = vmatmul.mubr.bf16.gmra.mxu0 %v1047
        %v1137 = vpop.f32.mrf.mxu0
        %v1138 = vadd.f32 0.0, %v1137
        %v1139 = vpop.f32.mrf.mxu0
        %v1140 = vpop.f32.mrf.mxu0
        %v1141 = vadd.f32 0.0, %v1140
        %v1142 = vpop.f32.mrf.mxu0
        %1143 = vmatprep.mubr.bf16.mxu0 0
        %1144 = vmatmul.mubr.bf16.gmra.mxu0 %v1050
        %v1145 = vpop.f32.mrf.mxu0
        %v1146 = vadd.f32 0.0, %v1145
        %v1147 = vpop.f32.mrf.mxu0
        %v1148 = vpop.f32.mrf.mxu0
        %v1149 = vadd.f32 0.0, %v1148
        %v1150 = vpop.f32.mrf.mxu0
        %1151 = vdwg.mxu0
        %v1152 = vadd.f32 %v980, %v1090
        %v1153 = vadd.f32 %v981, %v1093
        %v1154 = vadd.f32 %v982, %v1098
        %v1155 = vadd.f32 %v983, %v1101
        %v1156 = vadd.f32 %v984, %v1106
        %v1157 = vadd.f32 %v985, %v1109
        %v1158 = vadd.f32 %v986, %v1114
        %v1159 = vadd.f32 %v987, %v1117
        %v1160 = vadd.f32 %v988, %v1122
        %v1161 = vadd.f32 %v989, %v1125
        %v1162 = vadd.f32 %v990, %v1130
        %v1163 = vadd.f32 %v991, %v1133
        %v1164 = vadd.f32 %v992, %v1138
        %v1165 = vadd.f32 %v993, %v1141
        %v1166 = vadd.f32 %v994, %v1146
        %v1167 = vadd.f32 %v995, %v1149
        %1168 = vst.msk [vmem:[#allocation2] sm:$0xff] %vm246, %v1152
        %1169 = vst.msk [vmem:[#allocation2 + $0x8] sm:$0xff] %vm246, %v1153
        %1170 = vst.msk [vmem:[#allocation2 + $0x10] sm:$0xff] %vm246, %v1154
        %1171 = vst.msk [vmem:[#allocation2 + $0x18] sm:$0xff] %vm246, %v1155
        %1172 = vst.msk [vmem:[#allocation2 + $0x20] sm:$0xff] %vm246, %v1156
        %1173 = vst.msk [vmem:[#allocation2 + $0x28] sm:$0xff] %vm246, %v1157
        %1174 = vst.msk [vmem:[#allocation2 + $0x30] sm:$0xff] %vm246, %v1158
        %1175 = vst.msk [vmem:[#allocation2 + $0x38] sm:$0xff] %vm246, %v1159
        %1176 = vst.msk [vmem:[#allocation2 + $0x40] sm:$0xff] %vm246, %v1160
        %1177 = vst.msk [vmem:[#allocation2 + $0x48] sm:$0xff] %vm246, %v1161
        %1178 = vst.msk [vmem:[#allocation2 + $0x50] sm:$0xff] %vm246, %v1162
        %1179 = vst.msk [vmem:[#allocation2 + $0x58] sm:$0xff] %vm246, %v1163
        %1180 = vst.msk [vmem:[#allocation2 + $0x60] sm:$0xff] %vm246, %v1164
        %1181 = vst.msk [vmem:[#allocation2 + $0x68] sm:$0xff] %vm246, %v1165
        %1182 = vst.msk [vmem:[#allocation2 + $0x70] sm:$0xff] %vm246, %v1166
        %1183 = vst.msk [vmem:[#allocation2 + $0x78] sm:$0xff] %vm246, %v1167
        %v1184 = vld [vmem:[#allocation2] sm:$0xff]
        %v1185 = vld [vmem:[#allocation2 + $0x8] sm:$0xff]
        %v1186 = vld [vmem:[#allocation2 + $0x10] sm:$0xff]
        %v1187 = vld [vmem:[#allocation2 + $0x18] sm:$0xff]
        %v1188 = vld [vmem:[#allocation2 + $0x20] sm:$0xff]
        %v1189 = vld [vmem:[#allocation2 + $0x28] sm:$0xff]
        %v1190 = vld [vmem:[#allocation2 + $0x30] sm:$0xff]
        %v1191 = vld [vmem:[#allocation2 + $0x38] sm:$0xff]
        %v1192 = vld [vmem:[#allocation2 + $0x40] sm:$0xff]
        %v1193 = vld [vmem:[#allocation2 + $0x48] sm:$0xff]
        %v1194 = vld [vmem:[#allocation2 + $0x50] sm:$0xff]
        %v1195 = vld [vmem:[#allocation2 + $0x58] sm:$0xff]
        %v1196 = vld [vmem:[#allocation2 + $0x60] sm:$0xff]
        %v1197 = vld [vmem:[#allocation2 + $0x68] sm:$0xff]
        %v1198 = vld [vmem:[#allocation2 + $0x70] sm:$0xff]
        %v1199 = vld [vmem:[#allocation2 + $0x78] sm:$0xff]
        %s1200 = scalar_lea.vmem %s1, 24
        %v1201 = vld [vmem:[%s1200] sm:$0xf]
        %v1202 = vld [vmem:[%s1200 + $0x4] sm:$0x3]
        %v1205 = vunpack.c.l.b16 %v287
        %v1206 = vunpack.c.l.b16 %v288
        %v1207 = vpack.c.b16 %v1206, %v1205
        %v1210 = vunpack.c.l.b16 %v1201
        %v1211 = vunpack.c.l.b16 %v1202
        %v1212 = vpack.c.b16 %v1211, %v1210
        %v1214 = vsel %vm356, %v1207, 0
        %v1217 = vsel %vm381, %v1212, 0
        %1219 = vmatprep.subr.bf16.mxu0 0
        %1220 = vmatpush1.bf16.msra.mxu0 0
        %1221 = vmatprep.subr.bf16.mxu0 0
        %1222 = vmatpush1.bf16.msra.mxu0 0
        %1223 = vmatprep.subr.bf16.mxu0 0
        %1224 = vmatpush1.bf16.msra.mxu0 0
        %1225 = vmatprep.subr.bf16.mxu0 0
        %1226 = vmatpush1.bf16.msra.mxu0 0
        %1227 = vmatprep.subr.bf16.mxu0 0
        %1228 = vmatpush1.bf16.msra.mxu0 0
        %1229 = vmatprep.subr.bf16.mxu0 0
        %1230 = vmatpush1.bf16.msra.mxu0 0
        %1231 = vmatprep.subr.bf16.mxu0 0
        %1232 = vmatpush1.bf16.msra.mxu0 0
        %1233 = vmatprep.subr.bf16.mxu0 0
        %1234 = vmatpush1.bf16.msra.mxu0 %v1217
        %1235 = vmatprep.subr.bf16.mxu0 0
        %1236 = vmatpush2.bf16.msra.mxu0 0
        %1237 = vmatprep.subr.bf16.mxu0 0
        %1238 = vmatpush2.bf16.msra.mxu0 0
        %1239 = vmatprep.subr.bf16.mxu0 0
        %1240 = vmatpush2.bf16.msra.mxu0 0
        %1241 = vmatprep.subr.bf16.mxu0 0
        %1242 = vmatpush2.bf16.msra.mxu0 0
        %1243 = vmatprep.subr.bf16.mxu0 0
        %1244 = vmatpush2.bf16.msra.mxu0 0
        %1245 = vmatprep.subr.bf16.mxu0 0
        %1246 = vmatpush2.bf16.msra.mxu0 0
        %1247 = vmatprep.subr.bf16.mxu0 0
        %1248 = vmatpush2.bf16.msra.mxu0 0
        %1249 = vmatprep.subr.bf16.mxu0 0
        %1250 = vmatpush2.bf16.msra.mxu0 0
        %1251 = vmatprep.mubr.bf16.mxu0 0
        %1252 = vmatmul.mubr.bf16.gmra.mxu0 %v361
        %v1253 = vpop.f32.mrf.mxu0
        %v1254 = vadd.f32 0.0, %v1253
        %v1255 = vpop.f32.mrf.mxu0
        %v1256 = vpop.f32.mrf.mxu0
        %v1257 = vadd.f32 0.0, %v1256
        %v1258 = vpop.f32.mrf.mxu0
        %1259 = vmatprep.mubr.bf16.mxu0 0
        %1260 = vmatmul.mubr.bf16.gmra.mxu0 %v364
        %v1261 = vpop.f32.mrf.mxu0
        %v1262 = vadd.f32 0.0, %v1261
        %v1263 = vpop.f32.mrf.mxu0
        %v1264 = vpop.f32.mrf.mxu0
        %v1265 = vadd.f32 0.0, %v1264
        %v1266 = vpop.f32.mrf.mxu0
        %1267 = vmatprep.mubr.bf16.mxu0 0
        %1268 = vmatmul.mubr.bf16.gmra.mxu0 %v367
        %v1269 = vpop.f32.mrf.mxu0
        %v1270 = vadd.f32 0.0, %v1269
        %v1271 = vpop.f32.mrf.mxu0
        %v1272 = vpop.f32.mrf.mxu0
        %v1273 = vadd.f32 0.0, %v1272
        %v1274 = vpop.f32.mrf.mxu0
        %1275 = vmatprep.mubr.bf16.mxu0 0
        %1276 = vmatmul.mubr.bf16.gmra.mxu0 %v370
        %v1277 = vpop.f32.mrf.mxu0
        %v1278 = vadd.f32 0.0, %v1277
        %v1279 = vpop.f32.mrf.mxu0
        %v1280 = vpop.f32.mrf.mxu0
        %v1281 = vadd.f32 0.0, %v1280
        %v1282 = vpop.f32.mrf.mxu0
        %1283 = vmatprep.mubr.bf16.mxu0 0
        %1284 = vmatmul.mubr.bf16.gmra.mxu0 %v373
        %v1285 = vpop.f32.mrf.mxu0
        %v1286 = vadd.f32 0.0, %v1285
        %v1287 = vpop.f32.mrf.mxu0
        %v1288 = vpop.f32.mrf.mxu0
        %v1289 = vadd.f32 0.0, %v1288
        %v1290 = vpop.f32.mrf.mxu0
        %1291 = vmatprep.mubr.bf16.mxu0 0
        %1292 = vmatmul.mubr.bf16.gmra.mxu0 %v376
        %v1293 = vpop.f32.mrf.mxu0
        %v1294 = vadd.f32 0.0, %v1293
        %v1295 = vpop.f32.mrf.mxu0
        %v1296 = vpop.f32.mrf.mxu0
        %v1297 = vadd.f32 0.0, %v1296
        %v1298 = vpop.f32.mrf.mxu0
        %1299 = vmatprep.mubr.bf16.mxu0 0
        %1300 = vmatmul.mubr.bf16.gmra.mxu0 %v379
        %v1301 = vpop.f32.mrf.mxu0
        %v1302 = vadd.f32 0.0, %v1301
        %v1303 = vpop.f32.mrf.mxu0
        %v1304 = vpop.f32.mrf.mxu0
        %v1305 = vadd.f32 0.0, %v1304
        %v1306 = vpop.f32.mrf.mxu0
        %1307 = vmatprep.mubr.bf16.mxu0 0
        %1308 = vmatmul.mubr.bf16.gmra.mxu0 %v1214
        %v1309 = vpop.f32.mrf.mxu0
        %v1310 = vadd.f32 0.0, %v1309
        %v1311 = vpop.f32.mrf.mxu0
        %v1312 = vpop.f32.mrf.mxu0
        %v1313 = vadd.f32 0.0, %v1312
        %v1314 = vpop.f32.mrf.mxu0
        %1315 = vdwg.mxu0
        %v1316 = vadd.f32 %v1184, %v1254
        %v1317 = vadd.f32 %v1185, %v1257
        %v1318 = vadd.f32 %v1186, %v1262
        %v1319 = vadd.f32 %v1187, %v1265
        %v1320 = vadd.f32 %v1188, %v1270
        %v1321 = vadd.f32 %v1189, %v1273
        %v1322 = vadd.f32 %v1190, %v1278
        %v1323 = vadd.f32 %v1191, %v1281
        %v1324 = vadd.f32 %v1192, %v1286
        %v1325 = vadd.f32 %v1193, %v1289
        %v1326 = vadd.f32 %v1194, %v1294
        %v1327 = vadd.f32 %v1195, %v1297
        %v1328 = vadd.f32 %v1196, %v1302
        %v1329 = vadd.f32 %v1197, %v1305
        %v1330 = vadd.f32 %v1198, %v1310
        %v1331 = vadd.f32 %v1199, %v1313
        %1332 = vst.msk [vmem:[#allocation2] sm:$0xff] %vm246, %v1316
        %1333 = vst.msk [vmem:[#allocation2 + $0x8] sm:$0xff] %vm246, %v1317
        %1334 = vst.msk [vmem:[#allocation2 + $0x10] sm:$0xff] %vm246, %v1318
        %1335 = vst.msk [vmem:[#allocation2 + $0x18] sm:$0xff] %vm246, %v1319
        %1336 = vst.msk [vmem:[#allocation2 + $0x20] sm:$0xff] %vm246, %v1320
        %1337 = vst.msk [vmem:[#allocation2 + $0x28] sm:$0xff] %vm246, %v1321
        %1338 = vst.msk [vmem:[#allocation2 + $0x30] sm:$0xff] %vm246, %v1322
        %1339 = vst.msk [vmem:[#allocation2 + $0x38] sm:$0xff] %vm246, %v1323
        %1340 = vst.msk [vmem:[#allocation2 + $0x40] sm:$0xff] %vm246, %v1324
        %1341 = vst.msk [vmem:[#allocation2 + $0x48] sm:$0xff] %vm246, %v1325
        %1342 = vst.msk [vmem:[#allocation2 + $0x50] sm:$0xff] %vm246, %v1326
        %1343 = vst.msk [vmem:[#allocation2 + $0x58] sm:$0xff] %vm246, %v1327
        %1344 = vst.msk [vmem:[#allocation2 + $0x60] sm:$0xff] %vm246, %v1328
        %1345 = vst.msk [vmem:[#allocation2 + $0x68] sm:$0xff] %vm246, %v1329
        %1346 = vst.msk [vmem:[#allocation2 + $0x70] sm:$0xff] %vm246, %v1330
        %1347 = vst.msk [vmem:[#allocation2 + $0x78] sm:$0xff] %vm246, %v1331
        %v1349 = vshrl.u32 %v287, 16
        %v1351 = vrot.slane %v1349, 4
        %v1352 = vshll.u32 %v287, 16
        %v1354 = vrot.slane %v1352, 5
        %v1355 = vor.u32 %v1351, %v1354
        %v1356 = vrot.slane %v1355, 4
        %v1358 = vshll.u32 %v288, 16
        %v1360 = vrot.slane %v1358, 5
        %v1361 = vsel %vm516, %v1356, %v1360
        %v1362 = vshrl.u32 %v288, 16
        %v1364 = vrot.slane %v1362, 4
        %v1365 = vor.u32 %v1364, %v1360
        %v1366 = vrot.slane %v1365, 4
        %v1368 = vshll.u32 %v289, 16
        %v1370 = vrot.slane %v1368, 5
        %v1371 = vsel %vm516, %v1366, %v1370
        %v1372 = vld [vmem:[#allocation2] sm:$0xff]
        %v1373 = vld [vmem:[#allocation2 + $0x8] sm:$0xff]
        %v1374 = vld [vmem:[#allocation2 + $0x10] sm:$0xff]
        %v1375 = vld [vmem:[#allocation2 + $0x18] sm:$0xff]
        %v1376 = vld [vmem:[#allocation2 + $0x20] sm:$0xff]
        %v1377 = vld [vmem:[#allocation2 + $0x28] sm:$0xff]
        %v1378 = vld [vmem:[#allocation2 + $0x30] sm:$0xff]
        %v1379 = vld [vmem:[#allocation2 + $0x38] sm:$0xff]
        %v1380 = vld [vmem:[#allocation2 + $0x40] sm:$0xff]
        %v1381 = vld [vmem:[#allocation2 + $0x48] sm:$0xff]
        %v1382 = vld [vmem:[#allocation2 + $0x50] sm:$0xff]
        %v1383 = vld [vmem:[#allocation2 + $0x58] sm:$0xff]
        %v1384 = vld [vmem:[#allocation2 + $0x60] sm:$0xff]
        %v1385 = vld [vmem:[#allocation2 + $0x68] sm:$0xff]
        %v1386 = vld [vmem:[#allocation2 + $0x70] sm:$0xff]
        %v1387 = vld [vmem:[#allocation2 + $0x78] sm:$0xff]
        %s1388 = scalar_lea.vmem %s1, 32
        %v1389 = vld [vmem:[%s1388] sm:$0xf]
        %v1390 = vld [vmem:[%s1388 + $0x4] sm:$0x3]
        %v1391 = vunpack.c.l.b16 %v1361
        %v1392 = vunpack.c.l.b16 %v1371
        %v1393 = vpack.c.b16 %v1392, %v1391
        %v1396 = vunpack.c.l.b16 %v1389
        %v1397 = vunpack.c.l.b16 %v1390
        %v1398 = vpack.c.b16 %v1397, %v1396
        %v1400 = vsel %vm356, %v1393, 0
        %v1403 = vsel %vm381, %v1398, 0
        %1405 = vmatprep.subr.bf16.mxu0 0
        %1406 = vmatpush1.bf16.msra.mxu0 0
        %1407 = vmatprep.subr.bf16.mxu0 0
        %1408 = vmatpush1.bf16.msra.mxu0 0
        %1409 = vmatprep.subr.bf16.mxu0 0
        %1410 = vmatpush1.bf16.msra.mxu0 0
        %1411 = vmatprep.subr.bf16.mxu0 0
        %1412 = vmatpush1.bf16.msra.mxu0 0
        %1413 = vmatprep.subr.bf16.mxu0 0
        %1414 = vmatpush1.bf16.msra.mxu0 0
        %1415 = vmatprep.subr.bf16.mxu0 0
        %1416 = vmatpush1.bf16.msra.mxu0 0
        %1417 = vmatprep.subr.bf16.mxu0 0
        %1418 = vmatpush1.bf16.msra.mxu0 0
        %1419 = vmatprep.subr.bf16.mxu0 0
        %1420 = vmatpush1.bf16.msra.mxu0 %v1403
        %1421 = vmatprep.subr.bf16.mxu0 0
        %1422 = vmatpush2.bf16.msra.mxu0 0
        %1423 = vmatprep.subr.bf16.mxu0 0
        %1424 = vmatpush2.bf16.msra.mxu0 0
        %1425 = vmatprep.subr.bf16.mxu0 0
        %1426 = vmatpush2.bf16.msra.mxu0 0
        %1427 = vmatprep.subr.bf16.mxu0 0
        %1428 = vmatpush2.bf16.msra.mxu0 0
        %1429 = vmatprep.subr.bf16.mxu0 0
        %1430 = vmatpush2.bf16.msra.mxu0 0
        %1431 = vmatprep.subr.bf16.mxu0 0
        %1432 = vmatpush2.bf16.msra.mxu0 0
        %1433 = vmatprep.subr.bf16.mxu0 0
        %1434 = vmatpush2.bf16.msra.mxu0 0
        %1435 = vmatprep.subr.bf16.mxu0 0
        %1436 = vmatpush2.bf16.msra.mxu0 0
        %1437 = vmatprep.mubr.bf16.mxu0 0
        %1438 = vmatmul.mubr.bf16.gmra.mxu0 %v761
        %v1439 = vpop.f32.mrf.mxu0
        %v1440 = vadd.f32 0.0, %v1439
        %v1441 = vpop.f32.mrf.mxu0
        %v1442 = vpop.f32.mrf.mxu0
        %v1443 = vadd.f32 0.0, %v1442
        %v1444 = vpop.f32.mrf.mxu0
        %1445 = vmatprep.mubr.bf16.mxu0 0
        %1446 = vmatmul.mubr.bf16.gmra.mxu0 %v764
        %v1447 = vpop.f32.mrf.mxu0
        %v1448 = vadd.f32 0.0, %v1447
        %v1449 = vpop.f32.mrf.mxu0
        %v1450 = vpop.f32.mrf.mxu0
        %v1451 = vadd.f32 0.0, %v1450
        %v1452 = vpop.f32.mrf.mxu0
        %1453 = vmatprep.mubr.bf16.mxu0 0
        %1454 = vmatmul.mubr.bf16.gmra.mxu0 %v767
        %v1455 = vpop.f32.mrf.mxu0
        %v1456 = vadd.f32 0.0, %v1455
        %v1457 = vpop.f32.mrf.mxu0
        %v1458 = vpop.f32.mrf.mxu0
        %v1459 = vadd.f32 0.0, %v1458
        %v1460 = vpop.f32.mrf.mxu0
        %1461 = vmatprep.mubr.bf16.mxu0 0
        %1462 = vmatmul.mubr.bf16.gmra.mxu0 %v770
        %v1463 = vpop.f32.mrf.mxu0
        %v1464 = vadd.f32 0.0, %v1463
        %v1465 = vpop.f32.mrf.mxu0
        %v1466 = vpop.f32.mrf.mxu0
        %v1467 = vadd.f32 0.0, %v1466
        %v1468 = vpop.f32.mrf.mxu0
        %1469 = vmatprep.mubr.bf16.mxu0 0
        %1470 = vmatmul.mubr.bf16.gmra.mxu0 %v773
        %v1471 = vpop.f32.mrf.mxu0
        %v1472 = vadd.f32 0.0, %v1471
        %v1473 = vpop.f32.mrf.mxu0
        %v1474 = vpop.f32.mrf.mxu0
        %v1475 = vadd.f32 0.0, %v1474
        %v1476 = vpop.f32.mrf.mxu0
        %1477 = vmatprep.mubr.bf16.mxu0 0
        %1478 = vmatmul.mubr.bf16.gmra.mxu0 %v776
        %v1479 = vpop.f32.mrf.mxu0
        %v1480 = vadd.f32 0.0, %v1479
        %v1481 = vpop.f32.mrf.mxu0
        %v1482 = vpop.f32.mrf.mxu0
        %v1483 = vadd.f32 0.0, %v1482
        %v1484 = vpop.f32.mrf.mxu0
        %1485 = vmatprep.mubr.bf16.mxu0 0
        %1486 = vmatmul.mubr.bf16.gmra.mxu0 %v779
        %v1487 = vpop.f32.mrf.mxu0
        %v1488 = vadd.f32 0.0, %v1487
        %v1489 = vpop.f32.mrf.mxu0
        %v1490 = vpop.f32.mrf.mxu0
        %v1491 = vadd.f32 0.0, %v1490
        %v1492 = vpop.f32.mrf.mxu0
        %1493 = vmatprep.mubr.bf16.mxu0 0
        %1494 = vmatmul.mubr.bf16.gmra.mxu0 %v1400
        %v1495 = vpop.f32.mrf.mxu0
        %v1496 = vadd.f32 0.0, %v1495
        %v1497 = vpop.f32.mrf.mxu0
        %v1498 = vpop.f32.mrf.mxu0
        %v1499 = vadd.f32 0.0, %v1498
        %v1500 = vpop.f32.mrf.mxu0
        %1501 = vdwg.mxu0
        %v1502 = vadd.f32 %v1372, %v1440
        %v1503 = vadd.f32 %v1373, %v1443
        %v1504 = vadd.f32 %v1374, %v1448
        %v1505 = vadd.f32 %v1375, %v1451
        %v1506 = vadd.f32 %v1376, %v1456
        %v1507 = vadd.f32 %v1377, %v1459
        %v1508 = vadd.f32 %v1378, %v1464
        %v1509 = vadd.f32 %v1379, %v1467
        %v1510 = vadd.f32 %v1380, %v1472
        %v1511 = vadd.f32 %v1381, %v1475
        %v1512 = vadd.f32 %v1382, %v1480
        %v1513 = vadd.f32 %v1383, %v1483
        %v1514 = vadd.f32 %v1384, %v1488
        %v1515 = vadd.f32 %v1385, %v1491
        %v1516 = vadd.f32 %v1386, %v1496
        %v1517 = vadd.f32 %v1387, %v1499
        %1518 = vst.msk [vmem:[#allocation2] sm:$0xff] %vm246, %v1502
        %1519 = vst.msk [vmem:[#allocation2 + $0x8] sm:$0xff] %vm246, %v1503
        %1520 = vst.msk [vmem:[#allocation2 + $0x10] sm:$0xff] %vm246, %v1504
        %1521 = vst.msk [vmem:[#allocation2 + $0x18] sm:$0xff] %vm246, %v1505
        %1522 = vst.msk [vmem:[#allocation2 + $0x20] sm:$0xff] %vm246, %v1506
        %1523 = vst.msk [vmem:[#allocation2 + $0x28] sm:$0xff] %vm246, %v1507
        %1524 = vst.msk [vmem:[#allocation2 + $0x30] sm:$0xff] %vm246, %v1508
        %1525 = vst.msk [vmem:[#allocation2 + $0x38] sm:$0xff] %vm246, %v1509
        %1526 = vst.msk [vmem:[#allocation2 + $0x40] sm:$0xff] %vm246, %v1510
        %1527 = vst.msk [vmem:[#allocation2 + $0x48] sm:$0xff] %vm246, %v1511
        %1528 = vst.msk [vmem:[#allocation2 + $0x50] sm:$0xff] %vm246, %v1512
        %1529 = vst.msk [vmem:[#allocation2 + $0x58] sm:$0xff] %vm246, %v1513
        %1530 = vst.msk [vmem:[#allocation2 + $0x60] sm:$0xff] %vm246, %v1514
        %1531 = vst.msk [vmem:[#allocation2 + $0x68] sm:$0xff] %vm246, %v1515
        %1532 = vst.msk [vmem:[#allocation2 + $0x70] sm:$0xff] %vm246, %v1516
        %1533 = vst.msk [vmem:[#allocation2 + $0x78] sm:$0xff] %vm246, %v1517
        %v1535 = vrot.slane %v287, 5
        %v1536 = vrot.slane %v1535, 4
        %v1537 = vrot.slane %v288, 5
        %v1538 = vsel %vm923, %v1536, %v1537
        %v1539 = vrot.slane %v1537, 4
        %v1540 = vrot.slane %v289, 5
        %v1541 = vsel %vm923, %v1539, %v1540
        %v1542 = vld [vmem:[#allocation2] sm:$0xff]
        %v1543 = vld [vmem:[#allocation2 + $0x8] sm:$0xff]
        %v1544 = vld [vmem:[#allocation2 + $0x10] sm:$0xff]
        %v1545 = vld [vmem:[#allocation2 + $0x18] sm:$0xff]
        %v1546 = vld [vmem:[#allocation2 + $0x20] sm:$0xff]
        %v1547 = vld [vmem:[#allocation2 + $0x28] sm:$0xff]
        %v1548 = vld [vmem:[#allocation2 + $0x30] sm:$0xff]
        %v1549 = vld [vmem:[#allocation2 + $0x38] sm:$0xff]
        %v1550 = vld [vmem:[#allocation2 + $0x40] sm:$0xff]
        %v1551 = vld [vmem:[#allocation2 + $0x48] sm:$0xff]
        %v1552 = vld [vmem:[#allocation2 + $0x50] sm:$0xff]
        %v1553 = vld [vmem:[#allocation2 + $0x58] sm:$0xff]
        %v1554 = vld [vmem:[#allocation2 + $0x60] sm:$0xff]
        %v1555 = vld [vmem:[#allocation2 + $0x68] sm:$0xff]
        %v1556 = vld [vmem:[#allocation2 + $0x70] sm:$0xff]
        %v1557 = vld [vmem:[#allocation2 + $0x78] sm:$0xff]
        %s1558 = scalar_lea.vmem %s1, 40
        %v1559 = vld [vmem:[%s1558] sm:$0xf]
        %v1560 = vld [vmem:[%s1558 + $0x4] sm:$0x3]
        %v1561 = vunpack.c.l.b16 %v1538
        %v1562 = vunpack.c.l.b16 %v1541
        %v1563 = vpack.c.b16 %v1562, %v1561
        %v1566 = vunpack.c.l.b16 %v1559
        %v1567 = vunpack.c.l.b16 %v1560
        %v1568 = vpack.c.b16 %v1567, %v1566
        %v1570 = vsel %vm356, %v1563, 0
        %v1573 = vsel %vm381, %v1568, 0
        %1575 = vmatprep.subr.bf16.mxu0 0
        %1576 = vmatpush1.bf16.msra.mxu0 0
        %1577 = vmatprep.subr.bf16.mxu0 0
        %1578 = vmatpush1.bf16.msra.mxu0 0
        %1579 = vmatprep.subr.bf16.mxu0 0
        %1580 = vmatpush1.bf16.msra.mxu0 0
        %1581 = vmatprep.subr.bf16.mxu0 0
        %1582 = vmatpush1.bf16.msra.mxu0 0
        %1583 = vmatprep.subr.bf16.mxu0 0
        %1584 = vmatpush1.bf16.msra.mxu0 0
        %1585 = vmatprep.subr.bf16.mxu0 0
        %1586 = vmatpush1.bf16.msra.mxu0 0
        %1587 = vmatprep.subr.bf16.mxu0 0
        %1588 = vmatpush1.bf16.msra.mxu0 0
        %1589 = vmatprep.subr.bf16.mxu0 0
        %1590 = vmatpush1.bf16.msra.mxu0 %v1573
        %1591 = vmatprep.subr.bf16.mxu0 0
        %1592 = vmatpush2.bf16.msra.mxu0 0
        %1593 = vmatprep.subr.bf16.mxu0 0
        %1594 = vmatpush2.bf16.msra.mxu0 0
        %1595 = vmatprep.subr.bf16.mxu0 0
        %1596 = vmatpush2.bf16.msra.mxu0 0
        %1597 = vmatprep.subr.bf16.mxu0 0
        %1598 = vmatpush2.bf16.msra.mxu0 0
        %1599 = vmatprep.subr.bf16.mxu0 0
        %1600 = vmatpush2.bf16.msra.mxu0 0
        %1601 = vmatprep.subr.bf16.mxu0 0
        %1602 = vmatpush2.bf16.msra.mxu0 0
        %1603 = vmatprep.subr.bf16.mxu0 0
        %1604 = vmatpush2.bf16.msra.mxu0 0
        %1605 = vmatprep.subr.bf16.mxu0 0
        %1606 = vmatpush2.bf16.msra.mxu0 0
        %1607 = vmatprep.mubr.bf16.mxu0 0
        %1608 = vmatmul.mubr.bf16.gmra.mxu0 %v1032
        %v1609 = vpop.f32.mrf.mxu0
        %v1610 = vadd.f32 0.0, %v1609
        %v1611 = vpop.f32.mrf.mxu0
        %v1612 = vpop.f32.mrf.mxu0
        %v1613 = vadd.f32 0.0, %v1612
        %v1614 = vpop.f32.mrf.mxu0
        %1615 = vmatprep.mubr.bf16.mxu0 0
        %1616 = vmatmul.mubr.bf16.gmra.mxu0 %v1035
        %v1617 = vpop.f32.mrf.mxu0
        %v1618 = vadd.f32 0.0, %v1617
        %v1619 = vpop.f32.mrf.mxu0
        %v1620 = vpop.f32.mrf.mxu0
        %v1621 = vadd.f32 0.0, %v1620
        %v1622 = vpop.f32.mrf.mxu0
        %1623 = vmatprep.mubr.bf16.mxu0 0
        %1624 = vmatmul.mubr.bf16.gmra.mxu0 %v1038
        %v1625 = vpop.f32.mrf.mxu0
        %v1626 = vadd.f32 0.0, %v1625
        %v1627 = vpop.f32.mrf.mxu0
        %v1628 = vpop.f32.mrf.mxu0
        %v1629 = vadd.f32 0.0, %v1628
        %v1630 = vpop.f32.mrf.mxu0
        %1631 = vmatprep.mubr.bf16.mxu0 0
        %1632 = vmatmul.mubr.bf16.gmra.mxu0 %v1041
        %v1633 = vpop.f32.mrf.mxu0
        %v1634 = vadd.f32 0.0, %v1633
        %v1635 = vpop.f32.mrf.mxu0
        %v1636 = vpop.f32.mrf.mxu0
        %v1637 = vadd.f32 0.0, %v1636
        %v1638 = vpop.f32.mrf.mxu0
        %1639 = vmatprep.mubr.bf16.mxu0 0
        %1640 = vmatmul.mubr.bf16.gmra.mxu0 %v1044
        %v1641 = vpop.f32.mrf.mxu0
        %v1642 = vadd.f32 0.0, %v1641
        %v1643 = vpop.f32.mrf.mxu0
        %v1644 = vpop.f32.mrf.mxu0
        %v1645 = vadd.f32 0.0, %v1644
        %v1646 = vpop.f32.mrf.mxu0
        %1647 = vmatprep.mubr.bf16.mxu0 0
        %1648 = vmatmul.mubr.bf16.gmra.mxu0 %v1047
        %v1649 = vpop.f32.mrf.mxu0
        %v1650 = vadd.f32 0.0, %v1649
        %v1651 = vpop.f32.mrf.mxu0
        %v1652 = vpop.f32.mrf.mxu0
        %v1653 = vadd.f32 0.0, %v1652
        %v1654 = vpop.f32.mrf.mxu0
        %1655 = vmatprep.mubr.bf16.mxu0 0
        %1656 = vmatmul.mubr.bf16.gmra.mxu0 %v1050
        %v1657 = vpop.f32.mrf.mxu0
        %v1658 = vadd.f32 0.0, %v1657
        %v1659 = vpop.f32.mrf.mxu0
        %v1660 = vpop.f32.mrf.mxu0
        %v1661 = vadd.f32 0.0, %v1660
        %v1662 = vpop.f32.mrf.mxu0
        %1663 = vmatprep.mubr.bf16.mxu0 0
        %1664 = vmatmul.mubr.bf16.gmra.mxu0 %v1570
        %v1665 = vpop.f32.mrf.mxu0
        %v1666 = vadd.f32 0.0, %v1665
        %v1667 = vpop.f32.mrf.mxu0
        %v1668 = vpop.f32.mrf.mxu0
        %v1669 = vadd.f32 0.0, %v1668
        %v1670 = vpop.f32.mrf.mxu0
        %1671 = vdwg.mxu0
        %v1672 = vadd.f32 %v1542, %v1610
        %v1673 = vadd.f32 %v1543, %v1613
        %v1674 = vadd.f32 %v1544, %v1618
        %v1675 = vadd.f32 %v1545, %v1621
        %v1676 = vadd.f32 %v1546, %v1626
        %v1677 = vadd.f32 %v1547, %v1629
        %v1678 = vadd.f32 %v1548, %v1634
        %v1679 = vadd.f32 %v1549, %v1637
        %v1680 = vadd.f32 %v1550, %v1642
        %v1681 = vadd.f32 %v1551, %v1645
        %v1682 = vadd.f32 %v1552, %v1650
        %v1683 = vadd.f32 %v1553, %v1653
        %v1684 = vadd.f32 %v1554, %v1658
        %v1685 = vadd.f32 %v1555, %v1661
        %v1686 = vadd.f32 %v1556, %v1666
        %v1687 = vadd.f32 %v1557, %v1669
        %1688 = vst.msk [vmem:[#allocation2] sm:$0xff] %vm246, %v1672
        %1689 = vst.msk [vmem:[#allocation2 + $0x8] sm:$0xff] %vm246, %v1673
        %1690 = vst.msk [vmem:[#allocation2 + $0x10] sm:$0xff] %vm246, %v1674
        %1691 = vst.msk [vmem:[#allocation2 + $0x18] sm:$0xff] %vm246, %v1675
        %1692 = vst.msk [vmem:[#allocation2 + $0x20] sm:$0xff] %vm246, %v1676
        %1693 = vst.msk [vmem:[#allocation2 + $0x28] sm:$0xff] %vm246, %v1677
        %1694 = vst.msk [vmem:[#allocation2 + $0x30] sm:$0xff] %vm246, %v1678
        %1695 = vst.msk [vmem:[#allocation2 + $0x38] sm:$0xff] %vm246, %v1679
        %1696 = vst.msk [vmem:[#allocation2 + $0x40] sm:$0xff] %vm246, %v1680
        %1697 = vst.msk [vmem:[#allocation2 + $0x48] sm:$0xff] %vm246, %v1681
        %1698 = vst.msk [vmem:[#allocation2 + $0x50] sm:$0xff] %vm246, %v1682
        %1699 = vst.msk [vmem:[#allocation2 + $0x58] sm:$0xff] %vm246, %v1683
        %1700 = vst.msk [vmem:[#allocation2 + $0x60] sm:$0xff] %vm246, %v1684
        %1701 = vst.msk [vmem:[#allocation2 + $0x68] sm:$0xff] %vm246, %v1685
        %1702 = vst.msk [vmem:[#allocation2 + $0x70] sm:$0xff] %vm246, %v1686
        %1703 = vst.msk [vmem:[#allocation2 + $0x78] sm:$0xff] %vm246, %v1687
        %v1704 = vld [vmem:[#allocation2] sm:$0xff]
        %v1705 = vld [vmem:[#allocation2 + $0x8] sm:$0xff]
        %v1706 = vld [vmem:[#allocation2 + $0x10] sm:$0xff]
        %v1707 = vld [vmem:[#allocation2 + $0x18] sm:$0xff]
        %v1708 = vld [vmem:[#allocation2 + $0x20] sm:$0xff]
        %v1709 = vld [vmem:[#allocation2 + $0x28] sm:$0xff]
        %v1710 = vld [vmem:[#allocation2 + $0x30] sm:$0xff]
        %v1711 = vld [vmem:[#allocation2 + $0x38] sm:$0xff]
        %v1712 = vld [vmem:[#allocation2 + $0x40] sm:$0xff]
        %v1713 = vld [vmem:[#allocation2 + $0x48] sm:$0xff]
        %v1714 = vld [vmem:[#allocation2 + $0x50] sm:$0xff]
        %v1715 = vld [vmem:[#allocation2 + $0x58] sm:$0xff]
        %v1716 = vld [vmem:[#allocation2 + $0x60] sm:$0xff]
        %v1717 = vld [vmem:[#allocation2 + $0x68] sm:$0xff]
        %v1718 = vld [vmem:[#allocation2 + $0x70] sm:$0xff]
        %v1719 = vld [vmem:[#allocation2 + $0x78] sm:$0xff]
        %s1720 = scalar_lea.vmem %s1, 48
        %v1721 = vld [vmem:[%s1720] sm:$0xf]
        %v1722 = vld [vmem:[%s1720 + $0x4] sm:$0x3]
        %v1725 = vunpack.c.l.b16 %v290
        %v1726 = vunpack.c.l.b16 %v291
        %v1727 = vpack.c.b16 %v1726, %v1725
        %v1730 = vunpack.c.l.b16 %v1721
        %v1731 = vunpack.c.l.b16 %v1722
        %v1732 = vpack.c.b16 %v1731, %v1730
        %v1734 = vsel %vm356, %v1727, 0
        %v1737 = vsel %vm381, %v1732, 0
        %1739 = vmatprep.subr.bf16.mxu0 0
        %1740 = vmatpush1.bf16.msra.mxu0 0
        %1741 = vmatprep.subr.bf16.mxu0 0
        %1742 = vmatpush1.bf16.msra.mxu0 0
        %1743 = vmatprep.subr.bf16.mxu0 0
        %1744 = vmatpush1.bf16.msra.mxu0 0
        %1745 = vmatprep.subr.bf16.mxu0 0
        %1746 = vmatpush1.bf16.msra.mxu0 0
        %1747 = vmatprep.subr.bf16.mxu0 0
        %1748 = vmatpush1.bf16.msra.mxu0 0
        %1749 = vmatprep.subr.bf16.mxu0 0
        %1750 = vmatpush1.bf16.msra.mxu0 0
        %1751 = vmatprep.subr.bf16.mxu0 0
        %1752 = vmatpush1.bf16.msra.mxu0 0
        %1753 = vmatprep.subr.bf16.mxu0 0
        %1754 = vmatpush1.bf16.msra.mxu0 %v1737
        %1755 = vmatprep.subr.bf16.mxu0 0
        %1756 = vmatpush2.bf16.msra.mxu0 0
        %1757 = vmatprep.subr.bf16.mxu0 0
        %1758 = vmatpush2.bf16.msra.mxu0 0
        %1759 = vmatprep.subr.bf16.mxu0 0
        %1760 = vmatpush2.bf16.msra.mxu0 0
        %1761 = vmatprep.subr.bf16.mxu0 0
        %1762 = vmatpush2.bf16.msra.mxu0 0
        %1763 = vmatprep.subr.bf16.mxu0 0
        %1764 = vmatpush2.bf16.msra.mxu0 0
        %1765 = vmatprep.subr.bf16.mxu0 0
        %1766 = vmatpush2.bf16.msra.mxu0 0
        %1767 = vmatprep.subr.bf16.mxu0 0
        %1768 = vmatpush2.bf16.msra.mxu0 0
        %1769 = vmatprep.subr.bf16.mxu0 0
        %1770 = vmatpush2.bf16.msra.mxu0 0
        %1771 = vmatprep.mubr.bf16.mxu0 0
        %1772 = vmatmul.mubr.bf16.gmra.mxu0 %v364
        %v1773 = vpop.f32.mrf.mxu0
        %v1774 = vadd.f32 0.0, %v1773
        %v1775 = vpop.f32.mrf.mxu0
        %v1776 = vpop.f32.mrf.mxu0
        %v1777 = vadd.f32 0.0, %v1776
        %v1778 = vpop.f32.mrf.mxu0
        %1779 = vmatprep.mubr.bf16.mxu0 0
        %1780 = vmatmul.mubr.bf16.gmra.mxu0 %v367
        %v1781 = vpop.f32.mrf.mxu0
        %v1782 = vadd.f32 0.0, %v1781
        %v1783 = vpop.f32.mrf.mxu0
        %v1784 = vpop.f32.mrf.mxu0
        %v1785 = vadd.f32 0.0, %v1784
        %v1786 = vpop.f32.mrf.mxu0
        %1787 = vmatprep.mubr.bf16.mxu0 0
        %1788 = vmatmul.mubr.bf16.gmra.mxu0 %v370
        %v1789 = vpop.f32.mrf.mxu0
        %v1790 = vadd.f32 0.0, %v1789
        %v1791 = vpop.f32.mrf.mxu0
        %v1792 = vpop.f32.mrf.mxu0
        %v1793 = vadd.f32 0.0, %v1792
        %v1794 = vpop.f32.mrf.mxu0
        %1795 = vmatprep.mubr.bf16.mxu0 0
        %1796 = vmatmul.mubr.bf16.gmra.mxu0 %v373
        %v1797 = vpop.f32.mrf.mxu0
        %v1798 = vadd.f32 0.0, %v1797
        %v1799 = vpop.f32.mrf.mxu0
        %v1800 = vpop.f32.mrf.mxu0
        %v1801 = vadd.f32 0.0, %v1800
        %v1802 = vpop.f32.mrf.mxu0
        %1803 = vmatprep.mubr.bf16.mxu0 0
        %1804 = vmatmul.mubr.bf16.gmra.mxu0 %v376
        %v1805 = vpop.f32.mrf.mxu0
        %v1806 = vadd.f32 0.0, %v1805
        %v1807 = vpop.f32.mrf.mxu0
        %v1808 = vpop.f32.mrf.mxu0
        %v1809 = vadd.f32 0.0, %v1808
        %v1810 = vpop.f32.mrf.mxu0
        %1811 = vmatprep.mubr.bf16.mxu0 0
        %1812 = vmatmul.mubr.bf16.gmra.mxu0 %v379
        %v1813 = vpop.f32.mrf.mxu0
        %v1814 = vadd.f32 0.0, %v1813
        %v1815 = vpop.f32.mrf.mxu0
        %v1816 = vpop.f32.mrf.mxu0
        %v1817 = vadd.f32 0.0, %v1816
        %v1818 = vpop.f32.mrf.mxu0
        %1819 = vmatprep.mubr.bf16.mxu0 0
        %1820 = vmatmul.mubr.bf16.gmra.mxu0 %v1214
        %v1821 = vpop.f32.mrf.mxu0
        %v1822 = vadd.f32 0.0, %v1821
        %v1823 = vpop.f32.mrf.mxu0
        %v1824 = vpop.f32.mrf.mxu0
        %v1825 = vadd.f32 0.0, %v1824
        %v1826 = vpop.f32.mrf.mxu0
        %1827 = vmatprep.mubr.bf16.mxu0 0
        %1828 = vmatmul.mubr.bf16.gmra.mxu0 %v1734
        %v1829 = vpop.f32.mrf.mxu0
        %v1830 = vadd.f32 0.0, %v1829
        %v1831 = vpop.f32.mrf.mxu0
        %v1832 = vpop.f32.mrf.mxu0
        %v1833 = vadd.f32 0.0, %v1832
        %v1834 = vpop.f32.mrf.mxu0
        %1835 = vdwg.mxu0
        %v1836 = vadd.f32 %v1704, %v1774
        %v1837 = vadd.f32 %v1705, %v1777
        %v1838 = vadd.f32 %v1706, %v1782
        %v1839 = vadd.f32 %v1707, %v1785
        %v1840 = vadd.f32 %v1708, %v1790
        %v1841 = vadd.f32 %v1709, %v1793
        %v1842 = vadd.f32 %v1710, %v1798
        %v1843 = vadd.f32 %v1711, %v1801
        %v1844 = vadd.f32 %v1712, %v1806
        %v1845 = vadd.f32 %v1713, %v1809
        %v1846 = vadd.f32 %v1714, %v1814
        %v1847 = vadd.f32 %v1715, %v1817
        %v1848 = vadd.f32 %v1716, %v1822
        %v1849 = vadd.f32 %v1717, %v1825
        %v1850 = vadd.f32 %v1718, %v1830
        %v1851 = vadd.f32 %v1719, %v1833
        %1852 = vst.msk [vmem:[#allocation2] sm:$0xff] %vm246, %v1836
        %1853 = vst.msk [vmem:[#allocation2 + $0x8] sm:$0xff] %vm246, %v1837
        %1854 = vst.msk [vmem:[#allocation2 + $0x10] sm:$0xff] %vm246, %v1838
        %1855 = vst.msk [vmem:[#allocation2 + $0x18] sm:$0xff] %vm246, %v1839
        %1856 = vst.msk [vmem:[#allocation2 + $0x20] sm:$0xff] %vm246, %v1840
        %1857 = vst.msk [vmem:[#allocation2 + $0x28] sm:$0xff] %vm246, %v1841
        %1858 = vst.msk [vmem:[#allocation2 + $0x30] sm:$0xff] %vm246, %v1842
        %1859 = vst.msk [vmem:[#allocation2 + $0x38] sm:$0xff] %vm246, %v1843
        %1860 = vst.msk [vmem:[#allocation2 + $0x40] sm:$0xff] %vm246, %v1844
        %1861 = vst.msk [vmem:[#allocation2 + $0x48] sm:$0xff] %vm246, %v1845
        %1862 = vst.msk [vmem:[#allocation2 + $0x50] sm:$0xff] %vm246, %v1846
        %1863 = vst.msk [vmem:[#allocation2 + $0x58] sm:$0xff] %vm246, %v1847
        %1864 = vst.msk [vmem:[#allocation2 + $0x60] sm:$0xff] %vm246, %v1848
        %1865 = vst.msk [vmem:[#allocation2 + $0x68] sm:$0xff] %vm246, %v1849
        %1866 = vst.msk [vmem:[#allocation2 + $0x70] sm:$0xff] %vm246, %v1850
        %1867 = vst.msk [vmem:[#allocation2 + $0x78] sm:$0xff] %vm246, %v1851
        %v1869 = vshrl.u32 %v290, 16
        %v1871 = vrot.slane %v1869, 4
        %v1872 = vshll.u32 %v290, 16
        %v1874 = vrot.slane %v1872, 5
        %v1875 = vor.u32 %v1871, %v1874
        %v1876 = vrot.slane %v1875, 4
        %v1878 = vshll.u32 %v291, 16
        %v1880 = vrot.slane %v1878, 5
        %v1881 = vsel %vm516, %v1876, %v1880
        %v1882 = vshrl.u32 %v291, 16
        %v1884 = vrot.slane %v1882, 4
        %v1885 = vor.u32 %v1884, %v1880
        %v1886 = vrot.slane %v1885, 4
        %v1888 = vshll.u32 %v292, 16
        %v1890 = vrot.slane %v1888, 5
        %v1891 = vsel %vm516, %v1886, %v1890
        %v1892 = vld [vmem:[#allocation2] sm:$0xff]
        %v1893 = vld [vmem:[#allocation2 + $0x8] sm:$0xff]
        %v1894 = vld [vmem:[#allocation2 + $0x10] sm:$0xff]
        %v1895 = vld [vmem:[#allocation2 + $0x18] sm:$0xff]
        %v1896 = vld [vmem:[#allocation2 + $0x20] sm:$0xff]
        %v1897 = vld [vmem:[#allocation2 + $0x28] sm:$0xff]
        %v1898 = vld [vmem:[#allocation2 + $0x30] sm:$0xff]
        %v1899 = vld [vmem:[#allocation2 + $0x38] sm:$0xff]
        %v1900 = vld [vmem:[#allocation2 + $0x40] sm:$0xff]
        %v1901 = vld [vmem:[#allocation2 + $0x48] sm:$0xff]
        %v1902 = vld [vmem:[#allocation2 + $0x50] sm:$0xff]
        %v1903 = vld [vmem:[#allocation2 + $0x58] sm:$0xff]
        %v1904 = vld [vmem:[#allocation2 + $0x60] sm:$0xff]
        %v1905 = vld [vmem:[#allocation2 + $0x68] sm:$0xff]
        %v1906 = vld [vmem:[#allocation2 + $0x70] sm:$0xff]
        %v1907 = vld [vmem:[#allocation2 + $0x78] sm:$0xff]
        %s1908 = scalar_lea.vmem %s1, 56
        %v1909 = vld [vmem:[%s1908] sm:$0xf]
        %v1910 = vld [vmem:[%s1908 + $0x4] sm:$0x3]
        %v1911 = vunpack.c.l.b16 %v1881
        %v1912 = vunpack.c.l.b16 %v1891
        %v1913 = vpack.c.b16 %v1912, %v1911
        %v1916 = vunpack.c.l.b16 %v1909
        %v1917 = vunpack.c.l.b16 %v1910
        %v1918 = vpack.c.b16 %v1917, %v1916
        %v1920 = vsel %vm356, %v1913, 0
        %v1923 = vsel %vm381, %v1918, 0
        %1925 = vmatprep.subr.bf16.mxu0 0
        %1926 = vmatpush1.bf16.msra.mxu0 0
        %1927 = vmatprep.subr.bf16.mxu0 0
        %1928 = vmatpush1.bf16.msra.mxu0 0
        %1929 = vmatprep.subr.bf16.mxu0 0
        %1930 = vmatpush1.bf16.msra.mxu0 0
        %1931 = vmatprep.subr.bf16.mxu0 0
        %1932 = vmatpush1.bf16.msra.mxu0 0
        %1933 = vmatprep.subr.bf16.mxu0 0
        %1934 = vmatpush1.bf16.msra.mxu0 0
        %1935 = vmatprep.subr.bf16.mxu0 0
        %1936 = vmatpush1.bf16.msra.mxu0 0
        %1937 = vmatprep.subr.bf16.mxu0 0
        %1938 = vmatpush1.bf16.msra.mxu0 0
        %1939 = vmatprep.subr.bf16.mxu0 0
        %1940 = vmatpush1.bf16.msra.mxu0 %v1923
        %1941 = vmatprep.subr.bf16.mxu0 0
        %1942 = vmatpush2.bf16.msra.mxu0 0
        %1943 = vmatprep.subr.bf16.mxu0 0
        %1944 = vmatpush2.bf16.msra.mxu0 0
        %1945 = vmatprep.subr.bf16.mxu0 0
        %1946 = vmatpush2.bf16.msra.mxu0 0
        %1947 = vmatprep.subr.bf16.mxu0 0
        %1948 = vmatpush2.bf16.msra.mxu0 0
        %1949 = vmatprep.subr.bf16.mxu0 0
        %1950 = vmatpush2.bf16.msra.mxu0 0
        %1951 = vmatprep.subr.bf16.mxu0 0
        %1952 = vmatpush2.bf16.msra.mxu0 0
        %1953 = vmatprep.subr.bf16.mxu0 0
        %1954 = vmatpush2.bf16.msra.mxu0 0
        %1955 = vmatprep.subr.bf16.mxu0 0
        %1956 = vmatpush2.bf16.msra.mxu0 0
        %1957 = vmatprep.mubr.bf16.mxu0 0
        %1958 = vmatmul.mubr.bf16.gmra.mxu0 %v764
        %v1959 = vpop.f32.mrf.mxu0
        %v1960 = vadd.f32 0.0, %v1959
        %v1961 = vpop.f32.mrf.mxu0
        %v1962 = vpop.f32.mrf.mxu0
        %v1963 = vadd.f32 0.0, %v1962
        %v1964 = vpop.f32.mrf.mxu0
        %1965 = vmatprep.mubr.bf16.mxu0 0
        %1966 = vmatmul.mubr.bf16.gmra.mxu0 %v767
        %v1967 = vpop.f32.mrf.mxu0
        %v1968 = vadd.f32 0.0, %v1967
        %v1969 = vpop.f32.mrf.mxu0
        %v1970 = vpop.f32.mrf.mxu0
        %v1971 = vadd.f32 0.0, %v1970
        %v1972 = vpop.f32.mrf.mxu0
        %1973 = vmatprep.mubr.bf16.mxu0 0
        %1974 = vmatmul.mubr.bf16.gmra.mxu0 %v770
        %v1975 = vpop.f32.mrf.mxu0
        %v1976 = vadd.f32 0.0, %v1975
        %v1977 = vpop.f32.mrf.mxu0
        %v1978 = vpop.f32.mrf.mxu0
        %v1979 = vadd.f32 0.0, %v1978
        %v1980 = vpop.f32.mrf.mxu0
        %1981 = vmatprep.mubr.bf16.mxu0 0
        %1982 = vmatmul.mubr.bf16.gmra.mxu0 %v773
        %v1983 = vpop.f32.mrf.mxu0
        %v1984 = vadd.f32 0.0, %v1983
        %v1985 = vpop.f32.mrf.mxu0
        %v1986 = vpop.f32.mrf.mxu0
        %v1987 = vadd.f32 0.0, %v1986
        %v1988 = vpop.f32.mrf.mxu0
        %1989 = vmatprep.mubr.bf16.mxu0 0
        %1990 = vmatmul.mubr.bf16.gmra.mxu0 %v776
        %v1991 = vpop.f32.mrf.mxu0
        %v1992 = vadd.f32 0.0, %v1991
        %v1993 = vpop.f32.mrf.mxu0
        %v1994 = vpop.f32.mrf.mxu0
        %v1995 = vadd.f32 0.0, %v1994
        %v1996 = vpop.f32.mrf.mxu0
        %1997 = vmatprep.mubr.bf16.mxu0 0
        %1998 = vmatmul.mubr.bf16.gmra.mxu0 %v779
        %v1999 = vpop.f32.mrf.mxu0
        %v2000 = vadd.f32 0.0, %v1999
        %v2001 = vpop.f32.mrf.mxu0
        %v2002 = vpop.f32.mrf.mxu0
        %v2003 = vadd.f32 0.0, %v2002
        %v2004 = vpop.f32.mrf.mxu0
        %2005 = vmatprep.mubr.bf16.mxu0 0
        %2006 = vmatmul.mubr.bf16.gmra.mxu0 %v1400
        %v2007 = vpop.f32.mrf.mxu0
        %v2008 = vadd.f32 0.0, %v2007
        %v2009 = vpop.f32.mrf.mxu0
        %v2010 = vpop.f32.mrf.mxu0
        %v2011 = vadd.f32 0.0, %v2010
        %v2012 = vpop.f32.mrf.mxu0
        %2013 = vmatprep.mubr.bf16.mxu0 0
        %2014 = vmatmul.mubr.bf16.gmra.mxu0 %v1920
        %v2015 = vpop.f32.mrf.mxu0
        %v2016 = vadd.f32 0.0, %v2015
        %v2017 = vpop.f32.mrf.mxu0
        %v2018 = vpop.f32.mrf.mxu0
        %v2019 = vadd.f32 0.0, %v2018
        %v2020 = vpop.f32.mrf.mxu0
        %2021 = vdwg.mxu0
        %v2022 = vadd.f32 %v1892, %v1960
        %v2023 = vadd.f32 %v1893, %v1963
        %v2024 = vadd.f32 %v1894, %v1968
        %v2025 = vadd.f32 %v1895, %v1971
        %v2026 = vadd.f32 %v1896, %v1976
        %v2027 = vadd.f32 %v1897, %v1979
        %v2028 = vadd.f32 %v1898, %v1984
        %v2029 = vadd.f32 %v1899, %v1987
        %v2030 = vadd.f32 %v1900, %v1992
        %v2031 = vadd.f32 %v1901, %v1995
        %v2032 = vadd.f32 %v1902, %v2000
        %v2033 = vadd.f32 %v1903, %v2003
        %v2034 = vadd.f32 %v1904, %v2008
        %v2035 = vadd.f32 %v1905, %v2011
        %v2036 = vadd.f32 %v1906, %v2016
        %v2037 = vadd.f32 %v1907, %v2019
        %2038 = vst.msk [vmem:[#allocation2] sm:$0xff] %vm246, %v2022
        %2039 = vst.msk [vmem:[#allocation2 + $0x8] sm:$0xff] %vm246, %v2023
        %2040 = vst.msk [vmem:[#allocation2 + $0x10] sm:$0xff] %vm246, %v2024
        %2041 = vst.msk [vmem:[#allocation2 + $0x18] sm:$0xff] %vm246, %v2025
        %2042 = vst.msk [vmem:[#allocation2 + $0x20] sm:$0xff] %vm246, %v2026
        %2043 = vst.msk [vmem:[#allocation2 + $0x28] sm:$0xff] %vm246, %v2027
        %2044 = vst.msk [vmem:[#allocation2 + $0x30] sm:$0xff] %vm246, %v2028
        %2045 = vst.msk [vmem:[#allocation2 + $0x38] sm:$0xff] %vm246, %v2029
        %2046 = vst.msk [vmem:[#allocation2 + $0x40] sm:$0xff] %vm246, %v2030
        %2047 = vst.msk [vmem:[#allocation2 + $0x48] sm:$0xff] %vm246, %v2031
        %2048 = vst.msk [vmem:[#allocation2 + $0x50] sm:$0xff] %vm246, %v2032
        %2049 = vst.msk [vmem:[#allocation2 + $0x58] sm:$0xff] %vm246, %v2033
        %2050 = vst.msk [vmem:[#allocation2 + $0x60] sm:$0xff] %vm246, %v2034
        %2051 = vst.msk [vmem:[#allocation2 + $0x68] sm:$0xff] %vm246, %v2035
        %2052 = vst.msk [vmem:[#allocation2 + $0x70] sm:$0xff] %vm246, %v2036
        %2053 = vst.msk [vmem:[#allocation2 + $0x78] sm:$0xff] %vm246, %v2037
        %v2055 = vrot.slane %v290, 5
        %v2056 = vrot.slane %v2055, 4
        %v2057 = vrot.slane %v291, 5
        %v2058 = vsel %vm923, %v2056, %v2057
        %v2059 = vrot.slane %v2057, 4
        %v2060 = vrot.slane %v292, 5
        %v2061 = vsel %vm923, %v2059, %v2060
        %v2062 = vld [vmem:[#allocation2] sm:$0xff]
        %v2063 = vld [vmem:[#allocation2 + $0x8] sm:$0xff]
        %v2064 = vld [vmem:[#allocation2 + $0x10] sm:$0xff]
        %v2065 = vld [vmem:[#allocation2 + $0x18] sm:$0xff]
        %v2066 = vld [vmem:[#allocation2 + $0x20] sm:$0xff]
        %v2067 = vld [vmem:[#allocation2 + $0x28] sm:$0xff]
        %v2068 = vld [vmem:[#allocation2 + $0x30] sm:$0xff]
        %v2069 = vld [vmem:[#allocation2 + $0x38] sm:$0xff]
        %v2070 = vld [vmem:[#allocation2 + $0x40] sm:$0xff]
        %v2071 = vld [vmem:[#allocation2 + $0x48] sm:$0xff]
        %v2072 = vld [vmem:[#allocation2 + $0x50] sm:$0xff]
        %v2073 = vld [vmem:[#allocation2 + $0x58] sm:$0xff]
        %v2074 = vld [vmem:[#allocation2 + $0x60] sm:$0xff]
        %v2075 = vld [vmem:[#allocation2 + $0x68] sm:$0xff]
        %v2076 = vld [vmem:[#allocation2 + $0x70] sm:$0xff]
        %v2077 = vld [vmem:[#allocation2 + $0x78] sm:$0xff]
        %s2078 = scalar_lea.vmem %s1, 64
        %v2079 = vld [vmem:[%s2078] sm:$0xf]
        %v2080 = vld [vmem:[%s2078 + $0x4] sm:$0x3]
        %v2081 = vunpack.c.l.b16 %v2058
        %v2082 = vunpack.c.l.b16 %v2061
        %v2083 = vpack.c.b16 %v2082, %v2081
        %v2086 = vunpack.c.l.b16 %v2079
        %v2087 = vunpack.c.l.b16 %v2080
        %v2088 = vpack.c.b16 %v2087, %v2086
        %v2090 = vsel %vm356, %v2083, 0
        %v2093 = vsel %vm381, %v2088, 0
        %2095 = vmatprep.subr.bf16.mxu0 0
        %2096 = vmatpush1.bf16.msra.mxu0 0
        %2097 = vmatprep.subr.bf16.mxu0 0
        %2098 = vmatpush1.bf16.msra.mxu0 0
        %2099 = vmatprep.subr.bf16.mxu0 0
        %2100 = vmatpush1.bf16.msra.mxu0 0
        %2101 = vmatprep.subr.bf16.mxu0 0
        %2102 = vmatpush1.bf16.msra.mxu0 0
        %2103 = vmatprep.subr.bf16.mxu0 0
        %2104 = vmatpush1.bf16.msra.mxu0 0
        %2105 = vmatprep.subr.bf16.mxu0 0
        %2106 = vmatpush1.bf16.msra.mxu0 0
        %2107 = vmatprep.subr.bf16.mxu0 0
        %2108 = vmatpush1.bf16.msra.mxu0 0
        %2109 = vmatprep.subr.bf16.mxu0 0
        %2110 = vmatpush1.bf16.msra.mxu0 %v2093
        %2111 = vmatprep.subr.bf16.mxu0 0
        %2112 = vmatpush2.bf16.msra.mxu0 0
        %2113 = vmatprep.subr.bf16.mxu0 0
        %2114 = vmatpush2.bf16.msra.mxu0 0
        %2115 = vmatprep.subr.bf16.mxu0 0
        %2116 = vmatpush2.bf16.msra.mxu0 0
        %2117 = vmatprep.subr.bf16.mxu0 0
        %2118 = vmatpush2.bf16.msra.mxu0 0
        %2119 = vmatprep.subr.bf16.mxu0 0
        %2120 = vmatpush2.bf16.msra.mxu0 0
        %2121 = vmatprep.subr.bf16.mxu0 0
        %2122 = vmatpush2.bf16.msra.mxu0 0
        %2123 = vmatprep.subr.bf16.mxu0 0
        %2124 = vmatpush2.bf16.msra.mxu0 0
        %2125 = vmatprep.subr.bf16.mxu0 0
        %2126 = vmatpush2.bf16.msra.mxu0 0
        %2127 = vmatprep.mubr.bf16.mxu0 0
        %2128 = vmatmul.mubr.bf16.gmra.mxu0 %v1035
        %v2129 = vpop.f32.mrf.mxu0
        %v2130 = vadd.f32 0.0, %v2129
        %v2131 = vpop.f32.mrf.mxu0
        %v2132 = vpop.f32.mrf.mxu0
        %v2133 = vadd.f32 0.0, %v2132
        %v2134 = vpop.f32.mrf.mxu0
        %2135 = vmatprep.mubr.bf16.mxu0 0
        %2136 = vmatmul.mubr.bf16.gmra.mxu0 %v1038
        %v2137 = vpop.f32.mrf.mxu0
        %v2138 = vadd.f32 0.0, %v2137
        %v2139 = vpop.f32.mrf.mxu0
        %v2140 = vpop.f32.mrf.mxu0
        %v2141 = vadd.f32 0.0, %v2140
        %v2142 = vpop.f32.mrf.mxu0
        %2143 = vmatprep.mubr.bf16.mxu0 0
        %2144 = vmatmul.mubr.bf16.gmra.mxu0 %v1041
        %v2145 = vpop.f32.mrf.mxu0
        %v2146 = vadd.f32 0.0, %v2145
        %v2147 = vpop.f32.mrf.mxu0
        %v2148 = vpop.f32.mrf.mxu0
        %v2149 = vadd.f32 0.0, %v2148
        %v2150 = vpop.f32.mrf.mxu0
        %2151 = vmatprep.mubr.bf16.mxu0 0
        %2152 = vmatmul.mubr.bf16.gmra.mxu0 %v1044
        %v2153 = vpop.f32.mrf.mxu0
        %v2154 = vadd.f32 0.0, %v2153
        %v2155 = vpop.f32.mrf.mxu0
        %v2156 = vpop.f32.mrf.mxu0
        %v2157 = vadd.f32 0.0, %v2156
        %v2158 = vpop.f32.mrf.mxu0
        %2159 = vmatprep.mubr.bf16.mxu0 0
        %2160 = vmatmul.mubr.bf16.gmra.mxu0 %v1047
        %v2161 = vpop.f32.mrf.mxu0
        %v2162 = vadd.f32 0.0, %v2161
        %v2163 = vpop.f32.mrf.mxu0
        %v2164 = vpop.f32.mrf.mxu0
        %v2165 = vadd.f32 0.0, %v2164
        %v2166 = vpop.f32.mrf.mxu0
        %2167 = vmatprep.mubr.bf16.mxu0 0
        %2168 = vmatmul.mubr.bf16.gmra.mxu0 %v1050
        %v2169 = vpop.f32.mrf.mxu0
        %v2170 = vadd.f32 0.0, %v2169
        %v2171 = vpop.f32.mrf.mxu0
        %v2172 = vpop.f32.mrf.mxu0
        %v2173 = vadd.f32 0.0, %v2172
        %v2174 = vpop.f32.mrf.mxu0
        %2175 = vmatprep.mubr.bf16.mxu0 0
        %2176 = vmatmul.mubr.bf16.gmra.mxu0 %v1570
        %v2177 = vpop.f32.mrf.mxu0
        %v2178 = vadd.f32 0.0, %v2177
        %v2179 = vpop.f32.mrf.mxu0
        %v2180 = vpop.f32.mrf.mxu0
        %v2181 = vadd.f32 0.0, %v2180
        %v2182 = vpop.f32.mrf.mxu0
        %2183 = vmatprep.mubr.bf16.mxu0 0
        %2184 = vmatmul.mubr.bf16.gmra.mxu0 %v2090
        %v2185 = vpop.f32.mrf.mxu0
        %v2186 = vadd.f32 0.0, %v2185
        %v2187 = vpop.f32.mrf.mxu0
        %v2188 = vpop.f32.mrf.mxu0
        %v2189 = vadd.f32 0.0, %v2188
        %v2190 = vpop.f32.mrf.mxu0
        %2191 = vdwg.mxu0
        %v2192 = vadd.f32 %v2062, %v2130
        %v2193 = vadd.f32 %v2063, %v2133
        %v2194 = vadd.f32 %v2064, %v2138
        %v2195 = vadd.f32 %v2065, %v2141
        %v2196 = vadd.f32 %v2066, %v2146
        %v2197 = vadd.f32 %v2067, %v2149
        %v2198 = vadd.f32 %v2068, %v2154
        %v2199 = vadd.f32 %v2069, %v2157
        %v2200 = vadd.f32 %v2070, %v2162
        %v2201 = vadd.f32 %v2071, %v2165
        %v2202 = vadd.f32 %v2072, %v2170
        %v2203 = vadd.f32 %v2073, %v2173
        %v2204 = vadd.f32 %v2074, %v2178
        %v2205 = vadd.f32 %v2075, %v2181
        %v2206 = vadd.f32 %v2076, %v2186
        %v2207 = vadd.f32 %v2077, %v2189
        %2208 = vst.msk [vmem:[#allocation2] sm:$0xff] %vm246, %v2192
        %2209 = vst.msk [vmem:[#allocation2 + $0x8] sm:$0xff] %vm246, %v2193
        %2210 = vst.msk [vmem:[#allocation2 + $0x10] sm:$0xff] %vm246, %v2194
        %2211 = vst.msk [vmem:[#allocation2 + $0x18] sm:$0xff] %vm246, %v2195
        %2212 = vst.msk [vmem:[#allocation2 + $0x20] sm:$0xff] %vm246, %v2196
        %2213 = vst.msk [vmem:[#allocation2 + $0x28] sm:$0xff] %vm246, %v2197
        %2214 = vst.msk [vmem:[#allocation2 + $0x30] sm:$0xff] %vm246, %v2198
        %2215 = vst.msk [vmem:[#allocation2 + $0x38] sm:$0xff] %vm246, %v2199
        %2216 = vst.msk [vmem:[#allocation2 + $0x40] sm:$0xff] %vm246, %v2200
        %2217 = vst.msk [vmem:[#allocation2 + $0x48] sm:$0xff] %vm246, %v2201
        %2218 = vst.msk [vmem:[#allocation2 + $0x50] sm:$0xff] %vm246, %v2202
        %2219 = vst.msk [vmem:[#allocation2 + $0x58] sm:$0xff] %vm246, %v2203
        %2220 = vst.msk [vmem:[#allocation2 + $0x60] sm:$0xff] %vm246, %v2204
        %2221 = vst.msk [vmem:[#allocation2 + $0x68] sm:$0xff] %vm246, %v2205
        %2222 = vst.msk [vmem:[#allocation2 + $0x70] sm:$0xff] %vm246, %v2206
        %2223 = vst.msk [vmem:[#allocation2 + $0x78] sm:$0xff] %vm246, %v2207
        %v2224 = vld [vmem:[#allocation2] sm:$0xff]
        %v2225 = vld [vmem:[#allocation2 + $0x8] sm:$0xff]
        %v2226 = vld [vmem:[#allocation2 + $0x10] sm:$0xff]
        %v2227 = vld [vmem:[#allocation2 + $0x18] sm:$0xff]
        %v2228 = vld [vmem:[#allocation2 + $0x20] sm:$0xff]
        %v2229 = vld [vmem:[#allocation2 + $0x28] sm:$0xff]
        %v2230 = vld [vmem:[#allocation2 + $0x30] sm:$0xff]
        %v2231 = vld [vmem:[#allocation2 + $0x38] sm:$0xff]
        %v2232 = vld [vmem:[#allocation2 + $0x40] sm:$0xff]
        %v2233 = vld [vmem:[#allocation2 + $0x48] sm:$0xff]
        %v2234 = vld [vmem:[#allocation2 + $0x50] sm:$0xff]
        %v2235 = vld [vmem:[#allocation2 + $0x58] sm:$0xff]
        %v2236 = vld [vmem:[#allocation2 + $0x60] sm:$0xff]
        %v2237 = vld [vmem:[#allocation2 + $0x68] sm:$0xff]
        %v2238 = vld [vmem:[#allocation2 + $0x70] sm:$0xff]
        %v2239 = vld [vmem:[#allocation2 + $0x78] sm:$0xff]
        %2240 = vxpose.xlu0.b32.start [1/16] %v2224, 128
        %2241 = vxpose.xlu0.b32.cont [2/16] %v2225, 128
        %2242 = vxpose.xlu0.b32.cont [3/16] %v2226, 128
        %2243 = vxpose.xlu0.b32.cont [4/16] %v2227, 128
        %2244 = vxpose.xlu0.b32.cont [5/16] %v2228, 128
        %2245 = vxpose.xlu0.b32.cont [6/16] %v2229, 128
        %2246 = vxpose.xlu0.b32.cont [7/16] %v2230, 128
        %2247 = vxpose.xlu0.b32.cont [8/16] %v2231, 128
        %2248 = vxpose.xlu0.b32.cont [9/16] %v2232, 128
        %2249 = vxpose.xlu0.b32.cont [10/16] %v2233, 128
        %2250 = vxpose.xlu0.b32.cont [11/16] %v2234, 128
        %2251 = vxpose.xlu0.b32.cont [12/16] %v2235, 128
        %2252 = vxpose.xlu0.b32.cont [13/16] %v2236, 128
        %2253 = vxpose.xlu0.b32.cont [14/16] %v2237, 128
        %2254 = vxpose.xlu0.b32.cont [15/16] %v2238, 128
        %2255 = vxpose.xlu0.b32.end [16/16] %v2239, 128
        %v2256 = vpop.trf.xlu0
        %v2257 = vpop.trf.xlu0
        %v2258 = vpop.trf.xlu0
        %v2259 = vpop.trf.xlu0
        %v2260 = vpop.trf.xlu0
        %v2261 = vpop.trf.xlu0
        %v2262 = vpop.trf.xlu0
        %v2263 = vpop.trf.xlu0
        %v2264 = vpop.trf.xlu0
        %v2265 = vpop.trf.xlu0
        %v2266 = vpop.trf.xlu0
        %v2267 = vpop.trf.xlu0
        %v2268 = vpop.trf.xlu0
        %v2269 = vpop.trf.xlu0
        %v2270 = vpop.trf.xlu0
        %v2271 = vpop.trf.xlu0
        %v2272 = vpack.c.bf16 %v2257, %v2256
        %v2274 = vunpack.c.l.b16 %v2272
        %v2275 = vunpack.c.h.b16 %v2272
        %v2276 = vpack.c.b16 %v2274, %v2274
        %v2277 = vpack.c.b16 %v2275, %v2275
        %2280 = vst [vmem:[%s211] sm:$0xf] %v2276
        %2281 = vst [vmem:[%s211 + $0x4] sm:$0xf] %v2277
        %p2282 = scmp.eq.s32.totalorder %s21, 0
        // Predicated region
        $region29: #{conv_pass_2d.2} parent=27 // pred_check
          %p2283 = pneg %p2282
        $region30: #{conv_pass_2d.2} parent=27 // pred_check_branch
          %2285 = sbr.rel (%p2283) target = $region32
        $region31: #{conv_pass_2d.2} parent=27 // pred_region
          %vm2286 = vcmask 7168
          %2287 = vst.msk [vmem:[%s239] sm:$0xff] %vm2286, 0.0
          %2288 = vst.msk [vmem:[%s239 + $0x8] sm:$0xff] %vm2286, 0.0
          %2289 = vst.msk [vmem:[%s244] sm:$0xff] %vm2286, 0.0
          %2290 = vst.msk [vmem:[%s244 + $0x8] sm:$0xff] %vm2286, 0.0
        $region32: #{conv_pass_2d.2} parent=27 // pred_fallthru
          _
        %v2291 = vld [vmem:[%s239] sm:$0xff]
        %v2292 = vld [vmem:[%s239 + $0x8] sm:$0xff]
        %2293 = vadd.xlane.f32.xlu0 %v2256
        %v2294 = vpop.xlane.xlu0 %2293
        %2295 = vadd.xlane.f32.xlu0 %v2257
        %v2296 = vpop.xlane.xlu0 %2295
        %v2297 = vadd.f32 %v2291, %v2294
        %v2298 = vadd.f32 %v2292, %v2296
        %vm2299 = vcmask 7168
        %2300 = vst.msk [vmem:[%s239] sm:$0xff] %vm2299, %v2297
        %2301 = vst.msk [vmem:[%s239 + $0x8] sm:$0xff] %vm2299, %v2298
        %v2302 = vld [vmem:[%s244] sm:$0xff]
        %v2303 = vld [vmem:[%s244 + $0x8] sm:$0xff]
        %v2304 = vmul.f32 %v2256, %v2256
        %v2305 = vmul.f32 %v2257, %v2257
        %2306 = vadd.xlane.f32.xlu0 %v2304
        %v2307 = vpop.xlane.xlu0 %2306
        %2308 = vadd.xlane.f32.xlu0 %v2305
        %v2309 = vpop.xlane.xlu0 %2308
        %v2310 = vadd.f32 %v2302, %v2307
        %v2311 = vadd.f32 %v2303, %v2309
        %2312 = vst.msk [vmem:[%s244] sm:$0xff] %vm2299, %v2310
        %2313 = vst.msk [vmem:[%s244 + $0x8] sm:$0xff] %vm2299, %v2311
        %s2314 = sand.u32 %s87, 1
        %s2315 = sand.u32 %s87, 1
        %s2316 = smul.addr %s2315, 8
        %s2317 = scalar_lea.vmem [#allocation3], %s2316
        %p2318 = scmp.lt.s32.totalorder %s20, 1
        %s2319 = scalar_select %p2318, %s20, 1
        %s2320 = smul.addr %s2319, 2
        %s2321 = smul.addr %s2320, 8
        %s2322 = scalar_lea.vmem %s3, %s2321
        %p2323 = scmp.lt.s32.totalorder %s20, 1
        %s2324 = scalar_select %p2323, %s20, 1
        %s2325 = smul.addr %s2324, 2
        %s2326 = smul.addr %s2325, 8
        %s2327 = scalar_lea.vmem %s4, %s2326
        // Predicated region
        $region33: #{conv_pass_2d.2} parent=27 // pred_check
          %p2328 = pneg %p97
        $region34: #{conv_pass_2d.2} parent=27 // pred_check_branch
          %2330 = sbr.rel (%p2328) target = $region36
        $region35: #{conv_pass_2d.2} parent=27 // pred_region
          %s2331 = smul.addr %s20, 4
          %s2332 = sadd.s32 %s21, %s2331
          %s2333 = smul.addr %s2332, 4
          %s2334 = scalar_lea.vmem %s2, %s2333
          // Predicated region
          $region37: #{conv_pass_2d.2} parent=35 // pred_check
            _
          $region38: #{conv_pass_2d.2} parent=35 // pred_check_branch
            %2336 = sbr.rel (0) target = $region40
          $region39: #{conv_pass_2d.2} parent=35 // pred_region
            // Predicated region
            $region41: #{conv_pass_2d.2} parent=39 // pred_check
              _
            $region42: #{conv_pass_2d.2} parent=39 // pred_check_branch
              %2338 = sbr.rel target = $region44
            $region43: #{conv_pass_2d.2} parent=39 // pred_region
              // Predicated region
              $region56: #{conv_pass_2d.2} parent=43 // pred_check
                _
              $region57: #{conv_pass_2d.2} parent=43 // pred_check_branch
                %2356 = sbr.rel (0) target = $region59
              $region58: #{conv_pass_2d.2} parent=43 // pred_region
                loop: start=0, step=1, limit=1
                $region60: #{conv_pass_2d.2} parent=58 // loop_pre_header
                  _
                $region61: #{conv_pass_2d.2} parent=58 // loop_header
                  %s2358 = sphi 0, %s2362
                  %p2359 = scmp.ge.s32.totalorder %s2358, 1
                  %s2363 = sphi %s2317, %s2317
                  %s2364 = sphi %s2334, %s2334
                $region62: #{conv_pass_2d.2} parent=58 // loop_header_branch
                  %2361 = sbr.rel (%p2359) target = $region66
                $region63: #{conv_pass_2d.2} parent=58 // loop_body
                  _
                $region64: #{conv_pass_2d.2} parent=58 // loop_footer
                  %s2362 = sadd.s32 1, %s2358
                $region65: #{conv_pass_2d.2} parent=58 // loop_footer_branch
                  %2357 = sbr.rel target = $region61
                $region66: #{conv_pass_2d.2} parent=58 // loop_exit
                  _
                %s2366 = ssub.s32 16, 1
                loop: start=0, step=1, limit=1
                $region67: #{conv_pass_2d.2} parent=58 // loop_pre_header
                  _
                $region68: #{conv_pass_2d.2} parent=58 // loop_header
                  %s2368 = sphi 0, %s2372
                  %p2369 = scmp.ge.s32.totalorder %s2368, 1
                  %s2373 = sphi %s2317, %s2317
                  %s2374 = sphi %s2334, %s2334
                $region69: #{conv_pass_2d.2} parent=58 // loop_header_branch
                  %2371 = sbr.rel (%p2369) target = $region73
                $region70: #{conv_pass_2d.2} parent=58 // loop_body
                  %v2375 = vld [vmem:[%s2373] sm:%s2366]
                  %2376 = vst [vmem:[%s2374] sm:%s2366] %v2375
                  %v2377 = vld [vmem:[%s2373 + $0x4] sm:%s2366]
                  %2378 = vst [vmem:[%s2374 + $0x8] sm:%s2366] %v2377
                $region71: #{conv_pass_2d.2} parent=58 // loop_footer
                  %s2372 = sadd.s32 1, %s2368
                $region72: #{conv_pass_2d.2} parent=58 // loop_footer_branch
                  %2367 = sbr.rel target = $region68
                $region73: #{conv_pass_2d.2} parent=58 // loop_exit
                  _
              $region59: #{conv_pass_2d.2} parent=43 // pred_fallthru
                _
            $region44: #{conv_pass_2d.2} parent=39 // pred_fallthru
              _
            // Predicated region
            $region45: #{conv_pass_2d.2} parent=39 // pred_check
              _
            $region46: #{conv_pass_2d.2} parent=39 // pred_check_branch
              %2340 = sbr.rel (0) target = $region48
            $region47: #{conv_pass_2d.2} parent=39 // pred_region
              %s2342 = ssub.s32 16, 1
              loop: start=0, step=1, limit=1
              $region49: #{conv_pass_2d.2} parent=47 // loop_pre_header
                _
              $region50: #{conv_pass_2d.2} parent=47 // loop_header
                %s2344 = sphi 0, %s2348
                %p2345 = scmp.ge.s32.totalorder %s2344, 1
                %s2349 = sphi %s2317, %s2317
                %s2350 = sphi %s2334, %s2334
              $region51: #{conv_pass_2d.2} parent=47 // loop_header_branch
                %2347 = sbr.rel (%p2345) target = $region55
              $region52: #{conv_pass_2d.2} parent=47 // loop_body
                %v2351 = vld [vmem:[%s2349] sm:%s2342]
                %2352 = vst [vmem:[%s2350] sm:%s2342] %v2351
                %v2353 = vld [vmem:[%s2349 + $0x4] sm:%s2342]
                %2354 = vst [vmem:[%s2350 + $0x8] sm:%s2342] %v2353
              $region53: #{conv_pass_2d.2} parent=47 // loop_footer
                %s2348 = sadd.s32 1, %s2344
              $region54: #{conv_pass_2d.2} parent=47 // loop_footer_branch
                %2343 = sbr.rel target = $region50
              $region55: #{conv_pass_2d.2} parent=47 // loop_exit
                _
            $region48: #{conv_pass_2d.2} parent=39 // pred_fallthru
              _
          $region40: #{conv_pass_2d.2} parent=35 // pred_fallthru
            _
          %2379 = vnop
        $region36: #{conv_pass_2d.2} parent=27 // pred_fallthru
          _
        // Predicated region
        $region74: #{conv_pass_2d.2} parent=27 // pred_check
          %p2380 = pneg %p123
        $region75: #{conv_pass_2d.2} parent=27 // pred_check_branch
          %2382 = sbr.rel (%p2380) target = $region77
        $region76: #{conv_pass_2d.2} parent=27 // pred_region
          _
        $region77: #{conv_pass_2d.2} parent=27 // pred_fallthru
          _
        // Predicated region
        $region78: #{conv_pass_2d.2} parent=27 // pred_check
          %p2383 = pneg %p149
        $region79: #{conv_pass_2d.2} parent=27 // pred_check_branch
          %2385 = sbr.rel (%p2383) target = $region81
        $region80: #{conv_pass_2d.2} parent=27 // pred_region
          _
        $region81: #{conv_pass_2d.2} parent=27 // pred_fallthru
          _
      $region28: #{conv_pass_2d.2} parent=5 // pred_fallthru
        _
      %p2386 = scmp.le.s32.totalorder 2, %s11
      // Predicated region
      $region82: #{conv_pass_2d.2} parent=5 // pred_check
        %p2387 = pneg %p2386
      $region83: #{conv_pass_2d.2} parent=5 // pred_check_branch
        %2389 = sbr.rel (%p2387) target = $region85
      $region84: #{conv_pass_2d.2} parent=5 // pred_region
        %s2390 = ssub.s32 %s11, 2
        // Predicated region
        $region86: #{conv_pass_2d.2} parent=84 // pred_check
          %p2391 = pneg %p103
        $region87: #{conv_pass_2d.2} parent=84 // pred_check_branch
          %2393 = sbr.rel (%p2391) target = $region89
        $region88: #{conv_pass_2d.2} parent=84 // pred_region
          %s2394 = sand.u32 %s88, 1
          %s2395 = sand.u32 %s88, 1
          %s2396 = smul.addr %s2395, 8
          %s2397 = scalar_lea.vmem [#allocation3], %s2396
        $region89: #{conv_pass_2d.2} parent=84 // pred_fallthru
          _
        // Predicated region
        $region90: #{conv_pass_2d.2} parent=84 // pred_check
          %p2398 = pneg %p129
        $region91: #{conv_pass_2d.2} parent=84 // pred_check_branch
          %2400 = sbr.rel (%p2398) target = $region93
        $region92: #{conv_pass_2d.2} parent=84 // pred_region
          %p2401 = scmp.lt.s32.totalorder %s22, 1
          %s2402 = scalar_select %p2401, %s22, 1
          %s2403 = smul.addr %s2402, 2
          %s2404 = smul.addr %s2403, 8
          %s2405 = scalar_lea.vmem %s3, %s2404
        $region93: #{conv_pass_2d.2} parent=84 // pred_fallthru
          _
        // Predicated region
        $region94: #{conv_pass_2d.2} parent=84 // pred_check
          %p2406 = pneg %p155
        $region95: #{conv_pass_2d.2} parent=84 // pred_check_branch
          %2408 = sbr.rel (%p2406) target = $region97
        $region96: #{conv_pass_2d.2} parent=84 // pred_region
          %p2409 = scmp.lt.s32.totalorder %s22, 1
          %s2410 = scalar_select %p2409, %s22, 1
          %s2411 = smul.addr %s2410, 2
          %s2412 = smul.addr %s2411, 8
          %s2413 = scalar_lea.vmem %s4, %s2412
        $region97: #{conv_pass_2d.2} parent=84 // pred_fallthru
          _
      $region85: #{conv_pass_2d.2} parent=5 // pred_fallthru
        _
    $region6: #{conv_pass_2d.2} parent=1 // loop_footer
      %s15 = sadd.s32 1, %s11
    $region7: #{conv_pass_2d.2} parent=1 // loop_footer_branch
      %10 = sbr.rel target = $region3
    $region8: #{conv_pass_2d.2} parent=1 // loop_exit
      _

</llo_original>
